<compile_context>
chip_gen: v7x
topology: tpu7x:2x2x1
jax: 0.10.0
libtpu: 0.0.40
codegen_flags: <defaults>
</compile_context>

<pallas_src>
import functools
import numpy as np
import jax
import jax.numpy as jnp
from jax.experimental import pallas as pl
from jax.experimental.pallas import tpu as pltpu

P = 128  # padded lane (feature) width


# ---------------------------------------------------------------------------
# Single fused Pallas kernel: all hot-path compute lives here
# ---------------------------------------------------------------------------

def _gtc_forward_kernel(
    nfeat_ref, ts_ref, efeat_ref, s_ref, cd_ref, invdeg_ref,
    freq_ref, phase_ref, teb_ref, be_ref, bsn_ref,
    wx_ref, wt_ref, we_ref, ws_ref, wn_ref,
    gamma_ref, beta_ref,
    pfreq_ref, pphase_ref, ptb_ref, pwx_ref, pwt_ref, wuv_ref, pb_ref,
    gu_ref, gv_ref, dtu_ref, dtv_ref, y_ref, w_ref,
    loss_ref, *, out_feats, n_layers):
    f32 = jnp.float32
    bf16 = jnp.bfloat16

    feat = nfeat_ref[...]              # [N, P] f32, zero-padded lanes
    ts = ts_ref[...]                   # [N, 1] f32
    efeat = efeat_ref[...]             # [E, P] bf16
    s_m = s_ref[...]                   # [E, N] bf16 one-hot (src incidence)
    cd_m = cd_ref[...]                 # [N, E] bf16 0/1 (C @ D folded on host)
    inv_deg = invdeg_ref[...]          # [N, 1] f32

    # ---- GTCEncoder: n_layers fused GTCLayer('mean') blocks ---------------
    for l in range(n_layers):
        # TimeEncodingLayer('cosine'): relu([x, cos(t*f+p)] @ W + b)
        te = jnp.cos(ts * freq_ref[l] + phase_ref[l])                  # [N,P]
        h_self = (jnp.dot(feat.astype(bf16), wx_ref[l],
                          preferred_element_type=f32)
                  + jnp.dot(te.astype(bf16), wt_ref[l],
                            preferred_element_type=f32)
                  + teb_ref[l])
        h_self = jnp.maximum(h_self, 0.0)                              # [N,P]
        hb = h_self.astype(bf16)
        # fc_edge + u_add_e message + per-dst sum + temporal group-cumsum
        # (folded into CD) + mean via precomputed 1/deg.
        e_proj = (jnp.dot(efeat, we_ref[l], preferred_element_type=f32)
                  + be_ref[l])                                         # [E,P]
        msg = jnp.dot(s_m, hb, preferred_element_type=f32) + e_proj    # [E,P]
        h_neigh = jnp.dot(cd_m, msg.astype(bf16),
                          preferred_element_type=f32) * inv_deg        # [N,P]
        # rst = fc_self(h_self) + fc_neigh(h_neigh); encoder act = relu.
        # TODO(synk): nn.Dropout is stochastic in training mode; run with p=0.
        rst = (jnp.dot(hb, ws_ref[l], preferred_element_type=f32)
               + jnp.dot(h_neigh.astype(bf16), wn_ref[l],
                         preferred_element_type=f32)
               + bsn_ref[l])
        feat = jnp.maximum(rst, 0.0)

    # ---- LayerNorm(out_feats) over the real (unpadded) feature lanes ------
    lane = jax.lax.broadcasted_iota(jnp.int32, (1, feat.shape[1]), 1)
    fmask = (lane < out_feats).astype(f32)
    inv_d = 1.0 / out_feats
    mu = jnp.sum(feat, axis=-1, keepdims=True) * inv_d     # padded lanes are 0
    xc = (feat - mu) * fmask
    var = jnp.sum(xc * xc, axis=-1, keepdims=True) * inv_d
    feat = xc * jax.lax.rsqrt(var + 1e-5) * gamma_ref[...] + beta_ref[...]
    fb = feat.astype(bf16)

    # ---- GTCLinkLayer on the concatenated pos+neg batch --------------------
    featu = jnp.dot(gu_ref[...], fb, preferred_element_type=f32)      # [Bt,P]
    featv = jnp.dot(gv_ref[...], fb, preferred_element_type=f32)
    teu = jnp.cos(dtu_ref[...] * pfreq_ref[...] + pphase_ref[...])
    tev = jnp.cos(dtv_ref[...] * pfreq_ref[...] + pphase_ref[...])
    eu = jnp.maximum(
        jnp.dot(featu.astype(bf16), pwx_ref[...], preferred_element_type=f32)
        + jnp.dot(teu.astype(bf16), pwt_ref[...], preferred_element_type=f32)
        + ptb_ref[...], 0.0)
    ev = jnp.maximum(
        jnp.dot(featv.astype(bf16), pwx_ref[...], preferred_element_type=f32)
        + jnp.dot(tev.astype(bf16), pwt_ref[...], preferred_element_type=f32)
        + ptb_ref[...], 0.0)
    # concat([eu, ev]) @ W + b  ==  sum(eu*w_u) + sum(ev*w_v) + b
    logits = (jnp.sum(eu * wuv_ref[0], axis=-1, keepdims=True)
              + jnp.sum(ev * wuv_ref[1], axis=-1, keepdims=True)
              + pb_ref[...])                                          # [Bt,1]

    # ---- BCEWithLogitsLoss: pos-mean + neg-mean via per-row weights --------
    y = y_ref[...]
    w = w_ref[...]
    per = (jnp.maximum(logits, 0.0) - logits * y
           + jnp.log(1.0 + jnp.exp(-jnp.abs(logits))))
    # TODO(synk): contra_samples / MarginRankingLoss path not exercised
    # (contra_samples=None in this synthetic run).
    loss_ref[...] = jnp.sum(per * w, axis=0, keepdims=True)


# ---------------------------------------------------------------------------
# pallas_call wrapper
# ---------------------------------------------------------------------------

def _full_spec(shape):
    n = len(shape)
    return pl.BlockSpec(shape, lambda i, n=n: (0,) * n)


def gtc_trainer_forward(params, graph, batch, *, out_feats, n_layers):
    args = [
        graph["nfeat"], graph["ts"], graph["efeat"], graph["S"], graph["CD"],
        graph["inv_deg"],
        params["freq"], params["phase"], params["teb"], params["be"],
        params["bsn"], params["wx"], params["wt"], params["we"], params["ws"],
        params["wn"], params["gamma"], params["beta"],
        params["pfreq"], params["pphase"], params["ptb"], params["pwx"],
        params["pwt"], params["wuv"], params["pb"],
        batch["gu"], batch["gv"], batch["dtu"], batch["dtv"], batch["y"],
        batch["w"],
    ]
    kernel = functools.partial(_gtc_forward_kernel, out_feats=out_feats,
                               n_layers=n_layers)
    loss = pl.pallas_call(
        kernel,
        out_shape=jax.ShapeDtypeStruct((1, 1), jnp.float32),
        grid=(1,),
        in_specs=[_full_spec(a.shape) for a in args],
        out_specs=_full_spec((1, 1)),
        compiler_params=pltpu.CompilerParams(
            dimension_semantics=("arbitrary",)),
    )(*args)
    return loss[0, 0]


# ---------------------------------------------------------------------------
# Parameter init (deterministic; padded + stacked for the fused kernel)
# ---------------------------------------------------------------------------

def _xavier(key, shape, gain=float(np.sqrt(2.0))):
    fan_in, fan_out = shape
    bound = gain * np.sqrt(6.0 / (fan_in + fan_out))
    return np.asarray(jax.random.uniform(key, shape, jnp.float32, -bound, bound))


def _pad(a, shape):
    out = np.zeros(shape, np.float32)
    out[tuple(slice(0, s) for s in a.shape)] = a
    return out


def init_params(key, in_feats, n_hidden, out_feats, edge_feats, n_layers=2):
    dims = ([(in_feats, n_hidden)]
            + [(n_hidden, n_hidden)] * (n_layers - 2)
            + [(n_hidden, out_feats)])
    L = len(dims)
    freq_s = np.zeros((L, 1, P), np.float32)
    phase_s = np.zeros((L, 1, P), np.float32)
    teb_s = np.zeros((L, 1, P), np.float32)
    be_s = np.zeros((L, 1, P), np.float32)
    bsn_s = np.zeros((L, 1, P), np.float32)   # fc_self.bias + fc_neigh.bias
    wx_s = np.zeros((L, P, P), np.float32)
    wt_s = np.zeros((L, P, P), np.float32)
    we_s = np.zeros((L, P, P), np.float32)
    ws_s = np.zeros((L, P, P), np.float32)
    wn_s = np.zeros((L, P, P), np.float32)
    for l, (d_in, d_out) in enumerate(dims):
        key, k0, k1, k2, k3, k4 = jax.random.split(key, 6)
        freq_s[l, 0, :d_in] = 1.0 / 10.0 ** np.linspace(0.0, 9.0, d_in)
        wx_s[l, :d_in, :d_in] = _xavier(k0, (d_in, d_in))
        wt_s[l, :d_in, :d_in] = _xavier(k1, (d_in, d_in))
        we_s[l, :edge_feats, :d_in] = _xavier(k2, (edge_feats, d_in))
        ws_s[l, :d_in, :d_out] = _xavier(k3, (d_in, d_out))
        wn_s[l, :d_in, :d_out] = _xavier(k4, (d_in, d_out))
        # TODO(synk): PyTorch Linear biases use uniform init; zeros kept here.
    key, k0, k1, k2, k3 = jax.random.split(key, 5)
    d = out_feats
    pfreq = _pad((1.0 / 10.0 ** np.linspace(0.0, 9.0, d)).reshape(1, d), (1, P))
    pwx = _pad(_xavier(k0, (d, d)), (P, P))
    pwt = _pad(_xavier(k1, (d, d)), (P, P))
    wuv = np.zeros((2, 1, P), np.float32)
    wuv[0, 0, :d] = _xavier(k2, (d, 1))[:, 0]
    wuv[1, 0, :d] = _xavier(k3, (d, 1))[:, 0]
    bf = jnp.bfloat16
    return dict(
        freq=jnp.asarray(freq_s), phase=jnp.asarray(phase_s),
        teb=jnp.asarray(teb_s), be=jnp.asarray(be_s), bsn=jnp.asarray(bsn_s),
        wx=jnp.asarray(wx_s, bf), wt=jnp.asarray(wt_s, bf),
        we=jnp.asarray(we_s, bf), ws=jnp.asarray(ws_s, bf),
        wn=jnp.asarray(wn_s, bf),
        gamma=jnp.asarray(_pad(np.ones((1, d), np.float32), (1, P))),
        beta=jnp.asarray(np.zeros((1, P), np.float32)),
        pfreq=jnp.asarray(pfreq),
        pphase=jnp.asarray(np.zeros((1, P), np.float32)),
        ptb=jnp.asarray(np.zeros((1, P), np.float32)),
        pwx=jnp.asarray(pwx, bf), pwt=jnp.asarray(pwt, bf),
        wuv=jnp.asarray(wuv),
        pb=jnp.asarray(np.zeros((1, 1), np.float32)))


# ---------------------------------------------------------------------------
# Host-side graph indexing glue (exact replica of the reference find_idx)
# ---------------------------------------------------------------------------

def find_idx(src_idx, cut_time, new_nodes_l, adj_ts_l):
    out_node_ids = np.zeros_like(src_idx)
    for i, (idx, t) in enumerate(zip(src_idx, cut_time)):
        nodes = new_nodes_l[idx]
        ts = adj_ts_l[idx]
        left = np.searchsorted(ts, t, side="left")
        left = max(0, left - 1)
        out_node_ids[i] = nodes[left]
    return out_node_ids


# ---------------------------------------------------------------------------
# Main
# ---------------------------------------------------------------------------

if __name__ == "__main__":
    n_orig, copies_per = 4, 4
    N = n_orig * copies_per          # temporal node copies
    E = 16                           # aggregation-graph edges
    in_feats, n_hidden, out_feats, edge_feats = 16, 32, 32, 8
    B, n_neg = 4, 2
    n_layers = 2

    key = jax.random.PRNGKey(0)
    key, k_nf, k_ef, k_p = jax.random.split(key, 4)
    params = init_params(k_p, in_feats, n_hidden, out_feats, edge_feats,
                         n_layers)

    # synthetic temporal graph (DGL-graph stand-in)
    new_node_ids = [np.arange(g * copies_per, (g + 1) * copies_per)
                    for g in range(n_orig)]
    new_node_tss = [np.array([1.0, 2.0, 3.0, 4.0], np.float32)
                    for _ in range(n_orig)]
    node_ts = np.concatenate(new_node_tss).astype(np.float32)            # [N]

    rng = np.random.RandomState(0)
    src_e = rng.randint(0, N, E)
    dst_e = rng.randint(0, N, E)
    D = np.zeros((N, E), np.float32); D[dst_e, np.arange(E)] = 1.0        # dst
    S = np.zeros((E, N), np.float32); S[np.arange(E), src_e] = 1.0        # src
    C = np.zeros((N, N), np.float32)                    # group-cumsum + ridx
    for ids in new_node_ids:
        for pi, i in enumerate(ids):
            for j in ids[:pi + 1]:
                C[i, j] = 1.0
    CD = (C @ D).astype(np.float32)       # folded scatter+cumsum, values {0,1}
    indeg = np.bincount(dst_e, minlength=N).astype(np.float32)
    degs = np.maximum(C @ indeg, 1.0).reshape(N, 1).astype(np.float32)
    inv_deg = (1.0 / degs).astype(np.float32)

    nfeat0 = np.asarray(jax.random.normal(k_nf, (N, in_feats), jnp.float32))
    efeat = np.asarray(jax.random.normal(k_ef, (E, edge_feats), jnp.float32))

    # batch samples (original node ids + interaction times)
    src = np.array([0, 1, 2, 3])
    dst = np.array([1, 2, 3, 0])
    t = np.array([2.5, 3.5, 1.5, 4.0], np.float32)
    neg_dst = rng.randint(0, n_orig, B * n_neg)

    src_idx = find_idx(src, t, new_node_ids, new_node_tss)
    dst_idx = find_idx(dst, t, new_node_ids, new_node_tss)
    neg_idx = find_idx(neg_dst, t.repeat(n_neg), new_node_ids, new_node_tss)
    neg_src_idx = src_idx.repeat(n_neg)       # numpy .repeat = elementwise
    t_neg = np.tile(t, n_neg)                 # torch tensor .repeat = tile

    # concatenated pos+neg link-pred batch, padded to a sublane multiple with
    # zero-weight rows; per-row weights implement the two BCE means.
    Bp, Bn = B, B * n_neg
    Bt = int(np.ceil((Bp + Bn) / 8.0)) * 8
    u_idx = np.concatenate([src_idx, neg_src_idx])
    v_idx = np.concatenate([dst_idx, neg_idx])
    t_all = np.concatenate([t, t_neg]).astype(np.float32)
    gu = np.zeros((Bt, N), np.float32); gu[np.arange(Bp + Bn), u_idx] = 1.0
    gv = np.zeros((Bt, N), np.float32); gv[np.arange(Bp + Bn), v_idx] = 1.0
    dtu = np.zeros((Bt, 1), np.float32); dtu[:Bp + Bn, 0] = t_all - node_ts[u_idx]
    dtv = np.zeros((Bt, 1), np.float32); dtv[:Bp + Bn, 0] = t_all - node_ts[v_idx]
    y = np.zeros((Bt, 1), np.float32); y[:Bp, 0] = 1.0
    w = np.zeros((Bt, 1), np.float32)
    w[:Bp, 0] = 1.0 / Bp
    w[Bp:Bp + Bn, 0] = 1.0 / Bn

    bf = jnp.bfloat16
    graph = dict(
        nfeat=jnp.asarray(_pad(nfeat0, (N, P))),
        ts=jnp.asarray(node_ts.reshape(N, 1)),
        efeat=jnp.asarray(_pad(efeat, (E, P)), bf),
        S=jnp.asarray(S, bf),
        CD=jnp.asarray(CD, bf),
        inv_deg=jnp.asarray(inv_deg))
    batch = dict(gu=jnp.asarray(gu, bf), gv=jnp.asarray(gv, bf),
                 dtu=jnp.asarray(dtu), dtv=jnp.asarray(dtv),
                 y=jnp.asarray(y), w=jnp.asarray(w))

    loss = gtc_trainer_forward(params, graph, batch,
                               out_feats=out_feats, n_layers=n_layers)
    jax.block_until_ready(loss)
    print("KERNEL_OK")
</pallas_src>

<mosaic_0001>
module attributes {stable_mosaic.version = 11 : i64} {
  func.func @_gtc_forward_kernel(%arg0: i32, %arg1: memref<16x128xf32, #tpu.memory_space<vmem>>, %arg2: memref<16x1xf32, #tpu.memory_space<vmem>>, %arg3: memref<16x128xbf16, #tpu.memory_space<vmem>>, %arg4: memref<16x16xbf16, #tpu.memory_space<vmem>>, %arg5: memref<16x16xbf16, #tpu.memory_space<vmem>>, %arg6: memref<16x1xf32, #tpu.memory_space<vmem>>, %arg7: memref<2x1x128xf32, #tpu.memory_space<vmem>>, %arg8: memref<2x1x128xf32, #tpu.memory_space<vmem>>, %arg9: memref<2x1x128xf32, #tpu.memory_space<vmem>>, %arg10: memref<2x1x128xf32, #tpu.memory_space<vmem>>, %arg11: memref<2x1x128xf32, #tpu.memory_space<vmem>>, %arg12: memref<2x128x128xbf16, #tpu.memory_space<vmem>>, %arg13: memref<2x128x128xbf16, #tpu.memory_space<vmem>>, %arg14: memref<2x128x128xbf16, #tpu.memory_space<vmem>>, %arg15: memref<2x128x128xbf16, #tpu.memory_space<vmem>>, %arg16: memref<2x128x128xbf16, #tpu.memory_space<vmem>>, %arg17: memref<1x128xf32, #tpu.memory_space<vmem>>, %arg18: memref<1x128xf32, #tpu.memory_space<vmem>>, %arg19: memref<1x128xf32, #tpu.memory_space<vmem>>, %arg20: memref<1x128xf32, #tpu.memory_space<vmem>>, %arg21: memref<1x128xf32, #tpu.memory_space<vmem>>, %arg22: memref<128x128xbf16, #tpu.memory_space<vmem>>, %arg23: memref<128x128xbf16, #tpu.memory_space<vmem>>, %arg24: memref<2x1x128xf32, #tpu.memory_space<vmem>>, %arg25: memref<1x1xf32, #tpu.memory_space<vmem>>, %arg26: memref<16x16xbf16, #tpu.memory_space<vmem>>, %arg27: memref<16x16xbf16, #tpu.memory_space<vmem>>, %arg28: memref<16x1xf32, #tpu.memory_space<vmem>>, %arg29: memref<16x1xf32, #tpu.memory_space<vmem>>, %arg30: memref<16x1xf32, #tpu.memory_space<vmem>>, %arg31: memref<16x1xf32, #tpu.memory_space<vmem>>, %arg32: memref<1x1xf32, #tpu.memory_space<vmem>>) attributes {dimension_semantics = [#tpu.dimension_semantics<arbitrary>], iteration_bounds = array<i64: 1>, scalar_prefetch = 0 : i64, scratch_operands = 0 : i64, tpu.core_type = #tpu.core_type<tc>, window_params = [{pipeline_mode = #tpu.pipeline_mode<synchronous>, transform_indices = @transform_0, window_bounds = array<i64: 16, 128>}, {pipeline_mode = #tpu.pipeline_mode<synchronous>, transform_indices = @transform_1, window_bounds = array<i64: 16, 1>}, {pipeline_mode = #tpu.pipeline_mode<synchronous>, transform_indices = @transform_2, window_bounds = array<i64: 16, 128>}, {pipeline_mode = #tpu.pipeline_mode<synchronous>, transform_indices = @transform_3, window_bounds = array<i64: 16, 16>}, {pipeline_mode = #tpu.pipeline_mode<synchronous>, transform_indices = @transform_4, window_bounds = array<i64: 16, 16>}, {pipeline_mode = #tpu.pipeline_mode<synchronous>, transform_indices = @transform_5, window_bounds = array<i64: 16, 1>}, {pipeline_mode = #tpu.pipeline_mode<synchronous>, transform_indices = @transform_6, window_bounds = array<i64: 2, 1, 128>}, {pipeline_mode = #tpu.pipeline_mode<synchronous>, transform_indices = @transform_7, window_bounds = array<i64: 2, 1, 128>}, {pipeline_mode = #tpu.pipeline_mode<synchronous>, transform_indices = @transform_8, window_bounds = array<i64: 2, 1, 128>}, {pipeline_mode = #tpu.pipeline_mode<synchronous>, transform_indices = @transform_9, window_bounds = array<i64: 2, 1, 128>}, {pipeline_mode = #tpu.pipeline_mode<synchronous>, transform_indices = @transform_10, window_bounds = array<i64: 2, 1, 128>}, {pipeline_mode = #tpu.pipeline_mode<synchronous>, transform_indices = @transform_11, window_bounds = array<i64: 2, 128, 128>}, {pipeline_mode = #tpu.pipeline_mode<synchronous>, transform_indices = @transform_12, window_bounds = array<i64: 2, 128, 128>}, {pipeline_mode = #tpu.pipeline_mode<synchronous>, transform_indices = @transform_13, window_bounds = array<i64: 2, 128, 128>}, {pipeline_mode = #tpu.pipeline_mode<synchronous>, transform_indices = @transform_14, window_bounds = array<i64: 2, 128, 128>}, {pipeline_mode = #tpu.pipeline_mode<synchronous>, transform_indices = @transform_15, window_bounds = array<i64: 2, 128, 128>}, {pipeline_mode = #tpu.pipeline_mode<synchronous>, transform_indices = @transform_16, window_bounds = array<i64: 1, 128>}, {pipeline_mode = #tpu.pipeline_mode<synchronous>, transform_indices = @transform_17, window_bounds = array<i64: 1, 128>}, {pipeline_mode = #tpu.pipeline_mode<synchronous>, transform_indices = @transform_18, window_bounds = array<i64: 1, 128>}, {pipeline_mode = #tpu.pipeline_mode<synchronous>, transform_indices = @transform_19, window_bounds = array<i64: 1, 128>}, {pipeline_mode = #tpu.pipeline_mode<synchronous>, transform_indices = @transform_20, window_bounds = array<i64: 1, 128>}, {pipeline_mode = #tpu.pipeline_mode<synchronous>, transform_indices = @transform_21, window_bounds = array<i64: 128, 128>}, {pipeline_mode = #tpu.pipeline_mode<synchronous>, transform_indices = @transform_22, window_bounds = array<i64: 128, 128>}, {pipeline_mode = #tpu.pipeline_mode<synchronous>, transform_indices = @transform_23, window_bounds = array<i64: 2, 1, 128>}, {pipeline_mode = #tpu.pipeline_mode<synchronous>, transform_indices = @transform_24, window_bounds = array<i64: 1, 1>}, {pipeline_mode = #tpu.pipeline_mode<synchronous>, transform_indices = @transform_25, window_bounds = array<i64: 16, 16>}, {pipeline_mode = #tpu.pipeline_mode<synchronous>, transform_indices = @transform_26, window_bounds = array<i64: 16, 16>}, {pipeline_mode = #tpu.pipeline_mode<synchronous>, transform_indices = @transform_27, window_bounds = array<i64: 16, 1>}, {pipeline_mode = #tpu.pipeline_mode<synchronous>, transform_indices = @transform_28, window_bounds = array<i64: 16, 1>}, {pipeline_mode = #tpu.pipeline_mode<synchronous>, transform_indices = @transform_29, window_bounds = array<i64: 16, 1>}, {pipeline_mode = #tpu.pipeline_mode<synchronous>, transform_indices = @transform_30, window_bounds = array<i64: 16, 1>}, {pipeline_mode = #tpu.pipeline_mode<synchronous>, transform_indices = @transform_31, window_bounds = array<i64: 1, 1>}]} {
    %c0 = arith.constant 0 : index
    %c0_0 = arith.constant 0 : index
    %0 = vector.load %arg1[%c0, %c0_0] : memref<16x128xf32, #tpu.memory_space<vmem>>, vector<16x128xf32>
    %c0_1 = arith.constant 0 : index
    %c0_2 = arith.constant 0 : index
    %1 = vector.load %arg2[%c0_1, %c0_2] : memref<16x1xf32, #tpu.memory_space<vmem>>, vector<16x1xf32>
    %c0_3 = arith.constant 0 : index
    %c0_4 = arith.constant 0 : index
    %2 = vector.load %arg3[%c0_3, %c0_4] : memref<16x128xbf16, #tpu.memory_space<vmem>>, vector<16x128xbf16>
    %c0_5 = arith.constant 0 : index
    %c0_6 = arith.constant 0 : index
    %3 = vector.load %arg4[%c0_5, %c0_6] : memref<16x16xbf16, #tpu.memory_space<vmem>>, vector<16x16xbf16>
    %c0_7 = arith.constant 0 : index
    %c0_8 = arith.constant 0 : index
    %4 = vector.load %arg5[%c0_7, %c0_8] : memref<16x16xbf16, #tpu.memory_space<vmem>>, vector<16x16xbf16>
    %c0_9 = arith.constant 0 : index
    %c0_10 = arith.constant 0 : index
    %5 = vector.load %arg6[%c0_9, %c0_10] : memref<16x1xf32, #tpu.memory_space<vmem>>, vector<16x1xf32>
    %c0_11 = arith.constant 0 : index
    %c0_12 = arith.constant 0 : index
    %c0_13 = arith.constant 0 : index
    %6 = vector.load %arg7[%c0_11, %c0_12, %c0_13] : memref<2x1x128xf32, #tpu.memory_space<vmem>>, vector<1x1x128xf32>
    %7 = vector.shape_cast %6 : vector<1x1x128xf32> to vector<1x128xf32>
    %8 = vector.broadcast %1 : vector<16x1xf32> to vector<16x128xf32>
    %9 = vector.broadcast %7 : vector<1x128xf32> to vector<16x128xf32>
    %10 = arith.mulf %8, %9 : vector<16x128xf32>
    %c0_14 = arith.constant 0 : index
    %c0_15 = arith.constant 0 : index
    %c0_16 = arith.constant 0 : index
    %11 = vector.load %arg8[%c0_14, %c0_15, %c0_16] : memref<2x1x128xf32, #tpu.memory_space<vmem>>, vector<1x1x128xf32>
    %12 = vector.shape_cast %11 : vector<1x1x128xf32> to vector<1x128xf32>
    %13 = vector.broadcast %12 : vector<1x128xf32> to vector<16x128xf32>
    %14 = arith.addf %10, %13 : vector<16x128xf32>
    %15 = math.cos %14 : vector<16x128xf32>
    %16 = arith.truncf %0 : vector<16x128xf32> to vector<16x128xbf16>
    %c0_17 = arith.constant 0 : index
    %c0_18 = arith.constant 0 : index
    %c0_19 = arith.constant 0 : index
    %17 = vector.load %arg12[%c0_17, %c0_18, %c0_19] : memref<2x128x128xbf16, #tpu.memory_space<vmem>>, vector<1x128x128xbf16>
    %18 = vector.shape_cast %17 : vector<1x128x128xbf16> to vector<128x128xbf16>
    %cst = arith.constant dense<0.000000e+00> : vector<16x128xf32>
    %19 = tpu.matmul %16, %18, %cst {dimension_numbers = #tpu.dot_dimension_numbers<[1], [0], [0], [1], [0, 0, 1, 1], [], []>} : vector<16x128xbf16>, vector<128x128xbf16>, vector<16x128xf32> -> vector<16x128xf32>
    %20 = arith.truncf %15 : vector<16x128xf32> to vector<16x128xbf16>
    %c0_20 = arith.constant 0 : index
    %c0_21 = arith.constant 0 : index
    %c0_22 = arith.constant 0 : index
    %21 = vector.load %arg13[%c0_20, %c0_21, %c0_22] : memref<2x128x128xbf16, #tpu.memory_space<vmem>>, vector<1x128x128xbf16>
    %22 = vector.shape_cast %21 : vector<1x128x128xbf16> to vector<128x128xbf16>
    %cst_23 = arith.constant dense<0.000000e+00> : vector<16x128xf32>
    %23 = tpu.matmul %20, %22, %cst_23 {dimension_numbers = #tpu.dot_dimension_numbers<[1], [0], [0], [1], [0, 0, 1, 1], [], []>} : vector<16x128xbf16>, vector<128x128xbf16>, vector<16x128xf32> -> vector<16x128xf32>
    %24 = arith.addf %19, %23 : vector<16x128xf32>
    %c0_24 = arith.constant 0 : index
    %c0_25 = arith.constant 0 : index
    %c0_26 = arith.constant 0 : index
    %25 = vector.load %arg9[%c0_24, %c0_25, %c0_26] : memref<2x1x128xf32, #tpu.memory_space<vmem>>, vector<1x1x128xf32>
    %26 = vector.shape_cast %25 : vector<1x1x128xf32> to vector<1x128xf32>
    %27 = vector.broadcast %26 : vector<1x128xf32> to vector<16x128xf32>
    %28 = arith.addf %24, %27 : vector<16x128xf32>
    %cst_27 = arith.constant 0.000000e+00 : f32
    %29 = vector.broadcast %cst_27 : f32 to vector<16x128xf32>
    %30 = arith.maximumf %28, %29 : vector<16x128xf32>
    %31 = arith.truncf %30 : vector<16x128xf32> to vector<16x128xbf16>
    %c0_28 = arith.constant 0 : index
    %c0_29 = arith.constant 0 : index
    %c0_30 = arith.constant 0 : index
    %32 = vector.load %arg14[%c0_28, %c0_29, %c0_30] : memref<2x128x128xbf16, #tpu.memory_space<vmem>>, vector<1x128x128xbf16>
    %33 = vector.shape_cast %32 : vector<1x128x128xbf16> to vector<128x128xbf16>
    %cst_31 = arith.constant dense<0.000000e+00> : vector<16x128xf32>
    %34 = tpu.matmul %2, %33, %cst_31 {dimension_numbers = #tpu.dot_dimension_numbers<[1], [0], [0], [1], [0, 0, 1, 1], [], []>} : vector<16x128xbf16>, vector<128x128xbf16>, vector<16x128xf32> -> vector<16x128xf32>
    %c0_32 = arith.constant 0 : index
    %c0_33 = arith.constant 0 : index
    %c0_34 = arith.constant 0 : index
    %35 = vector.load %arg10[%c0_32, %c0_33, %c0_34] : memref<2x1x128xf32, #tpu.memory_space<vmem>>, vector<1x1x128xf32>
    %36 = vector.shape_cast %35 : vector<1x1x128xf32> to vector<1x128xf32>
    %37 = vector.broadcast %36 : vector<1x128xf32> to vector<16x128xf32>
    %38 = arith.addf %34, %37 : vector<16x128xf32>
    %cst_35 = arith.constant dense<0.000000e+00> : vector<16x128xf32>
    %39 = tpu.matmul %3, %31, %cst_35 {dimension_numbers = #tpu.dot_dimension_numbers<[1], [0], [0], [1], [0, 0, 1, 1], [], []>} : vector<16x16xbf16>, vector<16x128xbf16>, vector<16x128xf32> -> vector<16x128xf32>
    %40 = arith.addf %39, %38 : vector<16x128xf32>
    %41 = arith.truncf %40 : vector<16x128xf32> to vector<16x128xbf16>
    %cst_36 = arith.constant dense<0.000000e+00> : vector<16x128xf32>
    %42 = tpu.matmul %4, %41, %cst_36 {dimension_numbers = #tpu.dot_dimension_numbers<[1], [0], [0], [1], [0, 0, 1, 1], [], []>} : vector<16x16xbf16>, vector<16x128xbf16>, vector<16x128xf32> -> vector<16x128xf32>
    %43 = vector.broadcast %5 : vector<16x1xf32> to vector<16x128xf32>
    %44 = arith.mulf %42, %43 : vector<16x128xf32>
    %c0_37 = arith.constant 0 : index
    %c0_38 = arith.constant 0 : index
    %c0_39 = arith.constant 0 : index
    %45 = vector.load %arg15[%c0_37, %c0_38, %c0_39] : memref<2x128x128xbf16, #tpu.memory_space<vmem>>, vector<1x128x128xbf16>
    %46 = vector.shape_cast %45 : vector<1x128x128xbf16> to vector<128x128xbf16>
    %cst_40 = arith.constant dense<0.000000e+00> : vector<16x128xf32>
    %47 = tpu.matmul %31, %46, %cst_40 {dimension_numbers = #tpu.dot_dimension_numbers<[1], [0], [0], [1], [0, 0, 1, 1], [], []>} : vector<16x128xbf16>, vector<128x128xbf16>, vector<16x128xf32> -> vector<16x128xf32>
    %48 = arith.truncf %44 : vector<16x128xf32> to vector<16x128xbf16>
    %c0_41 = arith.constant 0 : index
    %c0_42 = arith.constant 0 : index
    %c0_43 = arith.constant 0 : index
    %49 = vector.load %arg16[%c0_41, %c0_42, %c0_43] : memref<2x128x128xbf16, #tpu.memory_space<vmem>>, vector<1x128x128xbf16>
    %50 = vector.shape_cast %49 : vector<1x128x128xbf16> to vector<128x128xbf16>
    %cst_44 = arith.constant dense<0.000000e+00> : vector<16x128xf32>
    %51 = tpu.matmul %48, %50, %cst_44 {dimension_numbers = #tpu.dot_dimension_numbers<[1], [0], [0], [1], [0, 0, 1, 1], [], []>} : vector<16x128xbf16>, vector<128x128xbf16>, vector<16x128xf32> -> vector<16x128xf32>
    %52 = arith.addf %47, %51 : vector<16x128xf32>
    %c0_45 = arith.constant 0 : index
    %c0_46 = arith.constant 0 : index
    %c0_47 = arith.constant 0 : index
    %53 = vector.load %arg11[%c0_45, %c0_46, %c0_47] : memref<2x1x128xf32, #tpu.memory_space<vmem>>, vector<1x1x128xf32>
    %54 = vector.shape_cast %53 : vector<1x1x128xf32> to vector<1x128xf32>
    %55 = vector.broadcast %54 : vector<1x128xf32> to vector<16x128xf32>
    %56 = arith.addf %52, %55 : vector<16x128xf32>
    %cst_48 = arith.constant 0.000000e+00 : f32
    %57 = vector.broadcast %cst_48 : f32 to vector<16x128xf32>
    %58 = arith.maximumf %56, %57 : vector<16x128xf32>
    %c1 = arith.constant 1 : index
    %c0_49 = arith.constant 0 : index
    %c0_50 = arith.constant 0 : index
    %59 = vector.load %arg7[%c1, %c0_49, %c0_50] : memref<2x1x128xf32, #tpu.memory_space<vmem>>, vector<1x1x128xf32>
    %60 = vector.shape_cast %59 : vector<1x1x128xf32> to vector<1x128xf32>
    %61 = vector.broadcast %1 : vector<16x1xf32> to vector<16x128xf32>
    %62 = vector.broadcast %60 : vector<1x128xf32> to vector<16x128xf32>
    %63 = arith.mulf %61, %62 : vector<16x128xf32>
    %c1_51 = arith.constant 1 : index
    %c0_52 = arith.constant 0 : index
    %c0_53 = arith.constant 0 : index
    %64 = vector.load %arg8[%c1_51, %c0_52, %c0_53] : memref<2x1x128xf32, #tpu.memory_space<vmem>>, vector<1x1x128xf32>
    %65 = vector.shape_cast %64 : vector<1x1x128xf32> to vector<1x128xf32>
    %66 = vector.broadcast %65 : vector<1x128xf32> to vector<16x128xf32>
    %67 = arith.addf %63, %66 : vector<16x128xf32>
    %68 = math.cos %67 : vector<16x128xf32>
    %69 = arith.truncf %58 : vector<16x128xf32> to vector<16x128xbf16>
    %c1_54 = arith.constant 1 : index
    %c0_55 = arith.constant 0 : index
    %c0_56 = arith.constant 0 : index
    %70 = vector.load %arg12[%c1_54, %c0_55, %c0_56] : memref<2x128x128xbf16, #tpu.memory_space<vmem>>, vector<1x128x128xbf16>
    %71 = vector.shape_cast %70 : vector<1x128x128xbf16> to vector<128x128xbf16>
    %cst_57 = arith.constant dense<0.000000e+00> : vector<16x128xf32>
    %72 = tpu.matmul %69, %71, %cst_57 {dimension_numbers = #tpu.dot_dimension_numbers<[1], [0], [0], [1], [0, 0, 1, 1], [], []>} : vector<16x128xbf16>, vector<128x128xbf16>, vector<16x128xf32> -> vector<16x128xf32>
    %73 = arith.truncf %68 : vector<16x128xf32> to vector<16x128xbf16>
    %c1_58 = arith.constant 1 : index
    %c0_59 = arith.constant 0 : index
    %c0_60 = arith.constant 0 : index
    %74 = vector.load %arg13[%c1_58, %c0_59, %c0_60] : memref<2x128x128xbf16, #tpu.memory_space<vmem>>, vector<1x128x128xbf16>
    %75 = vector.shape_cast %74 : vector<1x128x128xbf16> to vector<128x128xbf16>
    %cst_61 = arith.constant dense<0.000000e+00> : vector<16x128xf32>
    %76 = tpu.matmul %73, %75, %cst_61 {dimension_numbers = #tpu.dot_dimension_numbers<[1], [0], [0], [1], [0, 0, 1, 1], [], []>} : vector<16x128xbf16>, vector<128x128xbf16>, vector<16x128xf32> -> vector<16x128xf32>
    %77 = arith.addf %72, %76 : vector<16x128xf32>
    %c1_62 = arith.constant 1 : index
    %c0_63 = arith.constant 0 : index
    %c0_64 = arith.constant 0 : index
    %78 = vector.load %arg9[%c1_62, %c0_63, %c0_64] : memref<2x1x128xf32, #tpu.memory_space<vmem>>, vector<1x1x128xf32>
    %79 = vector.shape_cast %78 : vector<1x1x128xf32> to vector<1x128xf32>
    %80 = vector.broadcast %79 : vector<1x128xf32> to vector<16x128xf32>
    %81 = arith.addf %77, %80 : vector<16x128xf32>
    %cst_65 = arith.constant 0.000000e+00 : f32
    %82 = vector.broadcast %cst_65 : f32 to vector<16x128xf32>
    %83 = arith.maximumf %81, %82 : vector<16x128xf32>
    %84 = arith.truncf %83 : vector<16x128xf32> to vector<16x128xbf16>
    %c1_66 = arith.constant 1 : index
    %c0_67 = arith.constant 0 : index
    %c0_68 = arith.constant 0 : index
    %85 = vector.load %arg14[%c1_66, %c0_67, %c0_68] : memref<2x128x128xbf16, #tpu.memory_space<vmem>>, vector<1x128x128xbf16>
    %86 = vector.shape_cast %85 : vector<1x128x128xbf16> to vector<128x128xbf16>
    %cst_69 = arith.constant dense<0.000000e+00> : vector<16x128xf32>
    %87 = tpu.matmul %2, %86, %cst_69 {dimension_numbers = #tpu.dot_dimension_numbers<[1], [0], [0], [1], [0, 0, 1, 1], [], []>} : vector<16x128xbf16>, vector<128x128xbf16>, vector<16x128xf32> -> vector<16x128xf32>
    %c1_70 = arith.constant 1 : index
    %c0_71 = arith.constant 0 : index
    %c0_72 = arith.constant 0 : index
    %88 = vector.load %arg10[%c1_70, %c0_71, %c0_72] : memref<2x1x128xf32, #tpu.memory_space<vmem>>, vector<1x1x128xf32>
    %89 = vector.shape_cast %88 : vector<1x1x128xf32> to vector<1x128xf32>
    %90 = vector.broadcast %89 : vector<1x128xf32> to vector<16x128xf32>
    %91 = arith.addf %87, %90 : vector<16x128xf32>
    %cst_73 = arith.constant dense<0.000000e+00> : vector<16x128xf32>
    %92 = tpu.matmul %3, %84, %cst_73 {dimension_numbers = #tpu.dot_dimension_numbers<[1], [0], [0], [1], [0, 0, 1, 1], [], []>} : vector<16x16xbf16>, vector<16x128xbf16>, vector<16x128xf32> -> vector<16x128xf32>
    %93 = arith.addf %92, %91 : vector<16x128xf32>
    %94 = arith.truncf %93 : vector<16x128xf32> to vector<16x128xbf16>
    %cst_74 = arith.constant dense<0.000000e+00> : vector<16x128xf32>
    %95 = tpu.matmul %4, %94, %cst_74 {dimension_numbers = #tpu.dot_dimension_numbers<[1], [0], [0], [1], [0, 0, 1, 1], [], []>} : vector<16x16xbf16>, vector<16x128xbf16>, vector<16x128xf32> -> vector<16x128xf32>
    %96 = vector.broadcast %5 : vector<16x1xf32> to vector<16x128xf32>
    %97 = arith.mulf %95, %96 : vector<16x128xf32>
    %c1_75 = arith.constant 1 : index
    %c0_76 = arith.constant 0 : index
    %c0_77 = arith.constant 0 : index
    %98 = vector.load %arg15[%c1_75, %c0_76, %c0_77] : memref<2x128x128xbf16, #tpu.memory_space<vmem>>, vector<1x128x128xbf16>
    %99 = vector.shape_cast %98 : vector<1x128x128xbf16> to vector<128x128xbf16>
    %cst_78 = arith.constant dense<0.000000e+00> : vector<16x128xf32>
    %100 = tpu.matmul %84, %99, %cst_78 {dimension_numbers = #tpu.dot_dimension_numbers<[1], [0], [0], [1], [0, 0, 1, 1], [], []>} : vector<16x128xbf16>, vector<128x128xbf16>, vector<16x128xf32> -> vector<16x128xf32>
    %101 = arith.truncf %97 : vector<16x128xf32> to vector<16x128xbf16>
    %c1_79 = arith.constant 1 : index
    %c0_80 = arith.constant 0 : index
    %c0_81 = arith.constant 0 : index
    %102 = vector.load %arg16[%c1_79, %c0_80, %c0_81] : memref<2x128x128xbf16, #tpu.memory_space<vmem>>, vector<1x128x128xbf16>
    %103 = vector.shape_cast %102 : vector<1x128x128xbf16> to vector<128x128xbf16>
    %cst_82 = arith.constant dense<0.000000e+00> : vector<16x128xf32>
    %104 = tpu.matmul %101, %103, %cst_82 {dimension_numbers = #tpu.dot_dimension_numbers<[1], [0], [0], [1], [0, 0, 1, 1], [], []>} : vector<16x128xbf16>, vector<128x128xbf16>, vector<16x128xf32> -> vector<16x128xf32>
    %105 = arith.addf %100, %104 : vector<16x128xf32>
    %c1_83 = arith.constant 1 : index
    %c0_84 = arith.constant 0 : index
    %c0_85 = arith.constant 0 : index
    %106 = vector.load %arg11[%c1_83, %c0_84, %c0_85] : memref<2x1x128xf32, #tpu.memory_space<vmem>>, vector<1x1x128xf32>
    %107 = vector.shape_cast %106 : vector<1x1x128xf32> to vector<1x128xf32>
    %108 = vector.broadcast %107 : vector<1x128xf32> to vector<16x128xf32>
    %109 = arith.addf %105, %108 : vector<16x128xf32>
    %cst_86 = arith.constant 0.000000e+00 : f32
    %110 = vector.broadcast %cst_86 : f32 to vector<16x128xf32>
    %111 = arith.maximumf %109, %110 : vector<16x128xf32>
    %112 = tpu.iota {dimensions = array<i32: 1>} : vector<1x128xi32>
    %c32_i32 = arith.constant 32 : i32
    %113 = vector.broadcast %c32_i32 : i32 to vector<1x128xi32>
    %114 = arith.cmpi slt, %112, %113 : vector<1x128xi32>
    %115 = arith.extui %114 : vector<1x128xi1> to vector<1x128xi32>
    %116 = arith.sitofp %115 : vector<1x128xi32> to vector<1x128xf32>
    %cst_87 = arith.constant dense<0.000000e+00> : vector<16xf32>
    %117 = vector.multi_reduction <add>, %111, %cst_87 [1] : vector<16x128xf32> to vector<16xf32>
    %118 = vector.shape_cast %117 : vector<16xf32> to vector<16x1xf32>
    %cst_88 = arith.constant 3.125000e-02 : f32
    %119 = vector.broadcast %cst_88 : f32 to vector<16x1xf32>
    %120 = arith.mulf %118, %119 : vector<16x1xf32>
    %121 = vector.broadcast %120 : vector<16x1xf32> to vector<16x128xf32>
    %122 = arith.subf %111, %121 : vector<16x128xf32>
    %123 = vector.broadcast %116 : vector<1x128xf32> to vector<16x128xf32>
    %124 = arith.mulf %122, %123 : vector<16x128xf32>
    %125 = arith.mulf %124, %124 : vector<16x128xf32>
    %cst_89 = arith.constant dense<0.000000e+00> : vector<16xf32>
    %126 = vector.multi_reduction <add>, %125, %cst_89 [1] : vector<16x128xf32> to vector<16xf32>
    %127 = vector.shape_cast %126 : vector<16xf32> to vector<16x1xf32>
    %cst_90 = arith.constant 3.125000e-02 : f32
    %128 = vector.broadcast %cst_90 : f32 to vector<16x1xf32>
    %129 = arith.mulf %127, %128 : vector<16x1xf32>
    %cst_91 = arith.constant 9.99999974E-6 : f32
    %130 = vector.broadcast %cst_91 : f32 to vector<16x1xf32>
    %131 = arith.addf %129, %130 : vector<16x1xf32>
    %132 = math.rsqrt %131 : vector<16x1xf32>
    %133 = vector.broadcast %132 : vector<16x1xf32> to vector<16x128xf32>
    %134 = arith.mulf %124, %133 : vector<16x128xf32>
    %c0_92 = arith.constant 0 : index
    %c0_93 = arith.constant 0 : index
    %135 = vector.load %arg17[%c0_92, %c0_93] : memref<1x128xf32, #tpu.memory_space<vmem>>, vector<1x128xf32>
    %136 = vector.broadcast %135 : vector<1x128xf32> to vector<16x128xf32>
    %137 = arith.mulf %134, %136 : vector<16x128xf32>
    %c0_94 = arith.constant 0 : index
    %c0_95 = arith.constant 0 : index
    %138 = vector.load %arg18[%c0_94, %c0_95] : memref<1x128xf32, #tpu.memory_space<vmem>>, vector<1x128xf32>
    %139 = vector.broadcast %138 : vector<1x128xf32> to vector<16x128xf32>
    %140 = arith.addf %137, %139 : vector<16x128xf32>
    %141 = arith.truncf %140 : vector<16x128xf32> to vector<16x128xbf16>
    %c0_96 = arith.constant 0 : index
    %c0_97 = arith.constant 0 : index
    %142 = vector.load %arg26[%c0_96, %c0_97] : memref<16x16xbf16, #tpu.memory_space<vmem>>, vector<16x16xbf16>
    %cst_98 = arith.constant dense<0.000000e+00> : vector<16x128xf32>
    %143 = tpu.matmul %142, %141, %cst_98 {dimension_numbers = #tpu.dot_dimension_numbers<[1], [0], [0], [1], [0, 0, 1, 1], [], []>} : vector<16x16xbf16>, vector<16x128xbf16>, vector<16x128xf32> -> vector<16x128xf32>
    %c0_99 = arith.constant 0 : index
    %c0_100 = arith.constant 0 : index
    %144 = vector.load %arg27[%c0_99, %c0_100] : memref<16x16xbf16, #tpu.memory_space<vmem>>, vector<16x16xbf16>
    %cst_101 = arith.constant dense<0.000000e+00> : vector<16x128xf32>
    %145 = tpu.matmul %144, %141, %cst_101 {dimension_numbers = #tpu.dot_dimension_numbers<[1], [0], [0], [1], [0, 0, 1, 1], [], []>} : vector<16x16xbf16>, vector<16x128xbf16>, vector<16x128xf32> -> vector<16x128xf32>
    %c0_102 = arith.constant 0 : index
    %c0_103 = arith.constant 0 : index
    %146 = vector.load %arg28[%c0_102, %c0_103] : memref<16x1xf32, #tpu.memory_space<vmem>>, vector<16x1xf32>
    %c0_104 = arith.constant 0 : index
    %c0_105 = arith.constant 0 : index
    %147 = vector.load %arg19[%c0_104, %c0_105] : memref<1x128xf32, #tpu.memory_space<vmem>>, vector<1x128xf32>
    %148 = vector.broadcast %146 : vector<16x1xf32> to vector<16x128xf32>
    %149 = vector.broadcast %147 : vector<1x128xf32> to vector<16x128xf32>
    %150 = arith.mulf %148, %149 : vector<16x128xf32>
    %c0_106 = arith.constant 0 : index
    %c0_107 = arith.constant 0 : index
    %151 = vector.load %arg20[%c0_106, %c0_107] : memref<1x128xf32, #tpu.memory_space<vmem>>, vector<1x128xf32>
    %152 = vector.broadcast %151 : vector<1x128xf32> to vector<16x128xf32>
    %153 = arith.addf %150, %152 : vector<16x128xf32>
    %154 = math.cos %153 : vector<16x128xf32>
    %c0_108 = arith.constant 0 : index
    %c0_109 = arith.constant 0 : index
    %155 = vector.load %arg29[%c0_108, %c0_109] : memref<16x1xf32, #tpu.memory_space<vmem>>, vector<16x1xf32>
    %c0_110 = arith.constant 0 : index
    %c0_111 = arith.constant 0 : index
    %156 = vector.load %arg19[%c0_110, %c0_111] : memref<1x128xf32, #tpu.memory_space<vmem>>, vector<1x128xf32>
    %157 = vector.broadcast %155 : vector<16x1xf32> to vector<16x128xf32>
    %158 = vector.broadcast %156 : vector<1x128xf32> to vector<16x128xf32>
    %159 = arith.mulf %157, %158 : vector<16x128xf32>
    %c0_112 = arith.constant 0 : index
    %c0_113 = arith.constant 0 : index
    %160 = vector.load %arg20[%c0_112, %c0_113] : memref<1x128xf32, #tpu.memory_space<vmem>>, vector<1x128xf32>
    %161 = vector.broadcast %160 : vector<1x128xf32> to vector<16x128xf32>
    %162 = arith.addf %159, %161 : vector<16x128xf32>
    %163 = math.cos %162 : vector<16x128xf32>
    %164 = arith.truncf %143 : vector<16x128xf32> to vector<16x128xbf16>
    %c0_114 = arith.constant 0 : index
    %c0_115 = arith.constant 0 : index
    %165 = vector.load %arg22[%c0_114, %c0_115] : memref<128x128xbf16, #tpu.memory_space<vmem>>, vector<128x128xbf16>
    %cst_116 = arith.constant dense<0.000000e+00> : vector<16x128xf32>
    %166 = tpu.matmul %164, %165, %cst_116 {dimension_numbers = #tpu.dot_dimension_numbers<[1], [0], [0], [1], [0, 0, 1, 1], [], []>} : vector<16x128xbf16>, vector<128x128xbf16>, vector<16x128xf32> -> vector<16x128xf32>
    %167 = arith.truncf %154 : vector<16x128xf32> to vector<16x128xbf16>
    %c0_117 = arith.constant 0 : index
    %c0_118 = arith.constant 0 : index
    %168 = vector.load %arg23[%c0_117, %c0_118] : memref<128x128xbf16, #tpu.memory_space<vmem>>, vector<128x128xbf16>
    %cst_119 = arith.constant dense<0.000000e+00> : vector<16x128xf32>
    %169 = tpu.matmul %167, %168, %cst_119 {dimension_numbers = #tpu.dot_dimension_numbers<[1], [0], [0], [1], [0, 0, 1, 1], [], []>} : vector<16x128xbf16>, vector<128x128xbf16>, vector<16x128xf32> -> vector<16x128xf32>
    %170 = arith.addf %166, %169 : vector<16x128xf32>
    %c0_120 = arith.constant 0 : index
    %c0_121 = arith.constant 0 : index
    %171 = vector.load %arg21[%c0_120, %c0_121] : memref<1x128xf32, #tpu.memory_space<vmem>>, vector<1x128xf32>
    %172 = vector.broadcast %171 : vector<1x128xf32> to vector<16x128xf32>
    %173 = arith.addf %170, %172 : vector<16x128xf32>
    %cst_122 = arith.constant 0.000000e+00 : f32
    %174 = vector.broadcast %cst_122 : f32 to vector<16x128xf32>
    %175 = arith.maximumf %173, %174 : vector<16x128xf32>
    %176 = arith.truncf %145 : vector<16x128xf32> to vector<16x128xbf16>
    %c0_123 = arith.constant 0 : index
    %c0_124 = arith.constant 0 : index
    %177 = vector.load %arg22[%c0_123, %c0_124] : memref<128x128xbf16, #tpu.memory_space<vmem>>, vector<128x128xbf16>
    %cst_125 = arith.constant dense<0.000000e+00> : vector<16x128xf32>
    %178 = tpu.matmul %176, %177, %cst_125 {dimension_numbers = #tpu.dot_dimension_numbers<[1], [0], [0], [1], [0, 0, 1, 1], [], []>} : vector<16x128xbf16>, vector<128x128xbf16>, vector<16x128xf32> -> vector<16x128xf32>
    %179 = arith.truncf %163 : vector<16x128xf32> to vector<16x128xbf16>
    %c0_126 = arith.constant 0 : index
    %c0_127 = arith.constant 0 : index
    %180 = vector.load %arg23[%c0_126, %c0_127] : memref<128x128xbf16, #tpu.memory_space<vmem>>, vector<128x128xbf16>
    %cst_128 = arith.constant dense<0.000000e+00> : vector<16x128xf32>
    %181 = tpu.matmul %179, %180, %cst_128 {dimension_numbers = #tpu.dot_dimension_numbers<[1], [0], [0], [1], [0, 0, 1, 1], [], []>} : vector<16x128xbf16>, vector<128x128xbf16>, vector<16x128xf32> -> vector<16x128xf32>
    %182 = arith.addf %178, %181 : vector<16x128xf32>
    %c0_129 = arith.constant 0 : index
    %c0_130 = arith.constant 0 : index
    %183 = vector.load %arg21[%c0_129, %c0_130] : memref<1x128xf32, #tpu.memory_space<vmem>>, vector<1x128xf32>
    %184 = vector.broadcast %183 : vector<1x128xf32> to vector<16x128xf32>
    %185 = arith.addf %182, %184 : vector<16x128xf32>
    %cst_131 = arith.constant 0.000000e+00 : f32
    %186 = vector.broadcast %cst_131 : f32 to vector<16x128xf32>
    %187 = arith.maximumf %185, %186 : vector<16x128xf32>
    %c0_132 = arith.constant 0 : index
    %c0_133 = arith.constant 0 : index
    %c0_134 = arith.constant 0 : index
    %188 = vector.load %arg24[%c0_132, %c0_133, %c0_134] : memref<2x1x128xf32, #tpu.memory_space<vmem>>, vector<1x1x128xf32>
    %189 = vector.shape_cast %188 : vector<1x1x128xf32> to vector<1x128xf32>
    %190 = vector.broadcast %189 : vector<1x128xf32> to vector<16x128xf32>
    %191 = arith.mulf %175, %190 : vector<16x128xf32>
    %cst_135 = arith.constant dense<0.000000e+00> : vector<16xf32>
    %192 = vector.multi_reduction <add>, %191, %cst_135 [1] : vector<16x128xf32> to vector<16xf32>
    %193 = vector.shape_cast %192 : vector<16xf32> to vector<16x1xf32>
    %c1_136 = arith.constant 1 : index
    %c0_137 = arith.constant 0 : index
    %c0_138 = arith.constant 0 : index
    %194 = vector.load %arg24[%c1_136, %c0_137, %c0_138] : memref<2x1x128xf32, #tpu.memory_space<vmem>>, vector<1x1x128xf32>
    %195 = vector.shape_cast %194 : vector<1x1x128xf32> to vector<1x128xf32>
    %196 = vector.broadcast %195 : vector<1x128xf32> to vector<16x128xf32>
    %197 = arith.mulf %187, %196 : vector<16x128xf32>
    %cst_139 = arith.constant dense<0.000000e+00> : vector<16xf32>
    %198 = vector.multi_reduction <add>, %197, %cst_139 [1] : vector<16x128xf32> to vector<16xf32>
    %199 = vector.shape_cast %198 : vector<16xf32> to vector<16x1xf32>
    %200 = arith.addf %193, %199 : vector<16x1xf32>
    %c0_140 = arith.constant 0 : index
    %c0_141 = arith.constant 0 : index
    %201 = vector.load %arg25[%c0_140, %c0_141] : memref<1x1xf32, #tpu.memory_space<vmem>>, vector<1x1xf32>
    %202 = vector.broadcast %201 : vector<1x1xf32> to vector<16x1xf32>
    %203 = arith.addf %200, %202 : vector<16x1xf32>
    %c0_142 = arith.constant 0 : index
    %c0_143 = arith.constant 0 : index
    %204 = vector.load %arg30[%c0_142, %c0_143] : memref<16x1xf32, #tpu.memory_space<vmem>>, vector<16x1xf32>
    %c0_144 = arith.constant 0 : index
    %c0_145 = arith.constant 0 : index
    %205 = vector.load %arg31[%c0_144, %c0_145] : memref<16x1xf32, #tpu.memory_space<vmem>>, vector<16x1xf32>
    %cst_146 = arith.constant 0.000000e+00 : f32
    %206 = vector.broadcast %cst_146 : f32 to vector<16x1xf32>
    %207 = arith.maximumf %203, %206 : vector<16x1xf32>
    %208 = arith.mulf %203, %204 : vector<16x1xf32>
    %209 = arith.subf %207, %208 : vector<16x1xf32>
    %210 = math.absf %203 : vector<16x1xf32>
    %cst_147 = arith.constant 0.000000e+00 : f32
    %211 = vector.broadcast %cst_147 : f32 to vector<16x1xf32>
    %212 = arith.subf %211, %210 : vector<16x1xf32>
    %213 = math.exp %212 : vector<16x1xf32>
    %cst_148 = arith.constant 1.000000e+00 : f32
    %214 = vector.broadcast %cst_148 : f32 to vector<16x1xf32>
    %215 = arith.addf %214, %213 : vector<16x1xf32>
    %216 = math.log %215 : vector<16x1xf32>
    %217 = arith.addf %209, %216 : vector<16x1xf32>
    %218 = arith.mulf %217, %205 : vector<16x1xf32>
    %cst_149 = arith.constant dense<0.000000e+00> : vector<1xf32>
    %219 = vector.multi_reduction <add>, %218, %cst_149 [0] : vector<16x1xf32> to vector<1xf32>
    %220 = vector.shape_cast %219 : vector<1xf32> to vector<1x1xf32>
    %c0_150 = arith.constant 0 : index
    %c0_151 = arith.constant 0 : index
    %221 = vector.load %arg32[%c0_150, %c0_151] : memref<1x1xf32, #tpu.memory_space<vmem>>, vector<1x1xf32>
    tpu.vector_store %arg32[%c0_150, %c0_151], %220 {strides = array<i32>} : memref<1x1xf32, #tpu.memory_space<vmem>>, vector<1x1xf32>,
    return
  }
  func.func @transform_0(%arg0: i32) -> (i32, i32) {
    %c0_i32 = arith.constant 0 : i32
    %c0_i32_0 = arith.constant 0 : i32
    %c0_i32_1 = arith.constant 0 : i32
    return %c0_i32, %c0_i32_0 : i32, i32
  }
  func.func @transform_1(%arg0: i32) -> (i32, i32) {
    %c0_i32 = arith.constant 0 : i32
    %c0_i32_0 = arith.constant 0 : i32
    %c0_i32_1 = arith.constant 0 : i32
    return %c0_i32, %c0_i32_0 : i32, i32
  }
  func.func @transform_2(%arg0: i32) -> (i32, i32) {
    %c0_i32 = arith.constant 0 : i32
    %c0_i32_0 = arith.constant 0 : i32
    %c0_i32_1 = arith.constant 0 : i32
    return %c0_i32, %c0_i32_0 : i32, i32
  }
  func.func @transform_3(%arg0: i32) -> (i32, i32) {
    %c0_i32 = arith.constant 0 : i32
    %c0_i32_0 = arith.constant 0 : i32
    %c0_i32_1 = arith.constant 0 : i32
    return %c0_i32, %c0_i32_0 : i32, i32
  }
  func.func @transform_4(%arg0: i32) -> (i32, i32) {
    %c0_i32 = arith.constant 0 : i32
    %c0_i32_0 = arith.constant 0 : i32
    %c0_i32_1 = arith.constant 0 : i32
    return %c0_i32, %c0_i32_0 : i32, i32
  }
  func.func @transform_5(%arg0: i32) -> (i32, i32) {
    %c0_i32 = arith.constant 0 : i32
    %c0_i32_0 = arith.constant 0 : i32
    %c0_i32_1 = arith.constant 0 : i32
    return %c0_i32, %c0_i32_0 : i32, i32
  }
  func.func @transform_6(%arg0: i32) -> (i32, i32, i32) {
    %c0_i32 = arith.constant 0 : i32
    %c0_i32_0 = arith.constant 0 : i32
    %c0_i32_1 = arith.constant 0 : i32
    %c0_i32_2 = arith.constant 0 : i32
    return %c0_i32, %c0_i32_0, %c0_i32_1 : i32, i32, i32
  }
  func.func @transform_7(%arg0: i32) -> (i32, i32, i32) {
    %c0_i32 = arith.constant 0 : i32
    %c0_i32_0 = arith.constant 0 : i32
    %c0_i32_1 = arith.constant 0 : i32
    %c0_i32_2 = arith.constant 0 : i32
    return %c0_i32, %c0_i32_0, %c0_i32_1 : i32, i32, i32
  }
  func.func @transform_8(%arg0: i32) -> (i32, i32, i32) {
    %c0_i32 = arith.constant 0 : i32
    %c0_i32_0 = arith.constant 0 : i32
    %c0_i32_1 = arith.constant 0 : i32
    %c0_i32_2 = arith.constant 0 : i32
    return %c0_i32, %c0_i32_0, %c0_i32_1 : i32, i32, i32
  }
  func.func @transform_9(%arg0: i32) -> (i32, i32, i32) {
    %c0_i32 = arith.constant 0 : i32
    %c0_i32_0 = arith.constant 0 : i32
    %c0_i32_1 = arith.constant 0 : i32
    %c0_i32_2 = arith.constant 0 : i32
    return %c0_i32, %c0_i32_0, %c0_i32_1 : i32, i32, i32
  }
  func.func @transform_10(%arg0: i32) -> (i32, i32, i32) {
    %c0_i32 = arith.constant 0 : i32
    %c0_i32_0 = arith.constant 0 : i32
    %c0_i32_1 = arith.constant 0 : i32
    %c0_i32_2 = arith.constant 0 : i32
    return %c0_i32, %c0_i32_0, %c0_i32_1 : i32, i32, i32
  }
  func.func @transform_11(%arg0: i32) -> (i32, i32, i32) {
    %c0_i32 = arith.constant 0 : i32
    %c0_i32_0 = arith.constant 0 : i32
    %c0_i32_1 = arith.constant 0 : i32
    %c0_i32_2 = arith.constant 0 : i32
    return %c0_i32, %c0_i32_0, %c0_i32_1 : i32, i32, i32
  }
  func.func @transform_12(%arg0: i32) -> (i32, i32, i32) {
    %c0_i32 = arith.constant 0 : i32
    %c0_i32_0 = arith.constant 0 : i32
    %c0_i32_1 = arith.constant 0 : i32
    %c0_i32_2 = arith.constant 0 : i32
    return %c0_i32, %c0_i32_0, %c0_i32_1 : i32, i32, i32
  }
  func.func @transform_13(%arg0: i32) -> (i32, i32, i32) {
    %c0_i32 = arith.constant 0 : i32
    %c0_i32_0 = arith.constant 0 : i32
    %c0_i32_1 = arith.constant 0 : i32
    %c0_i32_2 = arith.constant 0 : i32
    return %c0_i32, %c0_i32_0, %c0_i32_1 : i32, i32, i32
  }
  func.func @transform_14(%arg0: i32) -> (i32, i32, i32) {
    %c0_i32 = arith.constant 0 : i32
    %c0_i32_0 = arith.constant 0 : i32
    %c0_i32_1 = arith.constant 0 : i32
    %c0_i32_2 = arith.constant 0 : i32
    return %c0_i32, %c0_i32_0, %c0_i32_1 : i32, i32, i32
  }
  func.func @transform_15(%arg0: i32) -> (i32, i32, i32) {
    %c0_i32 = arith.constant 0 : i32
    %c0_i32_0 = arith.constant 0 : i32
    %c0_i32_1 = arith.constant 0 : i32
    %c0_i32_2 = arith.constant 0 : i32
    return %c0_i32, %c0_i32_0, %c0_i32_1 : i32, i32, i32
  }
  func.func @transform_16(%arg0: i32) -> (i32, i32) {
    %c0_i32 = arith.constant 0 : i32
    %c0_i32_0 = arith.constant 0 : i32
    %c0_i32_1 = arith.constant 0 : i32
    return %c0_i32, %c0_i32_0 : i32, i32
  }
  func.func @transform_17(%arg0: i32) -> (i32, i32) {
    %c0_i32 = arith.constant 0 : i32
    %c0_i32_0 = arith.constant 0 : i32
    %c0_i32_1 = arith.constant 0 : i32
    return %c0_i32, %c0_i32_0 : i32, i32
  }
  func.func @transform_18(%arg0: i32) -> (i32, i32) {
    %c0_i32 = arith.constant 0 : i32
    %c0_i32_0 = arith.constant 0 : i32
    %c0_i32_1 = arith.constant 0 : i32
    return %c0_i32, %c0_i32_0 : i32, i32
  }
  func.func @transform_19(%arg0: i32) -> (i32, i32) {
    %c0_i32 = arith.constant 0 : i32
    %c0_i32_0 = arith.constant 0 : i32
    %c0_i32_1 = arith.constant 0 : i32
    return %c0_i32, %c0_i32_0 : i32, i32
  }
  func.func @transform_20(%arg0: i32) -> (i32, i32) {
    %c0_i32 = arith.constant 0 : i32
    %c0_i32_0 = arith.constant 0 : i32
    %c0_i32_1 = arith.constant 0 : i32
    return %c0_i32, %c0_i32_0 : i32, i32
  }
  func.func @transform_21(%arg0: i32) -> (i32, i32) {
    %c0_i32 = arith.constant 0 : i32
    %c0_i32_0 = arith.constant 0 : i32
    %c0_i32_1 = arith.constant 0 : i32
    return %c0_i32, %c0_i32_0 : i32, i32
  }
  func.func @transform_22(%arg0: i32) -> (i32, i32) {
    %c0_i32 = arith.constant 0 : i32
    %c0_i32_0 = arith.constant 0 : i32
    %c0_i32_1 = arith.constant 0 : i32
    return %c0_i32, %c0_i32_0 : i32, i32
  }
  func.func @transform_23(%arg0: i32) -> (i32, i32, i32) {
    %c0_i32 = arith.constant 0 : i32
    %c0_i32_0 = arith.constant 0 : i32
    %c0_i32_1 = arith.constant 0 : i32
    %c0_i32_2 = arith.constant 0 : i32
    return %c0_i32, %c0_i32_0, %c0_i32_1 : i32, i32, i32
  }
  func.func @transform_24(%arg0: i32) -> (i32, i32) {
    %c0_i32 = arith.constant 0 : i32
    %c0_i32_0 = arith.constant 0 : i32
    %c0_i32_1 = arith.constant 0 : i32
    return %c0_i32, %c0_i32_0 : i32, i32
  }
  func.func @transform_25(%arg0: i32) -> (i32, i32) {
    %c0_i32 = arith.constant 0 : i32
    %c0_i32_0 = arith.constant 0 : i32
    %c0_i32_1 = arith.constant 0 : i32
    return %c0_i32, %c0_i32_0 : i32, i32
  }
  func.func @transform_26(%arg0: i32) -> (i32, i32) {
    %c0_i32 = arith.constant 0 : i32
    %c0_i32_0 = arith.constant 0 : i32
    %c0_i32_1 = arith.constant 0 : i32
    return %c0_i32, %c0_i32_0 : i32, i32
  }
  func.func @transform_27(%arg0: i32) -> (i32, i32) {
    %c0_i32 = arith.constant 0 : i32
    %c0_i32_0 = arith.constant 0 : i32
    %c0_i32_1 = arith.constant 0 : i32
    return %c0_i32, %c0_i32_0 : i32, i32
  }
  func.func @transform_28(%arg0: i32) -> (i32, i32) {
    %c0_i32 = arith.constant 0 : i32
    %c0_i32_0 = arith.constant 0 : i32
    %c0_i32_1 = arith.constant 0 : i32
    return %c0_i32, %c0_i32_0 : i32, i32
  }
  func.func @transform_29(%arg0: i32) -> (i32, i32) {
    %c0_i32 = arith.constant 0 : i32
    %c0_i32_0 = arith.constant 0 : i32
    %c0_i32_1 = arith.constant 0 : i32
    return %c0_i32, %c0_i32_0 : i32, i32
  }
  func.func @transform_30(%arg0: i32) -> (i32, i32) {
    %c0_i32 = arith.constant 0 : i32
    %c0_i32_0 = arith.constant 0 : i32
    %c0_i32_1 = arith.constant 0 : i32
    return %c0_i32, %c0_i32_0 : i32, i32
  }
  func.func @transform_31(%arg0: i32) -> (i32, i32) {
    %c0_i32 = arith.constant 0 : i32
    %c0_i32_0 = arith.constant 0 : i32
    %c0_i32_1 = arith.constant 0 : i32
    return %c0_i32, %c0_i32_0 : i32, i32
  }
}

</mosaic_0001>

<llo_original>
// kernel: tpu_custom_call.1
$region0: #{tpu_custom_call.1}
  #allocation0 [shape = 'u32[]', space=smem, size = 0x4, offset = 0x4, fixed_abs, tag = 'smem constant byte address 0x4 - core index']
  #allocation1 [shape = 'u32[144,128]{1,0:T(1,128)}', space=vmem, size = 0x12000, scoped, tag = 'internal scratch']
  #allocation2 [shape = 'f32[1,1]{1,0:T(1,128)S(1)}', space=vmem, size = 0x200, scoped, tag = 'scoped memory for tpu_custom_call.1']
  %s0 = inlined_call_operand.smem [shape: u32[32], index: -1, kind: input, shape index: {}]
  %s1 = sld [smem:[%s0]]
  %s2 = scalar_lea.smem %s0, 1
  %s3 = sld [smem:[%s2]]
  %s4 = scalar_lea.smem %s0, 2
  %s5 = sld [smem:[%s4]]
  %s6 = scalar_lea.smem %s0, 3
  %s7 = sld [smem:[%s6]]
  %s8 = scalar_lea.smem %s0, 4
  %s9 = sld [smem:[%s8]]
  %s10 = scalar_lea.smem %s0, 5
  %s11 = sld [smem:[%s10]]
  %s12 = scalar_lea.smem %s0, 6
  %s13 = sld [smem:[%s12]]
  %s14 = scalar_lea.smem %s0, 7
  %s15 = sld [smem:[%s14]]
  %s16 = scalar_lea.smem %s0, 8
  %s17 = sld [smem:[%s16]]
  %s18 = scalar_lea.smem %s0, 9
  %s19 = sld [smem:[%s18]]
  %s20 = scalar_lea.smem %s0, 10
  %s21 = sld [smem:[%s20]]
  %s22 = scalar_lea.smem %s0, 11
  %s23 = sld [smem:[%s22]]
  %s24 = scalar_lea.smem %s0, 12
  %s25 = sld [smem:[%s24]]
  %s26 = scalar_lea.smem %s0, 13
  %s27 = sld [smem:[%s26]]
  %s28 = scalar_lea.smem %s0, 14
  %s29 = sld [smem:[%s28]]
  %s30 = scalar_lea.smem %s0, 15
  %s31 = sld [smem:[%s30]]
  %s32 = scalar_lea.smem %s0, 16
  %s33 = sld [smem:[%s32]]
  %s34 = scalar_lea.smem %s0, 17
  %s35 = sld [smem:[%s34]]
  %s36 = scalar_lea.smem %s0, 18
  %s37 = sld [smem:[%s36]]
  %s38 = scalar_lea.smem %s0, 19
  %s39 = sld [smem:[%s38]]
  %s40 = scalar_lea.smem %s0, 20
  %s41 = sld [smem:[%s40]]
  %s42 = scalar_lea.smem %s0, 21
  %s43 = sld [smem:[%s42]]
  %s44 = scalar_lea.smem %s0, 22
  %s45 = sld [smem:[%s44]]
  %s46 = scalar_lea.smem %s0, 23
  %s47 = sld [smem:[%s46]]
  %s48 = scalar_lea.smem %s0, 24
  %s49 = sld [smem:[%s48]]
  %s50 = scalar_lea.smem %s0, 25
  %s51 = sld [smem:[%s50]]
  %s52 = scalar_lea.smem %s0, 26
  %s53 = sld [smem:[%s52]]
  %s54 = scalar_lea.smem %s0, 27
  %s55 = sld [smem:[%s54]]
  %s56 = scalar_lea.smem %s0, 28
  %s57 = sld [smem:[%s56]]
  %s58 = scalar_lea.smem %s0, 29
  %s59 = sld [smem:[%s58]]
  %s60 = scalar_lea.smem %s0, 30
  %s61 = sld [smem:[%s60]]
  %s62 = scalar_lea.smem %s0, 31
  %s63 = sld [smem:[%s62]]
  %s64 = sld [smem:[#allocation0]]
  $region186: #{tpu_custom_call.1} parent=0
    _
  %s66 = ssub.s32 1, %s64
  %s67 = scalar_select 0, %s66, %s64
  %v68 = vstv %s49
  %69 = vst [vmem:[#allocation2] sm:$0x1] %v68
  $region1: #{tpu_custom_call.1} parent=0
    #allocation3 [shape = 'u8[4096]{0}', space=vmem, size = 0x1000, scoped, tag = 'input window, operand 2, single buffered']
    #allocation4 [shape = 's32[1]{0}', space=sflag, size = 0x4, scoped, tag = 'scoped memory for tpu_custom_call.1']
    #allocation5 [shape = 's32[1]{0}', space=sflag, size = 0x4, scoped, tag = 'scoped memory for tpu_custom_call.1']
    #allocation6 [shape = 'u8[4096]{0}', space=vmem, size = 0x1000, scoped, tag = 'input window, operand 3, single buffered']
    #allocation7 [shape = 's32[1]{0}', space=sflag, size = 0x4, scoped, tag = 'scoped memory for tpu_custom_call.1']
    #allocation8 [shape = 'u8[4096]{0}', space=vmem, size = 0x1000, scoped, tag = 'input window, operand 4, single buffered']
    #allocation9 [shape = 'u8[1024]{0}', space=vmem, size = 0x400, scoped, tag = 'input window, operand 7, single buffered']
    #allocation10 [shape = 's32[1]{0}', space=sflag, size = 0x4, scoped, tag = 'scoped memory for tpu_custom_call.1']
    #allocation11 [shape = 'u8[1024]{0}', space=vmem, size = 0x400, scoped, tag = 'input window, operand 8, single buffered']
    #allocation12 [shape = 'u8[1024]{0}', space=vmem, size = 0x400, scoped, tag = 'input window, operand 9, single buffered']
    #allocation13 [shape = 's32[1]{0}', space=sflag, size = 0x4, scoped, tag = 'scoped memory for tpu_custom_call.1']
    #allocation14 [shape = 'u8[1024]{0}', space=vmem, size = 0x400, scoped, tag = 'input window, operand 10, single buffered']
    #allocation15 [shape = 'u8[65536]{0}', space=vmem, size = 0x10000, scoped, tag = 'input window, operand 12, single buffered']
    #allocation16 [shape = 's32[1]{0}', space=sflag, size = 0x4, scoped, tag = 'scoped memory for tpu_custom_call.1']
    #allocation17 [shape = 'u8[65536]{0}', space=vmem, size = 0x10000, scoped, tag = 'input window, operand 13, single buffered']
    #allocation18 [shape = 'u8[65536]{0}', space=vmem, size = 0x10000, scoped, tag = 'input window, operand 14, single buffered']
    #allocation19 [shape = 's32[1]{0}', space=sflag, size = 0x4, scoped, tag = 'scoped memory for tpu_custom_call.1']
    #allocation20 [shape = 'u8[65536]{0}', space=vmem, size = 0x10000, scoped, tag = 'input window, operand 15, single buffered']
    #allocation21 [shape = 'u8[32768]{0}', space=vmem, size = 0x8000, scoped, tag = 'input window, operand 21, single buffered']
    #allocation22 [shape = 's32[1]{0}', space=sflag, size = 0x4, scoped, tag = 'scoped memory for tpu_custom_call.1']
    #allocation23 [shape = 'u8[32768]{0}', space=vmem, size = 0x8000, scoped, tag = 'input window, operand 22, single buffered']
    #allocation24 [shape = 'u8[512]{0}', space=vmem, size = 0x400, scoped, tag = 'output window, operand 0, single buffered']
    %70 = vsyncpa [#allocation4], 0
    %71 = vsyncpa [#allocation7], 0
    %72 = vsyncpa [#allocation10], 0
    %73 = vsyncpa [#allocation13], 0
    %74 = vsyncpa [#allocation16], 0
    %75 = vsyncpa [#allocation19], 0
    %76 = vsyncpa [#allocation22], 0
    %77 = vsyncpa [#allocation5], 0
    // Predicated region
    $region2: #{tpu_custom_call.1} parent=1 // pred_check
      _
    $region3: #{tpu_custom_call.1} parent=1 // pred_check_branch
      %79 = sbr.rel (0) target = $region5
    $region4: #{tpu_custom_call.1} parent=1 // pred_region
      _
    $region5: #{tpu_custom_call.1} parent=1 // pred_fallthru
      _
    // Predicated region
    $region6: #{tpu_custom_call.1} parent=1 // pred_check
      _
    $region7: #{tpu_custom_call.1} parent=1 // pred_check_branch
      %81 = sbr.rel (0) target = $region9
    $region8: #{tpu_custom_call.1} parent=1 // pred_region
      _
    $region9: #{tpu_custom_call.1} parent=1 // pred_fallthru
      _
    // Predicated region
    $region10: #{tpu_custom_call.1} parent=1 // pred_check
      _
    $region11: #{tpu_custom_call.1} parent=1 // pred_check_branch
      %83 = sbr.rel (0) target = $region13
    $region12: #{tpu_custom_call.1} parent=1 // pred_region
      %s85 = ssub.s32 128, 128
      %86 = vsyncadd [#allocation4], %s85
      %s87 = sshll.u32 [#allocation3], 4
      %s88 = int_to_ptr.vmem [resolvable:$true] %s87
      %93 = dma.hbm_to_vmem [thread:$0]  %s5, 128, %s88, [#allocation4], 64, 64, 4
    $region13: #{tpu_custom_call.1} parent=1 // pred_fallthru
      _
    // Predicated region
    $region14: #{tpu_custom_call.1} parent=1 // pred_check
      _
    $region15: #{tpu_custom_call.1} parent=1 // pred_check_branch
      %95 = sbr.rel (0) target = $region17
    $region16: #{tpu_custom_call.1} parent=1 // pred_region
      %s97 = ssub.s32 128, 128
      %98 = vsyncadd [#allocation7], %s97
      %s99 = sshll.u32 [#allocation6], 4
      %s100 = int_to_ptr.vmem [resolvable:$true] %s99
      %105 = dma.hbm_to_vmem [thread:$0]  %s7, 128, %s100, [#allocation7], 64, 64, 4
    $region17: #{tpu_custom_call.1} parent=1 // pred_fallthru
      _
    // Predicated region
    $region18: #{tpu_custom_call.1} parent=1 // pred_check
      _
    $region19: #{tpu_custom_call.1} parent=1 // pred_check_branch
      %107 = sbr.rel (0) target = $region21
    $region20: #{tpu_custom_call.1} parent=1 // pred_region
      %s109 = ssub.s32 128, 128
      %110 = vsyncadd [#allocation7], %s109
      %s111 = sshll.u32 [#allocation8], 4
      %s112 = int_to_ptr.vmem [resolvable:$true] %s111
      %117 = dma.hbm_to_vmem [thread:$0]  %s9, 128, %s112, [#allocation7], 64, 64, 4
    $region21: #{tpu_custom_call.1} parent=1 // pred_fallthru
      _
    // Predicated region
    $region22: #{tpu_custom_call.1} parent=1 // pred_check
      _
    $region23: #{tpu_custom_call.1} parent=1 // pred_check_branch
      %119 = sbr.rel (0) target = $region25
    $region24: #{tpu_custom_call.1} parent=1 // pred_region
      _
    $region25: #{tpu_custom_call.1} parent=1 // pred_fallthru
      _
    // Predicated region
    $region26: #{tpu_custom_call.1} parent=1 // pred_check
      _
    $region27: #{tpu_custom_call.1} parent=1 // pred_check_branch
      %121 = sbr.rel (0) target = $region29
    $region28: #{tpu_custom_call.1} parent=1 // pred_region
      _
    $region29: #{tpu_custom_call.1} parent=1 // pred_fallthru
      _
    // Predicated region
    $region30: #{tpu_custom_call.1} parent=1 // pred_check
      _
    $region31: #{tpu_custom_call.1} parent=1 // pred_check_branch
      %123 = sbr.rel (0) target = $region33
    $region32: #{tpu_custom_call.1} parent=1 // pred_region
      %s125 = ssub.s32 32, 32
      %126 = vsyncadd [#allocation10], %s125
      %s127 = sshll.u32 [#allocation9], 4
      %s128 = int_to_ptr.vmem [resolvable:$true] %s127
      %133 = dma.hbm_to_vmem [thread:$0]  %s15, 32, %s128, [#allocation10], 16, 16, 1
    $region33: #{tpu_custom_call.1} parent=1 // pred_fallthru
      _
    // Predicated region
    $region34: #{tpu_custom_call.1} parent=1 // pred_check
      _
    $region35: #{tpu_custom_call.1} parent=1 // pred_check_branch
      %135 = sbr.rel (0) target = $region37
    $region36: #{tpu_custom_call.1} parent=1 // pred_region
      %s137 = ssub.s32 32, 32
      %138 = vsyncadd [#allocation10], %s137
      %s139 = sshll.u32 [#allocation11], 4
      %s140 = int_to_ptr.vmem [resolvable:$true] %s139
      %145 = dma.hbm_to_vmem [thread:$0]  %s17, 32, %s140, [#allocation10], 16, 16, 1
    $region37: #{tpu_custom_call.1} parent=1 // pred_fallthru
      _
    // Predicated region
    $region38: #{tpu_custom_call.1} parent=1 // pred_check
      _
    $region39: #{tpu_custom_call.1} parent=1 // pred_check_branch
      %147 = sbr.rel (0) target = $region41
    $region40: #{tpu_custom_call.1} parent=1 // pred_region
      %s149 = ssub.s32 32, 32
      %150 = vsyncadd [#allocation13], %s149
      %s151 = sshll.u32 [#allocation12], 4
      %s152 = int_to_ptr.vmem [resolvable:$true] %s151
      %157 = dma.hbm_to_vmem [thread:$0]  %s19, 32, %s152, [#allocation13], 16, 16, 1
    $region41: #{tpu_custom_call.1} parent=1 // pred_fallthru
      _
    // Predicated region
    $region42: #{tpu_custom_call.1} parent=1 // pred_check
      _
    $region43: #{tpu_custom_call.1} parent=1 // pred_check_branch
      %159 = sbr.rel (0) target = $region45
    $region44: #{tpu_custom_call.1} parent=1 // pred_region
      %s161 = ssub.s32 32, 32
      %162 = vsyncadd [#allocation13], %s161
      %s163 = sshll.u32 [#allocation14], 4
      %s164 = int_to_ptr.vmem [resolvable:$true] %s163
      %169 = dma.hbm_to_vmem [thread:$0]  %s21, 32, %s164, [#allocation13], 16, 16, 1
    $region45: #{tpu_custom_call.1} parent=1 // pred_fallthru
      _
    // Predicated region
    $region46: #{tpu_custom_call.1} parent=1 // pred_check
      _
    $region47: #{tpu_custom_call.1} parent=1 // pred_check_branch
      %171 = sbr.rel (0) target = $region49
    $region48: #{tpu_custom_call.1} parent=1 // pred_region
      _
    $region49: #{tpu_custom_call.1} parent=1 // pred_fallthru
      _
    // Predicated region
    $region50: #{tpu_custom_call.1} parent=1 // pred_check
      _
    $region51: #{tpu_custom_call.1} parent=1 // pred_check_branch
      %173 = sbr.rel (0) target = $region53
    $region52: #{tpu_custom_call.1} parent=1 // pred_region
      %s175 = ssub.s32 2048, 2048
      %176 = vsyncadd [#allocation16], %s175
      %s177 = sshll.u32 [#allocation15], 4
      %s178 = int_to_ptr.vmem [resolvable:$true] %s177
      %183 = dma.hbm_to_vmem [thread:$0]  %s25, 2048, %s178, [#allocation16], 64, 64, 4
    $region53: #{tpu_custom_call.1} parent=1 // pred_fallthru
      _
    // Predicated region
    $region54: #{tpu_custom_call.1} parent=1 // pred_check
      _
    $region55: #{tpu_custom_call.1} parent=1 // pred_check_branch
      %185 = sbr.rel (0) target = $region57
    $region56: #{tpu_custom_call.1} parent=1 // pred_region
      %s187 = ssub.s32 2048, 2048
      %188 = vsyncadd [#allocation16], %s187
      %s189 = sshll.u32 [#allocation17], 4
      %s190 = int_to_ptr.vmem [resolvable:$true] %s189
      %195 = dma.hbm_to_vmem [thread:$0]  %s27, 2048, %s190, [#allocation16], 64, 64, 4
    $region57: #{tpu_custom_call.1} parent=1 // pred_fallthru
      _
    // Predicated region
    $region58: #{tpu_custom_call.1} parent=1 // pred_check
      _
    $region59: #{tpu_custom_call.1} parent=1 // pred_check_branch
      %197 = sbr.rel (0) target = $region61
    $region60: #{tpu_custom_call.1} parent=1 // pred_region
      %s199 = ssub.s32 2048, 2048
      %200 = vsyncadd [#allocation19], %s199
      %s201 = sshll.u32 [#allocation18], 4
      %s202 = int_to_ptr.vmem [resolvable:$true] %s201
      %207 = dma.hbm_to_vmem [thread:$0]  %s29, 2048, %s202, [#allocation19], 64, 64, 4
    $region61: #{tpu_custom_call.1} parent=1 // pred_fallthru
      _
    // Predicated region
    $region62: #{tpu_custom_call.1} parent=1 // pred_check
      _
    $region63: #{tpu_custom_call.1} parent=1 // pred_check_branch
      %209 = sbr.rel (0) target = $region65
    $region64: #{tpu_custom_call.1} parent=1 // pred_region
      %s211 = ssub.s32 2048, 2048
      %212 = vsyncadd [#allocation19], %s211
      %s213 = sshll.u32 [#allocation20], 4
      %s214 = int_to_ptr.vmem [resolvable:$true] %s213
      %219 = dma.hbm_to_vmem [thread:$0]  %s31, 2048, %s214, [#allocation19], 64, 64, 4
    $region65: #{tpu_custom_call.1} parent=1 // pred_fallthru
      _
    // Predicated region
    $region66: #{tpu_custom_call.1} parent=1 // pred_check
      _
    $region67: #{tpu_custom_call.1} parent=1 // pred_check_branch
      %221 = sbr.rel (0) target = $region69
    $region68: #{tpu_custom_call.1} parent=1 // pred_region
      _
    $region69: #{tpu_custom_call.1} parent=1 // pred_fallthru
      _
    // Predicated region
    $region70: #{tpu_custom_call.1} parent=1 // pred_check
      _
    $region71: #{tpu_custom_call.1} parent=1 // pred_check_branch
      %223 = sbr.rel (0) target = $region73
    $region72: #{tpu_custom_call.1} parent=1 // pred_region
      _
    $region73: #{tpu_custom_call.1} parent=1 // pred_fallthru
      _
    // Predicated region
    $region74: #{tpu_custom_call.1} parent=1 // pred_check
      _
    $region75: #{tpu_custom_call.1} parent=1 // pred_check_branch
      %225 = sbr.rel (0) target = $region77
    $region76: #{tpu_custom_call.1} parent=1 // pred_region
      _
    $region77: #{tpu_custom_call.1} parent=1 // pred_fallthru
      _
    // Predicated region
    $region78: #{tpu_custom_call.1} parent=1 // pred_check
      _
    $region79: #{tpu_custom_call.1} parent=1 // pred_check_branch
      %227 = sbr.rel (0) target = $region81
    $region80: #{tpu_custom_call.1} parent=1 // pred_region
      _
    $region81: #{tpu_custom_call.1} parent=1 // pred_fallthru
      _
    // Predicated region
    $region82: #{tpu_custom_call.1} parent=1 // pred_check
      _
    $region83: #{tpu_custom_call.1} parent=1 // pred_check_branch
      %229 = sbr.rel (0) target = $region85
    $region84: #{tpu_custom_call.1} parent=1 // pred_region
      _
    $region85: #{tpu_custom_call.1} parent=1 // pred_fallthru
      _
    // Predicated region
    $region86: #{tpu_custom_call.1} parent=1 // pred_check
      _
    $region87: #{tpu_custom_call.1} parent=1 // pred_check_branch
      %231 = sbr.rel (0) target = $region89
    $region88: #{tpu_custom_call.1} parent=1 // pred_region
      %s233 = ssub.s32 1024, 1024
      %234 = vsyncadd [#allocation22], %s233
      %s235 = sshll.u32 [#allocation21], 4
      %s236 = int_to_ptr.vmem [resolvable:$true] %s235
      %241 = dma.hbm_to_vmem [thread:$0]  %s43, 1024, %s236, [#allocation22], 64, 64, 4
    $region89: #{tpu_custom_call.1} parent=1 // pred_fallthru
      _
    // Predicated region
    $region90: #{tpu_custom_call.1} parent=1 // pred_check
      _
    $region91: #{tpu_custom_call.1} parent=1 // pred_check_branch
      %243 = sbr.rel (0) target = $region93
    $region92: #{tpu_custom_call.1} parent=1 // pred_region
      %s245 = ssub.s32 1024, 1024
      %246 = vsyncadd [#allocation22], %s245
      %s247 = sshll.u32 [#allocation23], 4
      %s248 = int_to_ptr.vmem [resolvable:$true] %s247
      %253 = dma.hbm_to_vmem [thread:$0]  %s45, 1024, %s248, [#allocation22], 64, 64, 4
    $region93: #{tpu_custom_call.1} parent=1 // pred_fallthru
      _
    // Predicated region
    $region94: #{tpu_custom_call.1} parent=1 // pred_check
      _
    $region95: #{tpu_custom_call.1} parent=1 // pred_check_branch
      %255 = sbr.rel (0) target = $region97
    $region96: #{tpu_custom_call.1} parent=1 // pred_region
      _
    $region97: #{tpu_custom_call.1} parent=1 // pred_fallthru
      _
    // Predicated region
    $region98: #{tpu_custom_call.1} parent=1 // pred_check
      _
    $region99: #{tpu_custom_call.1} parent=1 // pred_check_branch
      %257 = sbr.rel (0) target = $region101
    $region100: #{tpu_custom_call.1} parent=1 // pred_region
      _
    $region101: #{tpu_custom_call.1} parent=1 // pred_fallthru
      _
    // Predicated region
    $region102: #{tpu_custom_call.1} parent=1 // pred_check
      _
    $region103: #{tpu_custom_call.1} parent=1 // pred_check_branch
      %259 = sbr.rel (0) target = $region105
    $region104: #{tpu_custom_call.1} parent=1 // pred_region
      _
    $region105: #{tpu_custom_call.1} parent=1 // pred_fallthru
      _
    // Predicated region
    $region106: #{tpu_custom_call.1} parent=1 // pred_check
      _
    $region107: #{tpu_custom_call.1} parent=1 // pred_check_branch
      %261 = sbr.rel (0) target = $region109
    $region108: #{tpu_custom_call.1} parent=1 // pred_region
      _
    $region109: #{tpu_custom_call.1} parent=1 // pred_fallthru
      _
    // Predicated region
    $region110: #{tpu_custom_call.1} parent=1 // pred_check
      _
    $region111: #{tpu_custom_call.1} parent=1 // pred_check_branch
      %263 = sbr.rel (0) target = $region113
    $region112: #{tpu_custom_call.1} parent=1 // pred_region
      _
    $region113: #{tpu_custom_call.1} parent=1 // pred_fallthru
      _
    // Predicated region
    $region114: #{tpu_custom_call.1} parent=1 // pred_check
      _
    $region115: #{tpu_custom_call.1} parent=1 // pred_check_branch
      %265 = sbr.rel (0) target = $region117
    $region116: #{tpu_custom_call.1} parent=1 // pred_region
      _
    $region117: #{tpu_custom_call.1} parent=1 // pred_fallthru
      _
    // Predicated region
    $region118: #{tpu_custom_call.1} parent=1 // pred_check
      _
    $region119: #{tpu_custom_call.1} parent=1 // pred_check_branch
      %267 = sbr.rel (0) target = $region121
    $region120: #{tpu_custom_call.1} parent=1 // pred_region
      _
    $region121: #{tpu_custom_call.1} parent=1 // pred_fallthru
      _
    // Predicated region
    $region122: #{tpu_custom_call.1} parent=1 // pred_check
      _
    $region123: #{tpu_custom_call.1} parent=1 // pred_check_branch
      %269 = sbr.rel (0) target = $region125
    $region124: #{tpu_custom_call.1} parent=1 // pred_region
      _
    $region125: #{tpu_custom_call.1} parent=1 // pred_fallthru
      _
    // Predicated region
    $region126: #{tpu_custom_call.1} parent=1 // pred_check
      _
    $region127: #{tpu_custom_call.1} parent=1 // pred_check_branch
      %271 = sbr.rel (0) target = $region129
    $region128: #{tpu_custom_call.1} parent=1 // pred_region
      %272 = dma.done [#allocation4], 128
    $region129: #{tpu_custom_call.1} parent=1 // pred_fallthru
      _
    // Predicated region
    $region130: #{tpu_custom_call.1} parent=1 // pred_check
      _
    $region131: #{tpu_custom_call.1} parent=1 // pred_check_branch
      %274 = sbr.rel (0) target = $region133
    $region132: #{tpu_custom_call.1} parent=1 // pred_region
      %275 = dma.done [#allocation7], 128
    $region133: #{tpu_custom_call.1} parent=1 // pred_fallthru
      _
    // Predicated region
    $region134: #{tpu_custom_call.1} parent=1 // pred_check
      _
    $region135: #{tpu_custom_call.1} parent=1 // pred_check_branch
      %277 = sbr.rel (0) target = $region137
    $region136: #{tpu_custom_call.1} parent=1 // pred_region
      %278 = dma.done [#allocation7], 128
    $region137: #{tpu_custom_call.1} parent=1 // pred_fallthru
      _
    // Predicated region
    $region138: #{tpu_custom_call.1} parent=1 // pred_check
      _
    $region139: #{tpu_custom_call.1} parent=1 // pred_check_branch
      %280 = sbr.rel (0) target = $region141
    $region140: #{tpu_custom_call.1} parent=1 // pred_region
      %281 = dma.done [#allocation10], 32
    $region141: #{tpu_custom_call.1} parent=1 // pred_fallthru
      _
    // Predicated region
    $region142: #{tpu_custom_call.1} parent=1 // pred_check
      _
    $region143: #{tpu_custom_call.1} parent=1 // pred_check_branch
      %283 = sbr.rel (0) target = $region145
    $region144: #{tpu_custom_call.1} parent=1 // pred_region
      %284 = dma.done [#allocation10], 32
    $region145: #{tpu_custom_call.1} parent=1 // pred_fallthru
      _
    // Predicated region
    $region146: #{tpu_custom_call.1} parent=1 // pred_check
      _
    $region147: #{tpu_custom_call.1} parent=1 // pred_check_branch
      %286 = sbr.rel (0) target = $region149
    $region148: #{tpu_custom_call.1} parent=1 // pred_region
      %287 = dma.done [#allocation13], 32
    $region149: #{tpu_custom_call.1} parent=1 // pred_fallthru
      _
    // Predicated region
    $region150: #{tpu_custom_call.1} parent=1 // pred_check
      _
    $region151: #{tpu_custom_call.1} parent=1 // pred_check_branch
      %289 = sbr.rel (0) target = $region153
    $region152: #{tpu_custom_call.1} parent=1 // pred_region
      %290 = dma.done [#allocation13], 32
    $region153: #{tpu_custom_call.1} parent=1 // pred_fallthru
      _
    // Predicated region
    $region154: #{tpu_custom_call.1} parent=1 // pred_check
      _
    $region155: #{tpu_custom_call.1} parent=1 // pred_check_branch
      %292 = sbr.rel (0) target = $region157
    $region156: #{tpu_custom_call.1} parent=1 // pred_region
      %293 = dma.done [#allocation16], 2048
    $region157: #{tpu_custom_call.1} parent=1 // pred_fallthru
      _
    // Predicated region
    $region158: #{tpu_custom_call.1} parent=1 // pred_check
      _
    $region159: #{tpu_custom_call.1} parent=1 // pred_check_branch
      %295 = sbr.rel (0) target = $region161
    $region160: #{tpu_custom_call.1} parent=1 // pred_region
      %296 = dma.done [#allocation16], 2048
    $region161: #{tpu_custom_call.1} parent=1 // pred_fallthru
      _
    // Predicated region
    $region162: #{tpu_custom_call.1} parent=1 // pred_check
      _
    $region163: #{tpu_custom_call.1} parent=1 // pred_check_branch
      %298 = sbr.rel (0) target = $region165
    $region164: #{tpu_custom_call.1} parent=1 // pred_region
      %299 = dma.done [#allocation19], 2048
    $region165: #{tpu_custom_call.1} parent=1 // pred_fallthru
      _
    // Predicated region
    $region166: #{tpu_custom_call.1} parent=1 // pred_check
      _
    $region167: #{tpu_custom_call.1} parent=1 // pred_check_branch
      %301 = sbr.rel (0) target = $region169
    $region168: #{tpu_custom_call.1} parent=1 // pred_region
      %302 = dma.done [#allocation19], 2048
    $region169: #{tpu_custom_call.1} parent=1 // pred_fallthru
      _
    // Predicated region
    $region170: #{tpu_custom_call.1} parent=1 // pred_check
      _
    $region171: #{tpu_custom_call.1} parent=1 // pred_check_branch
      %304 = sbr.rel (0) target = $region173
    $region172: #{tpu_custom_call.1} parent=1 // pred_region
      %305 = dma.done [#allocation22], 1024
    $region173: #{tpu_custom_call.1} parent=1 // pred_fallthru
      _
    // Predicated region
    $region174: #{tpu_custom_call.1} parent=1 // pred_check
      _
    $region175: #{tpu_custom_call.1} parent=1 // pred_check_branch
      %307 = sbr.rel (0) target = $region177
    $region176: #{tpu_custom_call.1} parent=1 // pred_region
      %308 = dma.done [#allocation22], 1024
    $region177: #{tpu_custom_call.1} parent=1 // pred_fallthru
      _
    %v310 = vld [vmem:[%s1] sm:$0xff]
    %v311 = vld [vmem:[%s1 + $0x8] sm:$0xff]
    %v312 = vld [vmem:[%s3] sm:$0xff]
    %v313 = vld [vmem:[%s3 + $0x8] sm:$0xff]
    %v314 = vld [vmem:[#allocation3] sm:$0xf]
    %v315 = vld [vmem:[#allocation3 + $0x4] sm:$0xf]
    %v316 = vld [vmem:[#allocation6] sm:$0xf]
    %v317 = vld [vmem:[#allocation6 + $0x4] sm:$0xf]
    %v318 = vld [vmem:[#allocation8] sm:$0xf]
    %v319 = vld [vmem:[#allocation8 + $0x4] sm:$0xf]
    %v320 = vld [vmem:[%s11] sm:$0xff]
    %v321 = vld [vmem:[%s11 + $0x8] sm:$0xff]
    %v322 = vld [vmem:[%s13] sm:$0x1]
    %324 = vset.pattern.permute.xlu0 0
    %325 = vperm.xlu0 %324, %v312
    %v326 = vpop.permute.xlu0 %325
    %329 = vset.pattern.permute.xlu0 0
    %330 = vperm.xlu0 %329, %v313
    %v331 = vpop.permute.xlu0 %330
    %v334 = vlaneseq
    %v335 = vshrl.u32 %v334, 7
    %v336 = vsub.s32 0, %v335
    %v337 = vrot.slane %v322, %v336
    %v339 = vmul.f32 %v326, %v337
    %v340 = vmul.f32 %v331, %v337
    %v341 = vld [vmem:[#allocation9] sm:$0x1]
    %v343 = vlaneseq
    %v344 = vshrl.u32 %v343, 7
    %v345 = vsub.s32 0, %v344
    %v346 = vrot.slane %v341, %v345
    %v348 = vadd.f32 %v339, %v346
    %v349 = vadd.f32 %v340, %v346
    %v350 = vand.u32 2147483647, %v348
    %vm351 = vcmp.le.f32.partialorder %v350, 0.7853982
    %vm352 = vcmp.lt.s32.totalorder %v348, 0
    %v353 = vand.u32 %v348, 2139095040
    %v354 = vshrl.u32 %v353, 23
    %v355 = vsub.s32 %v354, 127
    %v356 = vand.u32 2147483647, %v348
    %v357 = vand.u32 %v356, 8388607
    %v358 = vor.u32 %v357, 8388608
    %v359 = vsub.s32 0, %v358
    %v360 = vadd.s32 %v355, 1
    %vm361 = vcmp.gt.s32.totalorder %v360, 0
    %v362 = vsel %vm361, %v360, 0
    %v363 = vshrl.u32 %v362, 5
    %v364 = vand.u32 %v362, 31
    %v365 = vsub.s32 32, %v364
    %v366 = vshrl.u32 683565275, %v365
    %v367 = vshll.u32 683565275, %v364
    %v368 = vshrl.u32 2475754826, %v365
    %v369 = vor.u32 %v367, %v368
    %v370 = vshll.u32 2475754826, %v364
    %v371 = vshrl.u32 2131351028, %v365
    %v372 = vor.u32 %v370, %v371
    %v373 = vshll.u32 2131351028, %v364
    %v374 = vshrl.u32 2102212464, %v365
    %v375 = vor.u32 %v373, %v374
    %v376 = vshll.u32 2102212464, %v364
    %v377 = vshrl.u32 920167782, %v365
    %v378 = vor.u32 %v376, %v377
    %v379 = vshll.u32 920167782, %v364
    %v380 = vshrl.u32 1326507024, %v365
    %v381 = vor.u32 %v379, %v380
    %vm382 = vcmp.lt.s32.totalorder %v363, 1
    %vm383 = vcmp.lt.s32.totalorder %v363, 2
    %vm384 = vcmp.lt.s32.totalorder %v363, 3
    %vm385 = vcmp.lt.s32.totalorder %v363, 4
    %v386 = vsel %vm382, %v366, %v369
    %v387 = vsel %vm385, %v375, 2102212464
    %v388 = vsel %vm384, %v372, %v387
    %v389 = vsel %vm383, %v386, %v388
    %v390 = vsel %vm382, %v369, %v372
    %v391 = vsel %vm385, %v378, 920167782
    %v392 = vsel %vm384, %v375, %v391
    %v393 = vsel %vm383, %v390, %v392
    %v394 = vsel %vm382, %v372, %v375
    %v395 = vsel %vm385, %v381, 1326507024
    %v396 = vsel %vm384, %v378, %v395
    %v397 = vsel %vm383, %v394, %v396
    %v398 = vshll.u32 %v358, 8
    %v399 = vmul.u32.u64.compose %v398, %v397
    %v400 = vextract.low.u32 %v399
    %v401 = vextract.high.u32 %v399
    %v402 = vmul.u32.u64.compose %v398, %v393
    %v403 = vextract.low.u32 %v402
    %v404 = vextract.high.u32 %v402
    %v405 = vmul.u32 %v398, %v389
    %v406 = vadd.s32 %v401, %v403
    %vm407 = vc.u32 %v401, %v403
    %v408 = vadd.s32 %v404, 1
    %v409 = vsel %vm407, %v408, %v404
    %v410 = vadd.s32 %v405, %v409
    %v411 = vadd.s32 %v410, 536870912
    %v412 = vshrl.u32 %v411, 30
    %v413 = vshll.u32 %v412, 30
    %v414 = vsub.s32 %v410, %v413
    %vm415 = vcmp.lt.s32.totalorder %v414, 0
    %v416 = vsub.s32 0, %v414
    %v417 = vsel %vm415, %v416, %v414
    %v418 = vclz %v417
    %v419 = vsub.s32 %v418, 2
    %vm420 = vcmp.gt.s32.totalorder 0, %v419
    %v421 = vsel %vm420, 0, %v419
    %v422 = vsub.s32 32, %v421
    %v423 = vshll.u32 %v414, %v421
    %v424 = vshrl.u32 %v406, %v422
    %v425 = vor.u32 %v423, %v424
    %v426 = vsub.s32 4294967266, %v421
    %v427 = vadd.s32 %v426, 127
    %v428 = vshll.u32 %v427, 23
    %v429 = vor.u32 4788187, %v428
    %v430 = vand.u32 2147483647, %v429
    %v432 = vcvt.s32.f32 %v425
    %v433 = vmul.f32 %v432, %v430
    %v434 = vxor.u32 %v433, 2147483648
    %v435 = vsel %vm352, %v434, %v433
    %v436 = vsub.s32 4, %v412
    %v437 = vsel %vm352, %v436, %v412
    %v438 = vsel %vm351, %v348, %v435
    %v439 = vsel %vm351, 0, %v437
    %v440 = vcosq.f32.pop %v438
    %v441 = vsinq.f32.pop %v438
    %vm442 = vweird.f32 %v348
    %v443 = vand.u32 %v439, 3
    %vm444 = vcmp.lt.s32.totalorder %v443, 2
    %vm445 = vcmp.eq.s32.totalorder %v443, 0
    %v446 = vxor.u32 %v441, 2147483648
    %v447 = vsel %vm445, %v440, %v446
    %vm448 = vcmp.eq.s32.totalorder %v443, 2
    %v449 = vxor.u32 %v440, 2147483648
    %v450 = vsel %vm448, %v449, %v441
    %v451 = vsel %vm444, %v447, %v450
    %v452 = vsel %vm442, nan, %v451
    %v453 = vand.u32 2147483647, %v349
    %vm454 = vcmp.le.f32.partialorder %v453, 0.7853982
    %vm455 = vcmp.lt.s32.totalorder %v349, 0
    %v456 = vand.u32 %v349, 2139095040
    %v457 = vshrl.u32 %v456, 23
    %v458 = vsub.s32 %v457, 127
    %v459 = vand.u32 2147483647, %v349
    %v460 = vand.u32 %v459, 8388607
    %v461 = vor.u32 %v460, 8388608
    %v462 = vsub.s32 0, %v461
    %v463 = vadd.s32 %v458, 1
    %vm464 = vcmp.gt.s32.totalorder %v463, 0
    %v465 = vsel %vm464, %v463, 0
    %v466 = vshrl.u32 %v465, 5
    %v467 = vand.u32 %v465, 31
    %v468 = vsub.s32 32, %v467
    %v469 = vshrl.u32 683565275, %v468
    %v470 = vshll.u32 683565275, %v467
    %v471 = vshrl.u32 2475754826, %v468
    %v472 = vor.u32 %v470, %v471
    %v473 = vshll.u32 2475754826, %v467
    %v474 = vshrl.u32 2131351028, %v468
    %v475 = vor.u32 %v473, %v474
    %v476 = vshll.u32 2131351028, %v467
    %v477 = vshrl.u32 2102212464, %v468
    %v478 = vor.u32 %v476, %v477
    %v479 = vshll.u32 2102212464, %v467
    %v480 = vshrl.u32 920167782, %v468
    %v481 = vor.u32 %v479, %v480
    %v482 = vshll.u32 920167782, %v467
    %v483 = vshrl.u32 1326507024, %v468
    %v484 = vor.u32 %v482, %v483
    %vm485 = vcmp.lt.s32.totalorder %v466, 1
    %vm486 = vcmp.lt.s32.totalorder %v466, 2
    %vm487 = vcmp.lt.s32.totalorder %v466, 3
    %vm488 = vcmp.lt.s32.totalorder %v466, 4
    %v489 = vsel %vm485, %v469, %v472
    %v490 = vsel %vm488, %v478, 2102212464
    %v491 = vsel %vm487, %v475, %v490
    %v492 = vsel %vm486, %v489, %v491
    %v493 = vsel %vm485, %v472, %v475
    %v494 = vsel %vm488, %v481, 920167782
    %v495 = vsel %vm487, %v478, %v494
    %v496 = vsel %vm486, %v493, %v495
    %v497 = vsel %vm485, %v475, %v478
    %v498 = vsel %vm488, %v484, 1326507024
    %v499 = vsel %vm487, %v481, %v498
    %v500 = vsel %vm486, %v497, %v499
    %v501 = vshll.u32 %v461, 8
    %v502 = vmul.u32.u64.compose %v501, %v500
    %v503 = vextract.low.u32 %v502
    %v504 = vextract.high.u32 %v502
    %v505 = vmul.u32.u64.compose %v501, %v496
    %v506 = vextract.low.u32 %v505
    %v507 = vextract.high.u32 %v505
    %v508 = vmul.u32 %v501, %v492
    %v509 = vadd.s32 %v504, %v506
    %vm510 = vc.u32 %v504, %v506
    %v511 = vadd.s32 %v507, 1
    %v512 = vsel %vm510, %v511, %v507
    %v513 = vadd.s32 %v508, %v512
    %v514 = vadd.s32 %v513, 536870912
    %v515 = vshrl.u32 %v514, 30
    %v516 = vshll.u32 %v515, 30
    %v517 = vsub.s32 %v513, %v516
    %vm518 = vcmp.lt.s32.totalorder %v517, 0
    %v519 = vsub.s32 0, %v517
    %v520 = vsel %vm518, %v519, %v517
    %v521 = vclz %v520
    %v522 = vsub.s32 %v521, 2
    %vm523 = vcmp.gt.s32.totalorder 0, %v522
    %v524 = vsel %vm523, 0, %v522
    %v525 = vsub.s32 32, %v524
    %v526 = vshll.u32 %v517, %v524
    %v527 = vshrl.u32 %v509, %v525
    %v528 = vor.u32 %v526, %v527
    %v529 = vsub.s32 4294967266, %v524
    %v530 = vadd.s32 %v529, 127
    %v531 = vshll.u32 %v530, 23
    %v532 = vor.u32 4788187, %v531
    %v533 = vand.u32 2147483647, %v532
    %v535 = vcvt.s32.f32 %v528
    %v536 = vmul.f32 %v535, %v533
    %v537 = vxor.u32 %v536, 2147483648
    %v538 = vsel %vm455, %v537, %v536
    %v539 = vsub.s32 4, %v515
    %v540 = vsel %vm455, %v539, %v515
    %v541 = vsel %vm454, %v349, %v538
    %v542 = vsel %vm454, 0, %v540
    %v543 = vcosq.f32.pop %v541
    %v544 = vsinq.f32.pop %v541
    %vm545 = vweird.f32 %v349
    %v546 = vand.u32 %v542, 3
    %vm547 = vcmp.lt.s32.totalorder %v546, 2
    %vm548 = vcmp.eq.s32.totalorder %v546, 0
    %v549 = vxor.u32 %v544, 2147483648
    %v550 = vsel %vm548, %v543, %v549
    %vm551 = vcmp.eq.s32.totalorder %v546, 2
    %v552 = vxor.u32 %v543, 2147483648
    %v553 = vsel %vm551, %v552, %v544
    %v554 = vsel %vm547, %v550, %v553
    %v555 = vsel %vm545, nan, %v554
    %v556 = vpack.c.bf16 %v311, %v310
    %v557 = vld [vmem:[%s23] sm:$0xf]
    %v558 = vld [vmem:[%s23 + $0x4] sm:$0xf]
    %v559 = vld [vmem:[%s23 + $0x8] sm:$0xf]
    %v560 = vld [vmem:[%s23 + $0xc] sm:$0xf]
    %v561 = vld [vmem:[%s23 + $0x10] sm:$0xf]
    %v562 = vld [vmem:[%s23 + $0x14] sm:$0xf]
    %v563 = vld [vmem:[%s23 + $0x18] sm:$0xf]
    %v564 = vld [vmem:[%s23 + $0x1c] sm:$0xf]
    %v565 = vld [vmem:[%s23 + $0x20] sm:$0xf]
    %v566 = vld [vmem:[%s23 + $0x24] sm:$0xf]
    %v567 = vld [vmem:[%s23 + $0x28] sm:$0xf]
    %v568 = vld [vmem:[%s23 + $0x2c] sm:$0xf]
    %v569 = vld [vmem:[%s23 + $0x30] sm:$0xf]
    %v570 = vld [vmem:[%s23 + $0x34] sm:$0xf]
    %v571 = vld [vmem:[%s23 + $0x38] sm:$0xf]
    %v572 = vld [vmem:[%s23 + $0x3c] sm:$0xf]
    %v573 = vpack.c.bf16 %v555, %v452
    %v574 = vld [vmem:[#allocation15] sm:$0xf]
    %v575 = vld [vmem:[#allocation15 + $0x4] sm:$0xf]
    %v576 = vld [vmem:[#allocation15 + $0x8] sm:$0xf]
    %v577 = vld [vmem:[#allocation15 + $0xc] sm:$0xf]
    %v578 = vld [vmem:[#allocation15 + $0x10] sm:$0xf]
    %v579 = vld [vmem:[#allocation15 + $0x14] sm:$0xf]
    %v580 = vld [vmem:[#allocation15 + $0x18] sm:$0xf]
    %v581 = vld [vmem:[#allocation15 + $0x1c] sm:$0xf]
    %v582 = vld [vmem:[#allocation15 + $0x20] sm:$0xf]
    %v583 = vld [vmem:[#allocation15 + $0x24] sm:$0xf]
    %v584 = vld [vmem:[#allocation15 + $0x28] sm:$0xf]
    %v585 = vld [vmem:[#allocation15 + $0x2c] sm:$0xf]
    %v586 = vld [vmem:[#allocation15 + $0x30] sm:$0xf]
    %v587 = vld [vmem:[#allocation15 + $0x34] sm:$0xf]
    %v588 = vld [vmem:[#allocation15 + $0x38] sm:$0xf]
    %v589 = vld [vmem:[#allocation15 + $0x3c] sm:$0xf]
    %v606 = vunpack.c.l.b16 %v574
    %v607 = vunpack.c.l.b16 %v575
    %v608 = vunpack.c.l.b16 %v576
    %v609 = vunpack.c.l.b16 %v577
    %v610 = vunpack.c.l.b16 %v578
    %v611 = vunpack.c.l.b16 %v579
    %v612 = vunpack.c.l.b16 %v580
    %v613 = vunpack.c.l.b16 %v581
    %v614 = vunpack.c.l.b16 %v582
    %v615 = vunpack.c.l.b16 %v583
    %v616 = vunpack.c.l.b16 %v584
    %v617 = vunpack.c.l.b16 %v585
    %v618 = vunpack.c.l.b16 %v586
    %v619 = vunpack.c.l.b16 %v587
    %v620 = vunpack.c.l.b16 %v588
    %v621 = vunpack.c.l.b16 %v589
    %v622 = vpack.c.b16 %v607, %v606
    %v623 = vpack.c.b16 %v609, %v608
    %v624 = vpack.c.b16 %v611, %v610
    %v625 = vpack.c.b16 %v613, %v612
    %v626 = vpack.c.b16 %v615, %v614
    %v627 = vpack.c.b16 %v617, %v616
    %v628 = vpack.c.b16 %v619, %v618
    %v629 = vpack.c.b16 %v621, %v620
    %638 = vmatprep.subr.bf16.mxu0 0
    %639 = vmatpush1.bf16.msra.mxu0 %v622
    %640 = vmatprep.subr.bf16.mxu0 0
    %641 = vmatpush1.bf16.msra.mxu0 %v623
    %642 = vmatprep.subr.bf16.mxu0 0
    %643 = vmatpush1.bf16.msra.mxu0 %v624
    %644 = vmatprep.subr.bf16.mxu0 0
    %645 = vmatpush1.bf16.msra.mxu0 %v625
    %646 = vmatprep.subr.bf16.mxu0 0
    %647 = vmatpush1.bf16.msra.mxu0 %v626
    %648 = vmatprep.subr.bf16.mxu0 0
    %649 = vmatpush1.bf16.msra.mxu0 %v627
    %650 = vmatprep.subr.bf16.mxu0 0
    %651 = vmatpush1.bf16.msra.mxu0 %v628
    %652 = vmatprep.subr.bf16.mxu0 0
    %653 = vmatpush1.bf16.msra.mxu0 %v629
    %654 = vmatprep.subr.bf16.mxu0 0
    %655 = vmatpush1.bf16.msra.mxu0 0
    %656 = vmatprep.subr.bf16.mxu0 0
    %657 = vmatpush1.bf16.msra.mxu0 0
    %658 = vmatprep.subr.bf16.mxu0 0
    %659 = vmatpush1.bf16.msra.mxu0 0
    %660 = vmatprep.subr.bf16.mxu0 0
    %661 = vmatpush1.bf16.msra.mxu0 0
    %662 = vmatprep.subr.bf16.mxu0 0
    %663 = vmatpush1.bf16.msra.mxu0 0
    %664 = vmatprep.subr.bf16.mxu0 0
    %665 = vmatpush1.bf16.msra.mxu0 0
    %666 = vmatprep.subr.bf16.mxu0 0
    %667 = vmatpush1.bf16.msra.mxu0 0
    %668 = vmatprep.subr.bf16.mxu0 0
    %669 = vmatpush1.bf16.msra.mxu0 0
    %670 = vmatprep.mubr.bf16.mxu0 0
    %671 = vmatmul.mubr.bf16.gmra.mrb[0].mxu0 %v573
    %v672 = vpop.f32.mrb[0].mxu0
    %v673 = vadd.f32 0.0, %v672
    %v674 = vpop.f32.mrb[0].mxu0
    %v675 = vpop.f32.mrb[0].mxu0
    %v676 = vadd.f32 0.0, %v675
    %v677 = vpop.f32.mrb[0].mxu0
    %678 = vdwg.mxu0
    %v695 = vunpack.c.l.b16 %v557
    %v696 = vunpack.c.l.b16 %v558
    %v697 = vunpack.c.l.b16 %v559
    %v698 = vunpack.c.l.b16 %v560
    %v699 = vunpack.c.l.b16 %v561
    %v700 = vunpack.c.l.b16 %v562
    %v701 = vunpack.c.l.b16 %v563
    %v702 = vunpack.c.l.b16 %v564
    %v703 = vunpack.c.l.b16 %v565
    %v704 = vunpack.c.l.b16 %v566
    %v705 = vunpack.c.l.b16 %v567
    %v706 = vunpack.c.l.b16 %v568
    %v707 = vunpack.c.l.b16 %v569
    %v708 = vunpack.c.l.b16 %v570
    %v709 = vunpack.c.l.b16 %v571
    %v710 = vunpack.c.l.b16 %v572
    %v711 = vpack.c.b16 %v696, %v695
    %v712 = vpack.c.b16 %v698, %v697
    %v713 = vpack.c.b16 %v700, %v699
    %v714 = vpack.c.b16 %v702, %v701
    %v715 = vpack.c.b16 %v704, %v703
    %v716 = vpack.c.b16 %v706, %v705
    %v717 = vpack.c.b16 %v708, %v707
    %v718 = vpack.c.b16 %v710, %v709
    %727 = vmatprep.subr.bf16.mxu0 0
    %728 = vmatpush1.bf16.msra.mxu0 %v711
    %729 = vmatprep.subr.bf16.mxu0 0
    %730 = vmatpush1.bf16.msra.mxu0 %v712
    %731 = vmatprep.subr.bf16.mxu0 0
    %732 = vmatpush1.bf16.msra.mxu0 %v713
    %733 = vmatprep.subr.bf16.mxu0 0
    %734 = vmatpush1.bf16.msra.mxu0 %v714
    %735 = vmatprep.subr.bf16.mxu0 0
    %736 = vmatpush1.bf16.msra.mxu0 %v715
    %737 = vmatprep.subr.bf16.mxu0 0
    %738 = vmatpush1.bf16.msra.mxu0 %v716
    %739 = vmatprep.subr.bf16.mxu0 0
    %740 = vmatpush1.bf16.msra.mxu0 %v717
    %741 = vmatprep.subr.bf16.mxu0 0
    %742 = vmatpush1.bf16.msra.mxu0 %v718
    %743 = vmatprep.subr.bf16.mxu0 0
    %744 = vmatpush1.bf16.msra.mxu0 0
    %745 = vmatprep.subr.bf16.mxu0 0
    %746 = vmatpush1.bf16.msra.mxu0 0
    %747 = vmatprep.subr.bf16.mxu0 0
    %748 = vmatpush1.bf16.msra.mxu0 0
    %749 = vmatprep.subr.bf16.mxu0 0
    %750 = vmatpush1.bf16.msra.mxu0 0
    %751 = vmatprep.subr.bf16.mxu0 0
    %752 = vmatpush1.bf16.msra.mxu0 0
    %753 = vmatprep.subr.bf16.mxu0 0
    %754 = vmatpush1.bf16.msra.mxu0 0
    %755 = vmatprep.subr.bf16.mxu0 0
    %756 = vmatpush1.bf16.msra.mxu0 0
    %757 = vmatprep.subr.bf16.mxu0 0
    %758 = vmatpush1.bf16.msra.mxu0 0
    %759 = vmatprep.mubr.bf16.mxu0 0
    %760 = vmatmul.mubr.bf16.gmra.mrb[0].mxu0 %v556
    %v761 = vpop.f32.mrb[0].mxu0
    %v762 = vadd.f32 %v673, %v761
    %v763 = vpop.f32.mrb[0].mxu0
    %v764 = vpop.f32.mrb[0].mxu0
    %v765 = vadd.f32 %v676, %v764
    %v766 = vpop.f32.mrb[0].mxu0
    %767 = vdwg.mxu0
    %v768 = vld [vmem:[#allocation11] sm:$0x1]
    %v770 = vlaneseq
    %v771 = vshrl.u32 %v770, 7
    %v772 = vsub.s32 0, %v771
    %v773 = vrot.slane %v768, %v772
    %v775 = vadd.f32 %v762, %v773
    %v776 = vadd.f32 %v765, %v773
    %v777 = vmax.f32 %v775, 0.0
    %v778 = vmax.f32 %v776, 0.0
    %v779 = vpack.c.bf16 %v778, %v777
    %v780 = vld [vmem:[#allocation17] sm:$0xf]
    %v781 = vld [vmem:[#allocation17 + $0x4] sm:$0xf]
    %v782 = vld [vmem:[#allocation17 + $0x8] sm:$0xf]
    %v783 = vld [vmem:[#allocation17 + $0xc] sm:$0xf]
    %v784 = vld [vmem:[#allocation17 + $0x10] sm:$0xf]
    %v785 = vld [vmem:[#allocation17 + $0x14] sm:$0xf]
    %v786 = vld [vmem:[#allocation17 + $0x18] sm:$0xf]
    %v787 = vld [vmem:[#allocation17 + $0x1c] sm:$0xf]
    %v788 = vld [vmem:[#allocation17 + $0x20] sm:$0xf]
    %v789 = vld [vmem:[#allocation17 + $0x24] sm:$0xf]
    %v790 = vld [vmem:[#allocation17 + $0x28] sm:$0xf]
    %v791 = vld [vmem:[#allocation17 + $0x2c] sm:$0xf]
    %v792 = vld [vmem:[#allocation17 + $0x30] sm:$0xf]
    %v793 = vld [vmem:[#allocation17 + $0x34] sm:$0xf]
    %v794 = vld [vmem:[#allocation17 + $0x38] sm:$0xf]
    %v795 = vld [vmem:[#allocation17 + $0x3c] sm:$0xf]
    %v796 = vld [vmem:[#allocation12] sm:$0x1]
    %v798 = vlaneseq
    %v799 = vshrl.u32 %v798, 7
    %v800 = vsub.s32 0, %v799
    %v801 = vrot.slane %v796, %v800
    %v805 = vunpack.c.l.b16 %v314
    %v806 = vunpack.c.l.b16 %v315
    %v807 = vpack.c.b16 %v806, %v805
    %v825 = vunpack.c.l.b16 %v780
    %v826 = vunpack.c.l.b16 %v781
    %v827 = vunpack.c.l.b16 %v782
    %v828 = vunpack.c.l.b16 %v783
    %v829 = vunpack.c.l.b16 %v784
    %v830 = vunpack.c.l.b16 %v785
    %v831 = vunpack.c.l.b16 %v786
    %v832 = vunpack.c.l.b16 %v787
    %v833 = vunpack.c.l.b16 %v788
    %v834 = vunpack.c.l.b16 %v789
    %v835 = vunpack.c.l.b16 %v790
    %v836 = vunpack.c.l.b16 %v791
    %v837 = vunpack.c.l.b16 %v792
    %v838 = vunpack.c.l.b16 %v793
    %v839 = vunpack.c.l.b16 %v794
    %v840 = vunpack.c.l.b16 %v795
    %v841 = vpack.c.b16 %v826, %v825
    %v842 = vpack.c.b16 %v828, %v827
    %v843 = vpack.c.b16 %v830, %v829
    %v844 = vpack.c.b16 %v832, %v831
    %v845 = vpack.c.b16 %v834, %v833
    %v846 = vpack.c.b16 %v836, %v835
    %v847 = vpack.c.b16 %v838, %v837
    %v848 = vpack.c.b16 %v840, %v839
    %857 = vmatprep.subr.bf16.mxu0 0
    %858 = vmatpush1.bf16.msra.mxu0 %v841
    %859 = vmatprep.subr.bf16.mxu0 0
    %860 = vmatpush1.bf16.msra.mxu0 %v842
    %861 = vmatprep.subr.bf16.mxu0 0
    %862 = vmatpush1.bf16.msra.mxu0 %v843
    %863 = vmatprep.subr.bf16.mxu0 0
    %864 = vmatpush1.bf16.msra.mxu0 %v844
    %865 = vmatprep.subr.bf16.mxu0 0
    %866 = vmatpush1.bf16.msra.mxu0 %v845
    %867 = vmatprep.subr.bf16.mxu0 0
    %868 = vmatpush1.bf16.msra.mxu0 %v846
    %869 = vmatprep.subr.bf16.mxu0 0
    %870 = vmatpush1.bf16.msra.mxu0 %v847
    %871 = vmatprep.subr.bf16.mxu0 0
    %872 = vmatpush1.bf16.msra.mxu0 %v848
    %873 = vmatprep.subr.bf16.mxu0 0
    %874 = vmatpush1.bf16.msra.mxu0 0
    %875 = vmatprep.subr.bf16.mxu0 0
    %876 = vmatpush1.bf16.msra.mxu0 0
    %877 = vmatprep.subr.bf16.mxu0 0
    %878 = vmatpush1.bf16.msra.mxu0 0
    %879 = vmatprep.subr.bf16.mxu0 0
    %880 = vmatpush1.bf16.msra.mxu0 0
    %881 = vmatprep.subr.bf16.mxu0 0
    %882 = vmatpush1.bf16.msra.mxu0 0
    %883 = vmatprep.subr.bf16.mxu0 0
    %884 = vmatpush1.bf16.msra.mxu0 0
    %885 = vmatprep.subr.bf16.mxu0 0
    %886 = vmatpush1.bf16.msra.mxu0 0
    %887 = vmatprep.subr.bf16.mxu0 0
    %888 = vmatpush1.bf16.msra.mxu0 0
    %889 = vmatprep.mubr.bf16.mxu0 0
    %890 = vmatmul.mubr.bf16.gmra.mrb[0].mxu0 %v807
    %v891 = vpop.f32.mrb[0].mxu0
    %v892 = vadd.f32 %v801, %v891
    %v893 = vpop.f32.mrb[0].mxu0
    %v894 = vpop.f32.mrb[0].mxu0
    %v895 = vadd.f32 %v801, %v894
    %v896 = vpop.f32.mrb[0].mxu0
    %897 = vdwg.mxu0
    %v900 = vunpack.c.l.b16 %v316
    %v901 = vunpack.c.l.b16 %v317
    %v902 = vpack.c.b16 %v901, %v900
    %vm903 = vcmask 130048
    %v905 = vsel %vm903, %v902, 0
    %907 = vmatprep.subr.bf16.mxu0 0
    %908 = vmatpush1.bf16.msra.mxu0 %v779
    %909 = vmatprep.subr.bf16.mxu0 0
    %910 = vmatpush1.bf16.msra.mxu0 0
    %911 = vmatprep.subr.bf16.mxu0 0
    %912 = vmatpush1.bf16.msra.mxu0 0
    %913 = vmatprep.subr.bf16.mxu0 0
    %914 = vmatpush1.bf16.msra.mxu0 0
    %915 = vmatprep.subr.bf16.mxu0 0
    %916 = vmatpush1.bf16.msra.mxu0 0
    %917 = vmatprep.subr.bf16.mxu0 0
    %918 = vmatpush1.bf16.msra.mxu0 0
    %919 = vmatprep.subr.bf16.mxu0 0
    %920 = vmatpush1.bf16.msra.mxu0 0
    %921 = vmatprep.subr.bf16.mxu0 0
    %922 = vmatpush1.bf16.msra.mxu0 0
    %923 = vmatprep.subr.bf16.mxu0 0
    %924 = vmatpush1.bf16.msra.mxu0 0
    %925 = vmatprep.subr.bf16.mxu0 0
    %926 = vmatpush1.bf16.msra.mxu0 0
    %927 = vmatprep.subr.bf16.mxu0 0
    %928 = vmatpush1.bf16.msra.mxu0 0
    %929 = vmatprep.subr.bf16.mxu0 0
    %930 = vmatpush1.bf16.msra.mxu0 0
    %931 = vmatprep.subr.bf16.mxu0 0
    %932 = vmatpush1.bf16.msra.mxu0 0
    %933 = vmatprep.subr.bf16.mxu0 0
    %934 = vmatpush1.bf16.msra.mxu0 0
    %935 = vmatprep.subr.bf16.mxu0 0
    %936 = vmatpush1.bf16.msra.mxu0 0
    %937 = vmatprep.subr.bf16.mxu0 0
    %938 = vmatpush1.bf16.msra.mxu0 0
    %939 = vmatprep.mubr.bf16.mxu0 0
    %940 = vmatmul.mubr.bf16.gmra.mrb[0].mxu0 %v905
    %v941 = vpop.f32.mrb[0].mxu0
    %v942 = vadd.f32 %v892, %v941
    %v943 = vpop.f32.mrb[0].mxu0
    %v944 = vpop.f32.mrb[0].mxu0
    %v945 = vadd.f32 %v895, %v944
    %v946 = vpop.f32.mrb[0].mxu0
    %947 = vdwg.mxu0
    %v948 = vpack.c.bf16 %v945, %v942
    %v951 = vunpack.c.l.b16 %v318
    %v952 = vunpack.c.l.b16 %v319
    %v953 = vpack.c.b16 %v952, %v951
    %v955 = vsel %vm903, %v953, 0
    %957 = vmatprep.subr.bf16.mxu0 0
    %958 = vmatpush1.bf16.msra.mxu0 %v948
    %959 = vmatprep.subr.bf16.mxu0 0
    %960 = vmatpush1.bf16.msra.mxu0 0
    %961 = vmatprep.subr.bf16.mxu0 0
    %962 = vmatpush1.bf16.msra.mxu0 0
    %963 = vmatprep.subr.bf16.mxu0 0
    %964 = vmatpush1.bf16.msra.mxu0 0
    %965 = vmatprep.subr.bf16.mxu0 0
    %966 = vmatpush1.bf16.msra.mxu0 0
    %967 = vmatprep.subr.bf16.mxu0 0
    %968 = vmatpush1.bf16.msra.mxu0 0
    %969 = vmatprep.subr.bf16.mxu0 0
    %970 = vmatpush1.bf16.msra.mxu0 0
    %971 = vmatprep.subr.bf16.mxu0 0
    %972 = vmatpush1.bf16.msra.mxu0 0
    %973 = vmatprep.subr.bf16.mxu0 0
    %974 = vmatpush1.bf16.msra.mxu0 0
    %975 = vmatprep.subr.bf16.mxu0 0
    %976 = vmatpush1.bf16.msra.mxu0 0
    %977 = vmatprep.subr.bf16.mxu0 0
    %978 = vmatpush1.bf16.msra.mxu0 0
    %979 = vmatprep.subr.bf16.mxu0 0
    %980 = vmatpush1.bf16.msra.mxu0 0
    %981 = vmatprep.subr.bf16.mxu0 0
    %982 = vmatpush1.bf16.msra.mxu0 0
    %983 = vmatprep.subr.bf16.mxu0 0
    %984 = vmatpush1.bf16.msra.mxu0 0
    %985 = vmatprep.subr.bf16.mxu0 0
    %986 = vmatpush1.bf16.msra.mxu0 0
    %987 = vmatprep.subr.bf16.mxu0 0
    %988 = vmatpush1.bf16.msra.mxu0 0
    %989 = vmatprep.mubr.bf16.mxu0 0
    %990 = vmatmul.mubr.bf16.gmra.mrb[0].mxu0 %v955
    %v991 = vpop.f32.mrb[0].mxu0
    %v992 = vadd.f32 0.0, %v991
    %v993 = vpop.f32.mrb[0].mxu0
    %v994 = vpop.f32.mrb[0].mxu0
    %v995 = vadd.f32 0.0, %v994
    %v996 = vpop.f32.mrb[0].mxu0
    %997 = vdwg.mxu0
    %999 = vset.pattern.permute.xlu0 0
    %1000 = vperm.xlu0 %999, %v320
    %v1001 = vpop.permute.xlu0 %1000
    %1004 = vset.pattern.permute.xlu0 0
    %1005 = vperm.xlu0 %1004, %v321
    %v1006 = vpop.permute.xlu0 %1005
    %v1008 = vmul.f32 %v992, %v1001
    %v1009 = vmul.f32 %v995, %v1006
    %v1010 = vld [vmem:[#allocation18] sm:$0xf]
    %v1011 = vld [vmem:[#allocation18 + $0x4] sm:$0xf]
    %v1012 = vld [vmem:[#allocation18 + $0x8] sm:$0xf]
    %v1013 = vld [vmem:[#allocation18 + $0xc] sm:$0xf]
    %v1014 = vld [vmem:[#allocation18 + $0x10] sm:$0xf]
    %v1015 = vld [vmem:[#allocation18 + $0x14] sm:$0xf]
    %v1016 = vld [vmem:[#allocation18 + $0x18] sm:$0xf]
    %v1017 = vld [vmem:[#allocation18 + $0x1c] sm:$0xf]
    %v1018 = vld [vmem:[#allocation18 + $0x20] sm:$0xf]
    %v1019 = vld [vmem:[#allocation18 + $0x24] sm:$0xf]
    %v1020 = vld [vmem:[#allocation18 + $0x28] sm:$0xf]
    %v1021 = vld [vmem:[#allocation18 + $0x2c] sm:$0xf]
    %v1022 = vld [vmem:[#allocation18 + $0x30] sm:$0xf]
    %v1023 = vld [vmem:[#allocation18 + $0x34] sm:$0xf]
    %v1024 = vld [vmem:[#allocation18 + $0x38] sm:$0xf]
    %v1025 = vld [vmem:[#allocation18 + $0x3c] sm:$0xf]
    %v1026 = vpack.c.bf16 %v1009, %v1008
    %v1027 = vld [vmem:[#allocation20] sm:$0xf]
    %v1028 = vld [vmem:[#allocation20 + $0x4] sm:$0xf]
    %v1029 = vld [vmem:[#allocation20 + $0x8] sm:$0xf]
    %v1030 = vld [vmem:[#allocation20 + $0xc] sm:$0xf]
    %v1031 = vld [vmem:[#allocation20 + $0x10] sm:$0xf]
    %v1032 = vld [vmem:[#allocation20 + $0x14] sm:$0xf]
    %v1033 = vld [vmem:[#allocation20 + $0x18] sm:$0xf]
    %v1034 = vld [vmem:[#allocation20 + $0x1c] sm:$0xf]
    %v1035 = vld [vmem:[#allocation20 + $0x20] sm:$0xf]
    %v1036 = vld [vmem:[#allocation20 + $0x24] sm:$0xf]
    %v1037 = vld [vmem:[#allocation20 + $0x28] sm:$0xf]
    %v1038 = vld [vmem:[#allocation20 + $0x2c] sm:$0xf]
    %v1039 = vld [vmem:[#allocation20 + $0x30] sm:$0xf]
    %v1040 = vld [vmem:[#allocation20 + $0x34] sm:$0xf]
    %v1041 = vld [vmem:[#allocation20 + $0x38] sm:$0xf]
    %v1042 = vld [vmem:[#allocation20 + $0x3c] sm:$0xf]
    %v1059 = vunpack.c.l.b16 %v1027
    %v1060 = vunpack.c.l.b16 %v1028
    %v1061 = vunpack.c.l.b16 %v1029
    %v1062 = vunpack.c.l.b16 %v1030
    %v1063 = vunpack.c.l.b16 %v1031
    %v1064 = vunpack.c.l.b16 %v1032
    %v1065 = vunpack.c.l.b16 %v1033
    %v1066 = vunpack.c.l.b16 %v1034
    %v1067 = vunpack.c.l.b16 %v1035
    %v1068 = vunpack.c.l.b16 %v1036
    %v1069 = vunpack.c.l.b16 %v1037
    %v1070 = vunpack.c.l.b16 %v1038
    %v1071 = vunpack.c.l.b16 %v1039
    %v1072 = vunpack.c.l.b16 %v1040
    %v1073 = vunpack.c.l.b16 %v1041
    %v1074 = vunpack.c.l.b16 %v1042
    %v1075 = vpack.c.b16 %v1060, %v1059
    %v1076 = vpack.c.b16 %v1062, %v1061
    %v1077 = vpack.c.b16 %v1064, %v1063
    %v1078 = vpack.c.b16 %v1066, %v1065
    %v1079 = vpack.c.b16 %v1068, %v1067
    %v1080 = vpack.c.b16 %v1070, %v1069
    %v1081 = vpack.c.b16 %v1072, %v1071
    %v1082 = vpack.c.b16 %v1074, %v1073
    %1091 = vmatprep.subr.bf16.mxu0 0
    %1092 = vmatpush1.bf16.msra.mxu0 %v1075
    %1093 = vmatprep.subr.bf16.mxu0 0
    %1094 = vmatpush1.bf16.msra.mxu0 %v1076
    %1095 = vmatprep.subr.bf16.mxu0 0
    %1096 = vmatpush1.bf16.msra.mxu0 %v1077
    %1097 = vmatprep.subr.bf16.mxu0 0
    %1098 = vmatpush1.bf16.msra.mxu0 %v1078
    %1099 = vmatprep.subr.bf16.mxu0 0
    %1100 = vmatpush1.bf16.msra.mxu0 %v1079
    %1101 = vmatprep.subr.bf16.mxu0 0
    %1102 = vmatpush1.bf16.msra.mxu0 %v1080
    %1103 = vmatprep.subr.bf16.mxu0 0
    %1104 = vmatpush1.bf16.msra.mxu0 %v1081
    %1105 = vmatprep.subr.bf16.mxu0 0
    %1106 = vmatpush1.bf16.msra.mxu0 %v1082
    %1107 = vmatprep.subr.bf16.mxu0 0
    %1108 = vmatpush1.bf16.msra.mxu0 0
    %1109 = vmatprep.subr.bf16.mxu0 0
    %1110 = vmatpush1.bf16.msra.mxu0 0
    %1111 = vmatprep.subr.bf16.mxu0 0
    %1112 = vmatpush1.bf16.msra.mxu0 0
    %1113 = vmatprep.subr.bf16.mxu0 0
    %1114 = vmatpush1.bf16.msra.mxu0 0
    %1115 = vmatprep.subr.bf16.mxu0 0
    %1116 = vmatpush1.bf16.msra.mxu0 0
    %1117 = vmatprep.subr.bf16.mxu0 0
    %1118 = vmatpush1.bf16.msra.mxu0 0
    %1119 = vmatprep.subr.bf16.mxu0 0
    %1120 = vmatpush1.bf16.msra.mxu0 0
    %1121 = vmatprep.subr.bf16.mxu0 0
    %1122 = vmatpush1.bf16.msra.mxu0 0
    %1123 = vmatprep.mubr.bf16.mxu0 0
    %1124 = vmatmul.mubr.bf16.gmra.mrb[0].mxu0 %v1026
    %v1125 = vpop.f32.mrb[0].mxu0
    %v1126 = vadd.f32 0.0, %v1125
    %v1127 = vpop.f32.mrb[0].mxu0
    %v1128 = vpop.f32.mrb[0].mxu0
    %v1129 = vadd.f32 0.0, %v1128
    %v1130 = vpop.f32.mrb[0].mxu0
    %1131 = vdwg.mxu0
    %v1148 = vunpack.c.l.b16 %v1010
    %v1149 = vunpack.c.l.b16 %v1011
    %v1150 = vunpack.c.l.b16 %v1012
    %v1151 = vunpack.c.l.b16 %v1013
    %v1152 = vunpack.c.l.b16 %v1014
    %v1153 = vunpack.c.l.b16 %v1015
    %v1154 = vunpack.c.l.b16 %v1016
    %v1155 = vunpack.c.l.b16 %v1017
    %v1156 = vunpack.c.l.b16 %v1018
    %v1157 = vunpack.c.l.b16 %v1019
    %v1158 = vunpack.c.l.b16 %v1020
    %v1159 = vunpack.c.l.b16 %v1021
    %v1160 = vunpack.c.l.b16 %v1022
    %v1161 = vunpack.c.l.b16 %v1023
    %v1162 = vunpack.c.l.b16 %v1024
    %v1163 = vunpack.c.l.b16 %v1025
    %v1164 = vpack.c.b16 %v1149, %v1148
    %v1165 = vpack.c.b16 %v1151, %v1150
    %v1166 = vpack.c.b16 %v1153, %v1152
    %v1167 = vpack.c.b16 %v1155, %v1154
    %v1168 = vpack.c.b16 %v1157, %v1156
    %v1169 = vpack.c.b16 %v1159, %v1158
    %v1170 = vpack.c.b16 %v1161, %v1160
    %v1171 = vpack.c.b16 %v1163, %v1162
    %1180 = vmatprep.subr.bf16.mxu0 0
    %1181 = vmatpush1.bf16.msra.mxu0 %v1164
    %1182 = vmatprep.subr.bf16.mxu0 0
    %1183 = vmatpush1.bf16.msra.mxu0 %v1165
    %1184 = vmatprep.subr.bf16.mxu0 0
    %1185 = vmatpush1.bf16.msra.mxu0 %v1166
    %1186 = vmatprep.subr.bf16.mxu0 0
    %1187 = vmatpush1.bf16.msra.mxu0 %v1167
    %1188 = vmatprep.subr.bf16.mxu0 0
    %1189 = vmatpush1.bf16.msra.mxu0 %v1168
    %1190 = vmatprep.subr.bf16.mxu0 0
    %1191 = vmatpush1.bf16.msra.mxu0 %v1169
    %1192 = vmatprep.subr.bf16.mxu0 0
    %1193 = vmatpush1.bf16.msra.mxu0 %v1170
    %1194 = vmatprep.subr.bf16.mxu0 0
    %1195 = vmatpush1.bf16.msra.mxu0 %v1171
    %1196 = vmatprep.subr.bf16.mxu0 0
    %1197 = vmatpush1.bf16.msra.mxu0 0
    %1198 = vmatprep.subr.bf16.mxu0 0
    %1199 = vmatpush1.bf16.msra.mxu0 0
    %1200 = vmatprep.subr.bf16.mxu0 0
    %1201 = vmatpush1.bf16.msra.mxu0 0
    %1202 = vmatprep.subr.bf16.mxu0 0
    %1203 = vmatpush1.bf16.msra.mxu0 0
    %1204 = vmatprep.subr.bf16.mxu0 0
    %1205 = vmatpush1.bf16.msra.mxu0 0
    %1206 = vmatprep.subr.bf16.mxu0 0
    %1207 = vmatpush1.bf16.msra.mxu0 0
    %1208 = vmatprep.subr.bf16.mxu0 0
    %1209 = vmatpush1.bf16.msra.mxu0 0
    %1210 = vmatprep.subr.bf16.mxu0 0
    %1211 = vmatpush1.bf16.msra.mxu0 0
    %1212 = vmatprep.mubr.bf16.mxu0 0
    %1213 = vmatmul.mubr.bf16.gmra.mrb[0].mxu0 %v779
    %v1214 = vpop.f32.mrb[0].mxu0
    %v1215 = vadd.f32 %v1126, %v1214
    %v1216 = vpop.f32.mrb[0].mxu0
    %v1217 = vpop.f32.mrb[0].mxu0
    %v1218 = vadd.f32 %v1129, %v1217
    %v1219 = vpop.f32.mrb[0].mxu0
    %1220 = vdwg.mxu0
    %v1221 = vld [vmem:[#allocation14] sm:$0x1]
    %v1223 = vlaneseq
    %v1224 = vshrl.u32 %v1223, 7
    %v1225 = vsub.s32 0, %v1224
    %v1226 = vrot.slane %v1221, %v1225
    %v1228 = vadd.f32 %v1215, %v1226
    %v1229 = vadd.f32 %v1218, %v1226
    %v1230 = vmax.f32 %v1228, 0.0
    %v1231 = vmax.f32 %v1229, 0.0
    %s1232 = scalar_lea.vmem %s13, 1
    %v1233 = vld [vmem:[%s1232] sm:$0x1]
    %v1235 = vlaneseq
    %v1236 = vshrl.u32 %v1235, 7
    %v1237 = vsub.s32 0, %v1236
    %v1238 = vrot.slane %v1233, %v1237
    %v1240 = vmul.f32 %v326, %v1238
    %v1241 = vmul.f32 %v331, %v1238
    %s1242 = scalar_lea.vmem [#allocation9], 1
    %v1243 = vld [vmem:[%s1242] sm:$0x1]
    %v1245 = vlaneseq
    %v1246 = vshrl.u32 %v1245, 7
    %v1247 = vsub.s32 0, %v1246
    %v1248 = vrot.slane %v1243, %v1247
    %v1250 = vadd.f32 %v1240, %v1248
    %v1251 = vadd.f32 %v1241, %v1248
    %v1252 = vand.u32 2147483647, %v1250
    %vm1253 = vcmp.le.f32.partialorder %v1252, 0.7853982
    %vm1254 = vcmp.lt.s32.totalorder %v1250, 0
    %v1255 = vand.u32 %v1250, 2139095040
    %v1256 = vshrl.u32 %v1255, 23
    %v1257 = vsub.s32 %v1256, 127
    %v1258 = vand.u32 2147483647, %v1250
    %v1259 = vand.u32 %v1258, 8388607
    %v1260 = vor.u32 %v1259, 8388608
    %v1261 = vsub.s32 0, %v1260
    %v1262 = vadd.s32 %v1257, 1
    %vm1263 = vcmp.gt.s32.totalorder %v1262, 0
    %v1264 = vsel %vm1263, %v1262, 0
    %v1265 = vshrl.u32 %v1264, 5
    %v1266 = vand.u32 %v1264, 31
    %v1267 = vsub.s32 32, %v1266
    %v1268 = vshrl.u32 683565275, %v1267
    %v1269 = vshll.u32 683565275, %v1266
    %v1270 = vshrl.u32 2475754826, %v1267
    %v1271 = vor.u32 %v1269, %v1270
    %v1272 = vshll.u32 2475754826, %v1266
    %v1273 = vshrl.u32 2131351028, %v1267
    %v1274 = vor.u32 %v1272, %v1273
    %v1275 = vshll.u32 2131351028, %v1266
    %v1276 = vshrl.u32 2102212464, %v1267
    %v1277 = vor.u32 %v1275, %v1276
    %v1278 = vshll.u32 2102212464, %v1266
    %v1279 = vshrl.u32 920167782, %v1267
    %v1280 = vor.u32 %v1278, %v1279
    %v1281 = vshll.u32 920167782, %v1266
    %v1282 = vshrl.u32 1326507024, %v1267
    %v1283 = vor.u32 %v1281, %v1282
    %vm1284 = vcmp.lt.s32.totalorder %v1265, 1
    %vm1285 = vcmp.lt.s32.totalorder %v1265, 2
    %vm1286 = vcmp.lt.s32.totalorder %v1265, 3
    %vm1287 = vcmp.lt.s32.totalorder %v1265, 4
    %v1288 = vsel %vm1284, %v1268, %v1271
    %v1289 = vsel %vm1287, %v1277, 2102212464
    %v1290 = vsel %vm1286, %v1274, %v1289
    %v1291 = vsel %vm1285, %v1288, %v1290
    %v1292 = vsel %vm1284, %v1271, %v1274
    %v1293 = vsel %vm1287, %v1280, 920167782
    %v1294 = vsel %vm1286, %v1277, %v1293
    %v1295 = vsel %vm1285, %v1292, %v1294
    %v1296 = vsel %vm1284, %v1274, %v1277
    %v1297 = vsel %vm1287, %v1283, 1326507024
    %v1298 = vsel %vm1286, %v1280, %v1297
    %v1299 = vsel %vm1285, %v1296, %v1298
    %v1300 = vshll.u32 %v1260, 8
    %v1301 = vmul.u32.u64.compose %v1300, %v1299
    %v1302 = vextract.low.u32 %v1301
    %v1303 = vextract.high.u32 %v1301
    %v1304 = vmul.u32.u64.compose %v1300, %v1295
    %v1305 = vextract.low.u32 %v1304
    %v1306 = vextract.high.u32 %v1304
    %v1307 = vmul.u32 %v1300, %v1291
    %v1308 = vadd.s32 %v1303, %v1305
    %vm1309 = vc.u32 %v1303, %v1305
    %v1310 = vadd.s32 %v1306, 1
    %v1311 = vsel %vm1309, %v1310, %v1306
    %v1312 = vadd.s32 %v1307, %v1311
    %v1313 = vadd.s32 %v1312, 536870912
    %v1314 = vshrl.u32 %v1313, 30
    %v1315 = vshll.u32 %v1314, 30
    %v1316 = vsub.s32 %v1312, %v1315
    %vm1317 = vcmp.lt.s32.totalorder %v1316, 0
    %v1318 = vsub.s32 0, %v1316
    %v1319 = vsel %vm1317, %v1318, %v1316
    %v1320 = vclz %v1319
    %v1321 = vsub.s32 %v1320, 2
    %vm1322 = vcmp.gt.s32.totalorder 0, %v1321
    %v1323 = vsel %vm1322, 0, %v1321
    %v1324 = vsub.s32 32, %v1323
    %v1325 = vshll.u32 %v1316, %v1323
    %v1326 = vshrl.u32 %v1308, %v1324
    %v1327 = vor.u32 %v1325, %v1326
    %v1328 = vsub.s32 4294967266, %v1323
    %v1329 = vadd.s32 %v1328, 127
    %v1330 = vshll.u32 %v1329, 23
    %v1331 = vor.u32 4788187, %v1330
    %v1332 = vand.u32 2147483647, %v1331
    %v1334 = vcvt.s32.f32 %v1327
    %v1335 = vmul.f32 %v1334, %v1332
    %v1336 = vxor.u32 %v1335, 2147483648
    %v1337 = vsel %vm1254, %v1336, %v1335
    %v1338 = vsub.s32 4, %v1314
    %v1339 = vsel %vm1254, %v1338, %v1314
    %v1340 = vsel %vm1253, %v1250, %v1337
    %v1341 = vsel %vm1253, 0, %v1339
    %v1342 = vcosq.f32.pop %v1340
    %v1343 = vsinq.f32.pop %v1340
    %vm1344 = vweird.f32 %v1250
    %v1345 = vand.u32 %v1341, 3
    %vm1346 = vcmp.lt.s32.totalorder %v1345, 2
    %vm1347 = vcmp.eq.s32.totalorder %v1345, 0
    %v1348 = vxor.u32 %v1343, 2147483648
    %v1349 = vsel %vm1347, %v1342, %v1348
    %vm1350 = vcmp.eq.s32.totalorder %v1345, 2
    %v1351 = vxor.u32 %v1342, 2147483648
    %v1352 = vsel %vm1350, %v1351, %v1343
    %v1353 = vsel %vm1346, %v1349, %v1352
    %v1354 = vsel %vm1344, nan, %v1353
    %v1355 = vand.u32 2147483647, %v1251
    %vm1356 = vcmp.le.f32.partialorder %v1355, 0.7853982
    %vm1357 = vcmp.lt.s32.totalorder %v1251, 0
    %v1358 = vand.u32 %v1251, 2139095040
    %v1359 = vshrl.u32 %v1358, 23
    %v1360 = vsub.s32 %v1359, 127
    %v1361 = vand.u32 2147483647, %v1251
    %v1362 = vand.u32 %v1361, 8388607
    %v1363 = vor.u32 %v1362, 8388608
    %v1364 = vsub.s32 0, %v1363
    %v1365 = vadd.s32 %v1360, 1
    %vm1366 = vcmp.gt.s32.totalorder %v1365, 0
    %v1367 = vsel %vm1366, %v1365, 0
    %v1368 = vshrl.u32 %v1367, 5
    %v1369 = vand.u32 %v1367, 31
    %v1370 = vsub.s32 32, %v1369
    %v1371 = vshrl.u32 683565275, %v1370
    %v1372 = vshll.u32 683565275, %v1369
    %v1373 = vshrl.u32 2475754826, %v1370
    %v1374 = vor.u32 %v1372, %v1373
    %v1375 = vshll.u32 2475754826, %v1369
    %v1376 = vshrl.u32 2131351028, %v1370
    %v1377 = vor.u32 %v1375, %v1376
    %v1378 = vshll.u32 2131351028, %v1369
    %v1379 = vshrl.u32 2102212464, %v1370
    %v1380 = vor.u32 %v1378, %v1379
    %v1381 = vshll.u32 2102212464, %v1369
    %v1382 = vshrl.u32 920167782, %v1370
    %v1383 = vor.u32 %v1381, %v1382
    %v1384 = vshll.u32 920167782, %v1369
    %v1385 = vshrl.u32 1326507024, %v1370
    %v1386 = vor.u32 %v1384, %v1385
    %vm1387 = vcmp.lt.s32.totalorder %v1368, 1
    %vm1388 = vcmp.lt.s32.totalorder %v1368, 2
    %vm1389 = vcmp.lt.s32.totalorder %v1368, 3
    %vm1390 = vcmp.lt.s32.totalorder %v1368, 4
    %v1391 = vsel %vm1387, %v1371, %v1374
    %v1392 = vsel %vm1390, %v1380, 2102212464
    %v1393 = vsel %vm1389, %v1377, %v1392
    %v1394 = vsel %vm1388, %v1391, %v1393
    %v1395 = vsel %vm1387, %v1374, %v1377
    %v1396 = vsel %vm1390, %v1383, 920167782
    %v1397 = vsel %vm1389, %v1380, %v1396
    %v1398 = vsel %vm1388, %v1395, %v1397
    %v1399 = vsel %vm1387, %v1377, %v1380
    %v1400 = vsel %vm1390, %v1386, 1326507024
    %v1401 = vsel %vm1389, %v1383, %v1400
    %v1402 = vsel %vm1388, %v1399, %v1401
    %v1403 = vshll.u32 %v1363, 8
    %v1404 = vmul.u32.u64.compose %v1403, %v1402
    %v1405 = vextract.low.u32 %v1404
    %v1406 = vextract.high.u32 %v1404
    %v1407 = vmul.u32.u64.compose %v1403, %v1398
    %v1408 = vextract.low.u32 %v1407
    %v1409 = vextract.high.u32 %v1407
    %v1410 = vmul.u32 %v1403, %v1394
    %v1411 = vadd.s32 %v1406, %v1408
    %vm1412 = vc.u32 %v1406, %v1408
    %v1413 = vadd.s32 %v1409, 1
    %v1414 = vsel %vm1412, %v1413, %v1409
    %v1415 = vadd.s32 %v1410, %v1414
    %v1416 = vadd.s32 %v1415, 536870912
    %v1417 = vshrl.u32 %v1416, 30
    %v1418 = vshll.u32 %v1417, 30
    %v1419 = vsub.s32 %v1415, %v1418
    %vm1420 = vcmp.lt.s32.totalorder %v1419, 0
    %v1421 = vsub.s32 0, %v1419
    %v1422 = vsel %vm1420, %v1421, %v1419
    %v1423 = vclz %v1422
    %v1424 = vsub.s32 %v1423, 2
    %vm1425 = vcmp.gt.s32.totalorder 0, %v1424
    %v1426 = vsel %vm1425, 0, %v1424
    %v1427 = vsub.s32 32, %v1426
    %v1428 = vshll.u32 %v1419, %v1426
    %v1429 = vshrl.u32 %v1411, %v1427
    %v1430 = vor.u32 %v1428, %v1429
    %v1431 = vsub.s32 4294967266, %v1426
    %v1432 = vadd.s32 %v1431, 127
    %v1433 = vshll.u32 %v1432, 23
    %v1434 = vor.u32 4788187, %v1433
    %v1435 = vand.u32 2147483647, %v1434
    %v1437 = vcvt.s32.f32 %v1430
    %v1438 = vmul.f32 %v1437, %v1435
    %v1439 = vxor.u32 %v1438, 2147483648
    %v1440 = vsel %vm1357, %v1439, %v1438
    %v1441 = vsub.s32 4, %v1417
    %v1442 = vsel %vm1357, %v1441, %v1417
    %v1443 = vsel %vm1356, %v1251, %v1440
    %v1444 = vsel %vm1356, 0, %v1442
    %v1445 = vcosq.f32.pop %v1443
    %v1446 = vsinq.f32.pop %v1443
    %vm1447 = vweird.f32 %v1251
    %v1448 = vand.u32 %v1444, 3
    %vm1449 = vcmp.lt.s32.totalorder %v1448, 2
    %vm1450 = vcmp.eq.s32.totalorder %v1448, 0
    %v1451 = vxor.u32 %v1446, 2147483648
    %v1452 = vsel %vm1450, %v1445, %v1451
    %vm1453 = vcmp.eq.s32.totalorder %v1448, 2
    %v1454 = vxor.u32 %v1445, 2147483648
    %v1455 = vsel %vm1453, %v1454, %v1446
    %v1456 = vsel %vm1449, %v1452, %v1455
    %v1457 = vsel %vm1447, nan, %v1456
    %v1458 = vpack.c.bf16 %v1231, %v1230
    %s1459 = scalar_lea.vmem %s23, 64
    %v1460 = vld [vmem:[%s1459] sm:$0xf]
    %v1461 = vld [vmem:[%s1459 + $0x4] sm:$0xf]
    %v1462 = vld [vmem:[%s1459 + $0x8] sm:$0xf]
    %v1463 = vld [vmem:[%s1459 + $0xc] sm:$0xf]
    %v1464 = vld [vmem:[%s1459 + $0x10] sm:$0xf]
    %v1465 = vld [vmem:[%s1459 + $0x14] sm:$0xf]
    %v1466 = vld [vmem:[%s1459 + $0x18] sm:$0xf]
    %v1467 = vld [vmem:[%s1459 + $0x1c] sm:$0xf]
    %v1468 = vld [vmem:[%s1459 + $0x20] sm:$0xf]
    %v1469 = vld [vmem:[%s1459 + $0x24] sm:$0xf]
    %v1470 = vld [vmem:[%s1459 + $0x28] sm:$0xf]
    %v1471 = vld [vmem:[%s1459 + $0x2c] sm:$0xf]
    %v1472 = vld [vmem:[%s1459 + $0x30] sm:$0xf]
    %v1473 = vld [vmem:[%s1459 + $0x34] sm:$0xf]
    %v1474 = vld [vmem:[%s1459 + $0x38] sm:$0xf]
    %v1475 = vld [vmem:[%s1459 + $0x3c] sm:$0xf]
    %v1476 = vpack.c.bf16 %v1457, %v1354
    %s1477 = scalar_lea.vmem [#allocation15], 64
    %v1478 = vld [vmem:[%s1477] sm:$0xf]
    %v1479 = vld [vmem:[%s1477 + $0x4] sm:$0xf]
    %v1480 = vld [vmem:[%s1477 + $0x8] sm:$0xf]
    %v1481 = vld [vmem:[%s1477 + $0xc] sm:$0xf]
    %v1482 = vld [vmem:[%s1477 + $0x10] sm:$0xf]
    %v1483 = vld [vmem:[%s1477 + $0x14] sm:$0xf]
    %v1484 = vld [vmem:[%s1477 + $0x18] sm:$0xf]
    %v1485 = vld [vmem:[%s1477 + $0x1c] sm:$0xf]
    %v1486 = vld [vmem:[%s1477 + $0x20] sm:$0xf]
    %v1487 = vld [vmem:[%s1477 + $0x24] sm:$0xf]
    %v1488 = vld [vmem:[%s1477 + $0x28] sm:$0xf]
    %v1489 = vld [vmem:[%s1477 + $0x2c] sm:$0xf]
    %v1490 = vld [vmem:[%s1477 + $0x30] sm:$0xf]
    %v1491 = vld [vmem:[%s1477 + $0x34] sm:$0xf]
    %v1492 = vld [vmem:[%s1477 + $0x38] sm:$0xf]
    %v1493 = vld [vmem:[%s1477 + $0x3c] sm:$0xf]
    %v1510 = vunpack.c.l.b16 %v1478
    %v1511 = vunpack.c.l.b16 %v1479
    %v1512 = vunpack.c.l.b16 %v1480
    %v1513 = vunpack.c.l.b16 %v1481
    %v1514 = vunpack.c.l.b16 %v1482
    %v1515 = vunpack.c.l.b16 %v1483
    %v1516 = vunpack.c.l.b16 %v1484
    %v1517 = vunpack.c.l.b16 %v1485
    %v1518 = vunpack.c.l.b16 %v1486
    %v1519 = vunpack.c.l.b16 %v1487
    %v1520 = vunpack.c.l.b16 %v1488
    %v1521 = vunpack.c.l.b16 %v1489
    %v1522 = vunpack.c.l.b16 %v1490
    %v1523 = vunpack.c.l.b16 %v1491
    %v1524 = vunpack.c.l.b16 %v1492
    %v1525 = vunpack.c.l.b16 %v1493
    %v1526 = vpack.c.b16 %v1511, %v1510
    %v1527 = vpack.c.b16 %v1513, %v1512
    %v1528 = vpack.c.b16 %v1515, %v1514
    %v1529 = vpack.c.b16 %v1517, %v1516
    %v1530 = vpack.c.b16 %v1519, %v1518
    %v1531 = vpack.c.b16 %v1521, %v1520
    %v1532 = vpack.c.b16 %v1523, %v1522
    %v1533 = vpack.c.b16 %v1525, %v1524
    %1542 = vmatprep.subr.bf16.mxu0 0
    %1543 = vmatpush1.bf16.msra.mxu0 %v1526
    %1544 = vmatprep.subr.bf16.mxu0 0
    %1545 = vmatpush1.bf16.msra.mxu0 %v1527
    %1546 = vmatprep.subr.bf16.mxu0 0
    %1547 = vmatpush1.bf16.msra.mxu0 %v1528
    %1548 = vmatprep.subr.bf16.mxu0 0
    %1549 = vmatpush1.bf16.msra.mxu0 %v1529
    %1550 = vmatprep.subr.bf16.mxu0 0
    %1551 = vmatpush1.bf16.msra.mxu0 %v1530
    %1552 = vmatprep.subr.bf16.mxu0 0
    %1553 = vmatpush1.bf16.msra.mxu0 %v1531
    %1554 = vmatprep.subr.bf16.mxu0 0
    %1555 = vmatpush1.bf16.msra.mxu0 %v1532
    %1556 = vmatprep.subr.bf16.mxu0 0
    %1557 = vmatpush1.bf16.msra.mxu0 %v1533
    %1558 = vmatprep.subr.bf16.mxu0 0
    %1559 = vmatpush1.bf16.msra.mxu0 0
    %1560 = vmatprep.subr.bf16.mxu0 0
    %1561 = vmatpush1.bf16.msra.mxu0 0
    %1562 = vmatprep.subr.bf16.mxu0 0
    %1563 = vmatpush1.bf16.msra.mxu0 0
    %1564 = vmatprep.subr.bf16.mxu0 0
    %1565 = vmatpush1.bf16.msra.mxu0 0
    %1566 = vmatprep.subr.bf16.mxu0 0
    %1567 = vmatpush1.bf16.msra.mxu0 0
    %1568 = vmatprep.subr.bf16.mxu0 0
    %1569 = vmatpush1.bf16.msra.mxu0 0
    %1570 = vmatprep.subr.bf16.mxu0 0
    %1571 = vmatpush1.bf16.msra.mxu0 0
    %1572 = vmatprep.subr.bf16.mxu0 0
    %1573 = vmatpush1.bf16.msra.mxu0 0
    %1574 = vmatprep.mubr.bf16.mxu0 0
    %1575 = vmatmul.mubr.bf16.gmra.mrb[0].mxu0 %v1476
    %v1576 = vpop.f32.mrb[0].mxu0
    %v1577 = vadd.f32 0.0, %v1576
    %v1578 = vpop.f32.mrb[0].mxu0
    %v1579 = vpop.f32.mrb[0].mxu0
    %v1580 = vadd.f32 0.0, %v1579
    %v1581 = vpop.f32.mrb[0].mxu0
    %1582 = vdwg.mxu0
    %v1599 = vunpack.c.l.b16 %v1460
    %v1600 = vunpack.c.l.b16 %v1461
    %v1601 = vunpack.c.l.b16 %v1462
    %v1602 = vunpack.c.l.b16 %v1463
    %v1603 = vunpack.c.l.b16 %v1464
    %v1604 = vunpack.c.l.b16 %v1465
    %v1605 = vunpack.c.l.b16 %v1466
    %v1606 = vunpack.c.l.b16 %v1467
    %v1607 = vunpack.c.l.b16 %v1468
    %v1608 = vunpack.c.l.b16 %v1469
    %v1609 = vunpack.c.l.b16 %v1470
    %v1610 = vunpack.c.l.b16 %v1471
    %v1611 = vunpack.c.l.b16 %v1472
    %v1612 = vunpack.c.l.b16 %v1473
    %v1613 = vunpack.c.l.b16 %v1474
    %v1614 = vunpack.c.l.b16 %v1475
    %v1615 = vpack.c.b16 %v1600, %v1599
    %v1616 = vpack.c.b16 %v1602, %v1601
    %v1617 = vpack.c.b16 %v1604, %v1603
    %v1618 = vpack.c.b16 %v1606, %v1605
    %v1619 = vpack.c.b16 %v1608, %v1607
    %v1620 = vpack.c.b16 %v1610, %v1609
    %v1621 = vpack.c.b16 %v1612, %v1611
    %v1622 = vpack.c.b16 %v1614, %v1613
    %1631 = vmatprep.subr.bf16.mxu0 0
    %1632 = vmatpush1.bf16.msra.mxu0 %v1615
    %1633 = vmatprep.subr.bf16.mxu0 0
    %1634 = vmatpush1.bf16.msra.mxu0 %v1616
    %1635 = vmatprep.subr.bf16.mxu0 0
    %1636 = vmatpush1.bf16.msra.mxu0 %v1617
    %1637 = vmatprep.subr.bf16.mxu0 0
    %1638 = vmatpush1.bf16.msra.mxu0 %v1618
    %1639 = vmatprep.subr.bf16.mxu0 0
    %1640 = vmatpush1.bf16.msra.mxu0 %v1619
    %1641 = vmatprep.subr.bf16.mxu0 0
    %1642 = vmatpush1.bf16.msra.mxu0 %v1620
    %1643 = vmatprep.subr.bf16.mxu0 0
    %1644 = vmatpush1.bf16.msra.mxu0 %v1621
    %1645 = vmatprep.subr.bf16.mxu0 0
    %1646 = vmatpush1.bf16.msra.mxu0 %v1622
    %1647 = vmatprep.subr.bf16.mxu0 0
    %1648 = vmatpush1.bf16.msra.mxu0 0
    %1649 = vmatprep.subr.bf16.mxu0 0
    %1650 = vmatpush1.bf16.msra.mxu0 0
    %1651 = vmatprep.subr.bf16.mxu0 0
    %1652 = vmatpush1.bf16.msra.mxu0 0
    %1653 = vmatprep.subr.bf16.mxu0 0
    %1654 = vmatpush1.bf16.msra.mxu0 0
    %1655 = vmatprep.subr.bf16.mxu0 0
    %1656 = vmatpush1.bf16.msra.mxu0 0
    %1657 = vmatprep.subr.bf16.mxu0 0
    %1658 = vmatpush1.bf16.msra.mxu0 0
    %1659 = vmatprep.subr.bf16.mxu0 0
    %1660 = vmatpush1.bf16.msra.mxu0 0
    %1661 = vmatprep.subr.bf16.mxu0 0
    %1662 = vmatpush1.bf16.msra.mxu0 0
    %1663 = vmatprep.mubr.bf16.mxu0 0
    %1664 = vmatmul.mubr.bf16.gmra.mrb[0].mxu0 %v1458
    %v1665 = vpop.f32.mrb[0].mxu0
    %v1666 = vadd.f32 %v1577, %v1665
    %v1667 = vpop.f32.mrb[0].mxu0
    %v1668 = vpop.f32.mrb[0].mxu0
    %v1669 = vadd.f32 %v1580, %v1668
    %v1670 = vpop.f32.mrb[0].mxu0
    %1671 = vdwg.mxu0
    %s1672 = scalar_lea.vmem [#allocation11], 1
    %v1673 = vld [vmem:[%s1672] sm:$0x1]
    %v1675 = vlaneseq
    %v1676 = vshrl.u32 %v1675, 7
    %v1677 = vsub.s32 0, %v1676
    %v1678 = vrot.slane %v1673, %v1677
    %v1680 = vadd.f32 %v1666, %v1678
    %v1681 = vadd.f32 %v1669, %v1678
    %v1682 = vmax.f32 %v1680, 0.0
    %v1683 = vmax.f32 %v1681, 0.0
    %v1684 = vpack.c.bf16 %v1683, %v1682
    %s1685 = scalar_lea.vmem [#allocation17], 64
    %v1686 = vld [vmem:[%s1685] sm:$0xf]
    %v1687 = vld [vmem:[%s1685 + $0x4] sm:$0xf]
    %v1688 = vld [vmem:[%s1685 + $0x8] sm:$0xf]
    %v1689 = vld [vmem:[%s1685 + $0xc] sm:$0xf]
    %v1690 = vld [vmem:[%s1685 + $0x10] sm:$0xf]
    %v1691 = vld [vmem:[%s1685 + $0x14] sm:$0xf]
    %v1692 = vld [vmem:[%s1685 + $0x18] sm:$0xf]
    %v1693 = vld [vmem:[%s1685 + $0x1c] sm:$0xf]
    %v1694 = vld [vmem:[%s1685 + $0x20] sm:$0xf]
    %v1695 = vld [vmem:[%s1685 + $0x24] sm:$0xf]
    %v1696 = vld [vmem:[%s1685 + $0x28] sm:$0xf]
    %v1697 = vld [vmem:[%s1685 + $0x2c] sm:$0xf]
    %v1698 = vld [vmem:[%s1685 + $0x30] sm:$0xf]
    %v1699 = vld [vmem:[%s1685 + $0x34] sm:$0xf]
    %v1700 = vld [vmem:[%s1685 + $0x38] sm:$0xf]
    %v1701 = vld [vmem:[%s1685 + $0x3c] sm:$0xf]
    %s1702 = scalar_lea.vmem [#allocation12], 1
    %v1703 = vld [vmem:[%s1702] sm:$0x1]
    %v1705 = vlaneseq
    %v1706 = vshrl.u32 %v1705, 7
    %v1707 = vsub.s32 0, %v1706
    %v1708 = vrot.slane %v1703, %v1707
    %v1726 = vunpack.c.l.b16 %v1686
    %v1727 = vunpack.c.l.b16 %v1687
    %v1728 = vunpack.c.l.b16 %v1688
    %v1729 = vunpack.c.l.b16 %v1689
    %v1730 = vunpack.c.l.b16 %v1690
    %v1731 = vunpack.c.l.b16 %v1691
    %v1732 = vunpack.c.l.b16 %v1692
    %v1733 = vunpack.c.l.b16 %v1693
    %v1734 = vunpack.c.l.b16 %v1694
    %v1735 = vunpack.c.l.b16 %v1695
    %v1736 = vunpack.c.l.b16 %v1696
    %v1737 = vunpack.c.l.b16 %v1697
    %v1738 = vunpack.c.l.b16 %v1698
    %v1739 = vunpack.c.l.b16 %v1699
    %v1740 = vunpack.c.l.b16 %v1700
    %v1741 = vunpack.c.l.b16 %v1701
    %v1742 = vpack.c.b16 %v1727, %v1726
    %v1743 = vpack.c.b16 %v1729, %v1728
    %v1744 = vpack.c.b16 %v1731, %v1730
    %v1745 = vpack.c.b16 %v1733, %v1732
    %v1746 = vpack.c.b16 %v1735, %v1734
    %v1747 = vpack.c.b16 %v1737, %v1736
    %v1748 = vpack.c.b16 %v1739, %v1738
    %v1749 = vpack.c.b16 %v1741, %v1740
    %1758 = vmatprep.subr.bf16.mxu0 0
    %1759 = vmatpush1.bf16.msra.mxu0 %v1742
    %1760 = vmatprep.subr.bf16.mxu0 0
    %1761 = vmatpush1.bf16.msra.mxu0 %v1743
    %1762 = vmatprep.subr.bf16.mxu0 0
    %1763 = vmatpush1.bf16.msra.mxu0 %v1744
    %1764 = vmatprep.subr.bf16.mxu0 0
    %1765 = vmatpush1.bf16.msra.mxu0 %v1745
    %1766 = vmatprep.subr.bf16.mxu0 0
    %1767 = vmatpush1.bf16.msra.mxu0 %v1746
    %1768 = vmatprep.subr.bf16.mxu0 0
    %1769 = vmatpush1.bf16.msra.mxu0 %v1747
    %1770 = vmatprep.subr.bf16.mxu0 0
    %1771 = vmatpush1.bf16.msra.mxu0 %v1748
    %1772 = vmatprep.subr.bf16.mxu0 0
    %1773 = vmatpush1.bf16.msra.mxu0 %v1749
    %1774 = vmatprep.subr.bf16.mxu0 0
    %1775 = vmatpush1.bf16.msra.mxu0 0
    %1776 = vmatprep.subr.bf16.mxu0 0
    %1777 = vmatpush1.bf16.msra.mxu0 0
    %1778 = vmatprep.subr.bf16.mxu0 0
    %1779 = vmatpush1.bf16.msra.mxu0 0
    %1780 = vmatprep.subr.bf16.mxu0 0
    %1781 = vmatpush1.bf16.msra.mxu0 0
    %1782 = vmatprep.subr.bf16.mxu0 0
    %1783 = vmatpush1.bf16.msra.mxu0 0
    %1784 = vmatprep.subr.bf16.mxu0 0
    %1785 = vmatpush1.bf16.msra.mxu0 0
    %1786 = vmatprep.subr.bf16.mxu0 0
    %1787 = vmatpush1.bf16.msra.mxu0 0
    %1788 = vmatprep.subr.bf16.mxu0 0
    %1789 = vmatpush1.bf16.msra.mxu0 0
    %1790 = vmatprep.mubr.bf16.mxu0 0
    %1791 = vmatmul.mubr.bf16.gmra.mrb[0].mxu0 %v807
    %v1792 = vpop.f32.mrb[0].mxu0
    %v1793 = vadd.f32 %v1708, %v1792
    %v1794 = vpop.f32.mrb[0].mxu0
    %v1795 = vpop.f32.mrb[0].mxu0
    %v1796 = vadd.f32 %v1708, %v1795
    %v1797 = vpop.f32.mrb[0].mxu0
    %1798 = vdwg.mxu0
    %1799 = vmatprep.subr.bf16.mxu0 0
    %1800 = vmatpush1.bf16.msra.mxu0 %v1684
    %1801 = vmatprep.subr.bf16.mxu0 0
    %1802 = vmatpush1.bf16.msra.mxu0 0
    %1803 = vmatprep.subr.bf16.mxu0 0
    %1804 = vmatpush1.bf16.msra.mxu0 0
    %1805 = vmatprep.subr.bf16.mxu0 0
    %1806 = vmatpush1.bf16.msra.mxu0 0
    %1807 = vmatprep.subr.bf16.mxu0 0
    %1808 = vmatpush1.bf16.msra.mxu0 0
    %1809 = vmatprep.subr.bf16.mxu0 0
    %1810 = vmatpush1.bf16.msra.mxu0 0
    %1811 = vmatprep.subr.bf16.mxu0 0
    %1812 = vmatpush1.bf16.msra.mxu0 0
    %1813 = vmatprep.subr.bf16.mxu0 0
    %1814 = vmatpush1.bf16.msra.mxu0 0
    %1815 = vmatprep.subr.bf16.mxu0 0
    %1816 = vmatpush1.bf16.msra.mxu0 0
    %1817 = vmatprep.subr.bf16.mxu0 0
    %1818 = vmatpush1.bf16.msra.mxu0 0
    %1819 = vmatprep.subr.bf16.mxu0 0
    %1820 = vmatpush1.bf16.msra.mxu0 0
    %1821 = vmatprep.subr.bf16.mxu0 0
    %1822 = vmatpush1.bf16.msra.mxu0 0
    %1823 = vmatprep.subr.bf16.mxu0 0
    %1824 = vmatpush1.bf16.msra.mxu0 0
    %1825 = vmatprep.subr.bf16.mxu0 0
    %1826 = vmatpush1.bf16.msra.mxu0 0
    %1827 = vmatprep.subr.bf16.mxu0 0
    %1828 = vmatpush1.bf16.msra.mxu0 0
    %1829 = vmatprep.subr.bf16.mxu0 0
    %1830 = vmatpush1.bf16.msra.mxu0 0
    %1831 = vmatprep.mubr.bf16.mxu0 0
    %1832 = vmatmul.mubr.bf16.gmra.mrb[0].mxu0 %v905
    %v1833 = vpop.f32.mrb[0].mxu0
    %v1834 = vadd.f32 %v1793, %v1833
    %v1835 = vpop.f32.mrb[0].mxu0
    %v1836 = vpop.f32.mrb[0].mxu0
    %v1837 = vadd.f32 %v1796, %v1836
    %v1838 = vpop.f32.mrb[0].mxu0
    %1839 = vdwg.mxu0
    %v1840 = vpack.c.bf16 %v1837, %v1834
    %1841 = vmatprep.subr.bf16.mxu0 0
    %1842 = vmatpush1.bf16.msra.mxu0 %v1840
    %1843 = vmatprep.subr.bf16.mxu0 0
    %1844 = vmatpush1.bf16.msra.mxu0 0
    %1845 = vmatprep.subr.bf16.mxu0 0
    %1846 = vmatpush1.bf16.msra.mxu0 0
    %1847 = vmatprep.subr.bf16.mxu0 0
    %1848 = vmatpush1.bf16.msra.mxu0 0
    %1849 = vmatprep.subr.bf16.mxu0 0
    %1850 = vmatpush1.bf16.msra.mxu0 0
    %1851 = vmatprep.subr.bf16.mxu0 0
    %1852 = vmatpush1.bf16.msra.mxu0 0
    %1853 = vmatprep.subr.bf16.mxu0 0
    %1854 = vmatpush1.bf16.msra.mxu0 0
    %1855 = vmatprep.subr.bf16.mxu0 0
    %1856 = vmatpush1.bf16.msra.mxu0 0
    %1857 = vmatprep.subr.bf16.mxu0 0
    %1858 = vmatpush1.bf16.msra.mxu0 0
    %1859 = vmatprep.subr.bf16.mxu0 0
    %1860 = vmatpush1.bf16.msra.mxu0 0
    %1861 = vmatprep.subr.bf16.mxu0 0
    %1862 = vmatpush1.bf16.msra.mxu0 0
    %1863 = vmatprep.subr.bf16.mxu0 0
    %1864 = vmatpush1.bf16.msra.mxu0 0
    %1865 = vmatprep.subr.bf16.mxu0 0
    %1866 = vmatpush1.bf16.msra.mxu0 0
    %1867 = vmatprep.subr.bf16.mxu0 0
    %1868 = vmatpush1.bf16.msra.mxu0 0
    %1869 = vmatprep.subr.bf16.mxu0 0
    %1870 = vmatpush1.bf16.msra.mxu0 0
    %1871 = vmatprep.subr.bf16.mxu0 0
    %1872 = vmatpush1.bf16.msra.mxu0 0
    %1873 = vmatprep.mubr.bf16.mxu0 0
    %1874 = vmatmul.mubr.bf16.gmra.mrb[0].mxu0 %v955
    %v1875 = vpop.f32.mrb[0].mxu0
    %v1876 = vadd.f32 0.0, %v1875
    %v1877 = vpop.f32.mrb[0].mxu0
    %v1878 = vpop.f32.mrb[0].mxu0
    %v1879 = vadd.f32 0.0, %v1878
    %v1880 = vpop.f32.mrb[0].mxu0
    %1881 = vdwg.mxu0
    %v1882 = vmul.f32 %v1876, %v1001
    %v1883 = vmul.f32 %v1879, %v1006
    %s1884 = scalar_lea.vmem [#allocation18], 64
    %v1885 = vld [vmem:[%s1884] sm:$0xf]
    %v1886 = vld [vmem:[%s1884 + $0x4] sm:$0xf]
    %v1887 = vld [vmem:[%s1884 + $0x8] sm:$0xf]
    %v1888 = vld [vmem:[%s1884 + $0xc] sm:$0xf]
    %v1889 = vld [vmem:[%s1884 + $0x10] sm:$0xf]
    %v1890 = vld [vmem:[%s1884 + $0x14] sm:$0xf]
    %v1891 = vld [vmem:[%s1884 + $0x18] sm:$0xf]
    %v1892 = vld [vmem:[%s1884 + $0x1c] sm:$0xf]
    %v1893 = vld [vmem:[%s1884 + $0x20] sm:$0xf]
    %v1894 = vld [vmem:[%s1884 + $0x24] sm:$0xf]
    %v1895 = vld [vmem:[%s1884 + $0x28] sm:$0xf]
    %v1896 = vld [vmem:[%s1884 + $0x2c] sm:$0xf]
    %v1897 = vld [vmem:[%s1884 + $0x30] sm:$0xf]
    %v1898 = vld [vmem:[%s1884 + $0x34] sm:$0xf]
    %v1899 = vld [vmem:[%s1884 + $0x38] sm:$0xf]
    %v1900 = vld [vmem:[%s1884 + $0x3c] sm:$0xf]
    %v1901 = vpack.c.bf16 %v1883, %v1882
    %s1902 = scalar_lea.vmem [#allocation20], 64
    %v1903 = vld [vmem:[%s1902] sm:$0xf]
    %v1904 = vld [vmem:[%s1902 + $0x4] sm:$0xf]
    %v1905 = vld [vmem:[%s1902 + $0x8] sm:$0xf]
    %v1906 = vld [vmem:[%s1902 + $0xc] sm:$0xf]
    %v1907 = vld [vmem:[%s1902 + $0x10] sm:$0xf]
    %v1908 = vld [vmem:[%s1902 + $0x14] sm:$0xf]
    %v1909 = vld [vmem:[%s1902 + $0x18] sm:$0xf]
    %v1910 = vld [vmem:[%s1902 + $0x1c] sm:$0xf]
    %v1911 = vld [vmem:[%s1902 + $0x20] sm:$0xf]
    %v1912 = vld [vmem:[%s1902 + $0x24] sm:$0xf]
    %v1913 = vld [vmem:[%s1902 + $0x28] sm:$0xf]
    %v1914 = vld [vmem:[%s1902 + $0x2c] sm:$0xf]
    %v1915 = vld [vmem:[%s1902 + $0x30] sm:$0xf]
    %v1916 = vld [vmem:[%s1902 + $0x34] sm:$0xf]
    %v1917 = vld [vmem:[%s1902 + $0x38] sm:$0xf]
    %v1918 = vld [vmem:[%s1902 + $0x3c] sm:$0xf]
    %v1935 = vunpack.c.l.b16 %v1903
    %v1936 = vunpack.c.l.b16 %v1904
    %v1937 = vunpack.c.l.b16 %v1905
    %v1938 = vunpack.c.l.b16 %v1906
    %v1939 = vunpack.c.l.b16 %v1907
    %v1940 = vunpack.c.l.b16 %v1908
    %v1941 = vunpack.c.l.b16 %v1909
    %v1942 = vunpack.c.l.b16 %v1910
    %v1943 = vunpack.c.l.b16 %v1911
    %v1944 = vunpack.c.l.b16 %v1912
    %v1945 = vunpack.c.l.b16 %v1913
    %v1946 = vunpack.c.l.b16 %v1914
    %v1947 = vunpack.c.l.b16 %v1915
    %v1948 = vunpack.c.l.b16 %v1916
    %v1949 = vunpack.c.l.b16 %v1917
    %v1950 = vunpack.c.l.b16 %v1918
    %v1951 = vpack.c.b16 %v1936, %v1935
    %v1952 = vpack.c.b16 %v1938, %v1937
    %v1953 = vpack.c.b16 %v1940, %v1939
    %v1954 = vpack.c.b16 %v1942, %v1941
    %v1955 = vpack.c.b16 %v1944, %v1943
    %v1956 = vpack.c.b16 %v1946, %v1945
    %v1957 = vpack.c.b16 %v1948, %v1947
    %v1958 = vpack.c.b16 %v1950, %v1949
    %1967 = vmatprep.subr.bf16.mxu0 0
    %1968 = vmatpush1.bf16.msra.mxu0 %v1951
    %1969 = vmatprep.subr.bf16.mxu0 0
    %1970 = vmatpush1.bf16.msra.mxu0 %v1952
    %1971 = vmatprep.subr.bf16.mxu0 0
    %1972 = vmatpush1.bf16.msra.mxu0 %v1953
    %1973 = vmatprep.subr.bf16.mxu0 0
    %1974 = vmatpush1.bf16.msra.mxu0 %v1954
    %1975 = vmatprep.subr.bf16.mxu0 0
    %1976 = vmatpush1.bf16.msra.mxu0 %v1955
    %1977 = vmatprep.subr.bf16.mxu0 0
    %1978 = vmatpush1.bf16.msra.mxu0 %v1956
    %1979 = vmatprep.subr.bf16.mxu0 0
    %1980 = vmatpush1.bf16.msra.mxu0 %v1957
    %1981 = vmatprep.subr.bf16.mxu0 0
    %1982 = vmatpush1.bf16.msra.mxu0 %v1958
    %1983 = vmatprep.subr.bf16.mxu0 0
    %1984 = vmatpush1.bf16.msra.mxu0 0
    %1985 = vmatprep.subr.bf16.mxu0 0
    %1986 = vmatpush1.bf16.msra.mxu0 0
    %1987 = vmatprep.subr.bf16.mxu0 0
    %1988 = vmatpush1.bf16.msra.mxu0 0
    %1989 = vmatprep.subr.bf16.mxu0 0
    %1990 = vmatpush1.bf16.msra.mxu0 0
    %1991 = vmatprep.subr.bf16.mxu0 0
    %1992 = vmatpush1.bf16.msra.mxu0 0
    %1993 = vmatprep.subr.bf16.mxu0 0
    %1994 = vmatpush1.bf16.msra.mxu0 0
    %1995 = vmatprep.subr.bf16.mxu0 0
    %1996 = vmatpush1.bf16.msra.mxu0 0
    %1997 = vmatprep.subr.bf16.mxu0 0
    %1998 = vmatpush1.bf16.msra.mxu0 0
    %1999 = vmatprep.mubr.bf16.mxu0 0
    %2000 = vmatmul.mubr.bf16.gmra.mrb[0].mxu0 %v1901
    %v2001 = vpop.f32.mrb[0].mxu0
    %v2002 = vadd.f32 0.0, %v2001
    %v2003 = vpop.f32.mrb[0].mxu0
    %v2004 = vpop.f32.mrb[0].mxu0
    %v2005 = vadd.f32 0.0, %v2004
    %v2006 = vpop.f32.mrb[0].mxu0
    %2007 = vdwg.mxu0
    %v2024 = vunpack.c.l.b16 %v1885
    %v2025 = vunpack.c.l.b16 %v1886
    %v2026 = vunpack.c.l.b16 %v1887
    %v2027 = vunpack.c.l.b16 %v1888
    %v2028 = vunpack.c.l.b16 %v1889
    %v2029 = vunpack.c.l.b16 %v1890
    %v2030 = vunpack.c.l.b16 %v1891
    %v2031 = vunpack.c.l.b16 %v1892
    %v2032 = vunpack.c.l.b16 %v1893
    %v2033 = vunpack.c.l.b16 %v1894
    %v2034 = vunpack.c.l.b16 %v1895
    %v2035 = vunpack.c.l.b16 %v1896
    %v2036 = vunpack.c.l.b16 %v1897
    %v2037 = vunpack.c.l.b16 %v1898
    %v2038 = vunpack.c.l.b16 %v1899
    %v2039 = vunpack.c.l.b16 %v1900
    %v2040 = vpack.c.b16 %v2025, %v2024
    %v2041 = vpack.c.b16 %v2027, %v2026
    %v2042 = vpack.c.b16 %v2029, %v2028
    %v2043 = vpack.c.b16 %v2031, %v2030
    %v2044 = vpack.c.b16 %v2033, %v2032
    %v2045 = vpack.c.b16 %v2035, %v2034
    %v2046 = vpack.c.b16 %v2037, %v2036
    %v2047 = vpack.c.b16 %v2039, %v2038
    %2056 = vmatprep.subr.bf16.mxu0 0
    %2057 = vmatpush1.bf16.msra.mxu0 %v2040
    %2058 = vmatprep.subr.bf16.mxu0 0
    %2059 = vmatpush1.bf16.msra.mxu0 %v2041
    %2060 = vmatprep.subr.bf16.mxu0 0
    %2061 = vmatpush1.bf16.msra.mxu0 %v2042
    %2062 = vmatprep.subr.bf16.mxu0 0
    %2063 = vmatpush1.bf16.msra.mxu0 %v2043
    %2064 = vmatprep.subr.bf16.mxu0 0
    %2065 = vmatpush1.bf16.msra.mxu0 %v2044
    %2066 = vmatprep.subr.bf16.mxu0 0
    %2067 = vmatpush1.bf16.msra.mxu0 %v2045
    %2068 = vmatprep.subr.bf16.mxu0 0
    %2069 = vmatpush1.bf16.msra.mxu0 %v2046
    %2070 = vmatprep.subr.bf16.mxu0 0
    %2071 = vmatpush1.bf16.msra.mxu0 %v2047
    %2072 = vmatprep.subr.bf16.mxu0 0
    %2073 = vmatpush1.bf16.msra.mxu0 0
    %2074 = vmatprep.subr.bf16.mxu0 0
    %2075 = vmatpush1.bf16.msra.mxu0 0
    %2076 = vmatprep.subr.bf16.mxu0 0
    %2077 = vmatpush1.bf16.msra.mxu0 0
    %2078 = vmatprep.subr.bf16.mxu0 0
    %2079 = vmatpush1.bf16.msra.mxu0 0
    %2080 = vmatprep.subr.bf16.mxu0 0
    %2081 = vmatpush1.bf16.msra.mxu0 0
    %2082 = vmatprep.subr.bf16.mxu0 0
    %2083 = vmatpush1.bf16.msra.mxu0 0
    %2084 = vmatprep.subr.bf16.mxu0 0
    %2085 = vmatpush1.bf16.msra.mxu0 0
    %2086 = vmatprep.subr.bf16.mxu0 0
    %2087 = vmatpush1.bf16.msra.mxu0 0
    %2088 = vmatprep.mubr.bf16.mxu0 0
    %2089 = vmatmul.mubr.bf16.gmra.mrb[0].mxu0 %v1684
    %v2090 = vpop.f32.mrb[0].mxu0
    %v2091 = vadd.f32 %v2002, %v2090
    %v2092 = vpop.f32.mrb[0].mxu0
    %v2093 = vpop.f32.mrb[0].mxu0
    %v2094 = vadd.f32 %v2005, %v2093
    %v2095 = vpop.f32.mrb[0].mxu0
    %2096 = vdwg.mxu0
    %s2097 = scalar_lea.vmem [#allocation14], 1
    %v2098 = vld [vmem:[%s2097] sm:$0x1]
    %v2100 = vlaneseq
    %v2101 = vshrl.u32 %v2100, 7
    %v2102 = vsub.s32 0, %v2101
    %v2103 = vrot.slane %v2098, %v2102
    %v2105 = vadd.f32 %v2091, %v2103
    %v2106 = vadd.f32 %v2094, %v2103
    %v2107 = vmax.f32 %v2105, 0.0
    %v2108 = vmax.f32 %v2106, 0.0
    %v2109 = vlaneseq
    %v2110 = vand.u32 %v2109, 127
    %vm2111 = vcmp.lt.s32.totalorder %v2110, 32
    %v2112 = vsel %vm2111, 1, 0
    %v2113 = vcvt.s32.f32 %v2112
    %2114 = vadd.xlane.f32.xlu0 %v2107
    %v2115 = vpop.xlane.xlu0 %2114
    %2116 = vadd.xlane.f32.xlu0 %v2108
    %v2117 = vpop.xlane.xlu0 %2116
    %v2118 = vmul.f32 %v2115, 0.03125
    %v2119 = vmul.f32 %v2117, 0.03125
    %v2120 = vsub.f32 %v2107, %v2118
    %v2121 = vsub.f32 %v2108, %v2119
    %v2122 = vmul.f32 %v2120, %v2113
    %v2123 = vmul.f32 %v2121, %v2113
    %v2124 = vmul.f32 %v2122, %v2122
    %v2125 = vmul.f32 %v2123, %v2123
    %2126 = vadd.xlane.f32.xlu0 %v2124
    %v2127 = vpop.xlane.xlu0 %2126
    %2128 = vadd.xlane.f32.xlu0 %v2125
    %v2129 = vpop.xlane.xlu0 %2128
    %v2130 = vmul.f32 %v2127, 0.03125
    %v2131 = vmul.f32 %v2129, 0.03125
    %v2132 = vadd.f32 %v2130, 1e-05
    %v2133 = vadd.f32 %v2131, 1e-05
    %v2134 = vrsqrt.pop %v2132
    %v2135 = vrsqrt.pop %v2133
    %v2136 = vmul.f32 %v2122, %v2134
    %v2137 = vmul.f32 %v2123, %v2135
    %v2138 = vld [vmem:[%s33] sm:$0x1]
    %v2140 = vlaneseq
    %v2141 = vshrl.u32 %v2140, 7
    %v2142 = vsub.s32 0, %v2141
    %v2143 = vrot.slane %v2138, %v2142
    %v2145 = vmul.f32 %v2136, %v2143
    %v2146 = vmul.f32 %v2137, %v2143
    %v2147 = vld [vmem:[%s35] sm:$0x1]
    %v2149 = vlaneseq
    %v2150 = vshrl.u32 %v2149, 7
    %v2151 = vsub.s32 0, %v2150
    %v2152 = vrot.slane %v2147, %v2151
    %v2154 = vadd.f32 %v2145, %v2152
    %v2155 = vadd.f32 %v2146, %v2152
    %v2156 = vpack.c.bf16 %v2155, %v2154
    %v2157 = vld [vmem:[%s51] sm:$0xf]
    %v2158 = vld [vmem:[%s51 + $0x4] sm:$0xf]
    %v2161 = vunpack.c.l.b16 %v2157
    %v2162 = vunpack.c.l.b16 %v2158
    %v2163 = vpack.c.b16 %v2162, %v2161
    %v2165 = vsel %vm903, %v2163, 0
    %2167 = vmatprep.subr.bf16.mxu0 0
    %2168 = vmatpush1.bf16.msra.mxu0 %v2156
    %2169 = vmatprep.subr.bf16.mxu0 0
    %2170 = vmatpush1.bf16.msra.mxu0 0
    %2171 = vmatprep.subr.bf16.mxu0 0
    %2172 = vmatpush1.bf16.msra.mxu0 0
    %2173 = vmatprep.subr.bf16.mxu0 0
    %2174 = vmatpush1.bf16.msra.mxu0 0
    %2175 = vmatprep.subr.bf16.mxu0 0
    %2176 = vmatpush1.bf16.msra.mxu0 0
    %2177 = vmatprep.subr.bf16.mxu0 0
    %2178 = vmatpush1.bf16.msra.mxu0 0
    %2179 = vmatprep.subr.bf16.mxu0 0
    %2180 = vmatpush1.bf16.msra.mxu0 0
    %2181 = vmatprep.subr.bf16.mxu0 0
    %2182 = vmatpush1.bf16.msra.mxu0 0
    %2183 = vmatprep.subr.bf16.mxu0 0
    %2184 = vmatpush1.bf16.msra.mxu0 0
    %2185 = vmatprep.subr.bf16.mxu0 0
    %2186 = vmatpush1.bf16.msra.mxu0 0
    %2187 = vmatprep.subr.bf16.mxu0 0
    %2188 = vmatpush1.bf16.msra.mxu0 0
    %2189 = vmatprep.subr.bf16.mxu0 0
    %2190 = vmatpush1.bf16.msra.mxu0 0
    %2191 = vmatprep.subr.bf16.mxu0 0
    %2192 = vmatpush1.bf16.msra.mxu0 0
    %2193 = vmatprep.subr.bf16.mxu0 0
    %2194 = vmatpush1.bf16.msra.mxu0 0
    %2195 = vmatprep.subr.bf16.mxu0 0
    %2196 = vmatpush1.bf16.msra.mxu0 0
    %2197 = vmatprep.subr.bf16.mxu0 0
    %2198 = vmatpush1.bf16.msra.mxu0 0
    %2199 = vmatprep.mubr.bf16.mxu0 0
    %2200 = vmatmul.mubr.bf16.gmra.mrb[0].mxu0 %v2165
    %v2201 = vpop.f32.mrb[0].mxu0
    %v2202 = vadd.f32 0.0, %v2201
    %v2203 = vpop.f32.mrb[0].mxu0
    %v2204 = vpop.f32.mrb[0].mxu0
    %v2205 = vadd.f32 0.0, %v2204
    %v2206 = vpop.f32.mrb[0].mxu0
    %2207 = vdwg.mxu0
    %v2208 = vld [vmem:[%s53] sm:$0xf]
    %v2209 = vld [vmem:[%s53 + $0x4] sm:$0xf]
    %v2212 = vunpack.c.l.b16 %v2208
    %v2213 = vunpack.c.l.b16 %v2209
    %v2214 = vpack.c.b16 %v2213, %v2212
    %v2216 = vsel %vm903, %v2214, 0
    %2218 = vmatprep.subr.bf16.mxu0 0
    %2219 = vmatpush1.bf16.msra.mxu0 %v2156
    %2220 = vmatprep.subr.bf16.mxu0 0
    %2221 = vmatpush1.bf16.msra.mxu0 0
    %2222 = vmatprep.subr.bf16.mxu0 0
    %2223 = vmatpush1.bf16.msra.mxu0 0
    %2224 = vmatprep.subr.bf16.mxu0 0
    %2225 = vmatpush1.bf16.msra.mxu0 0
    %2226 = vmatprep.subr.bf16.mxu0 0
    %2227 = vmatpush1.bf16.msra.mxu0 0
    %2228 = vmatprep.subr.bf16.mxu0 0
    %2229 = vmatpush1.bf16.msra.mxu0 0
    %2230 = vmatprep.subr.bf16.mxu0 0
    %2231 = vmatpush1.bf16.msra.mxu0 0
    %2232 = vmatprep.subr.bf16.mxu0 0
    %2233 = vmatpush1.bf16.msra.mxu0 0
    %2234 = vmatprep.subr.bf16.mxu0 0
    %2235 = vmatpush1.bf16.msra.mxu0 0
    %2236 = vmatprep.subr.bf16.mxu0 0
    %2237 = vmatpush1.bf16.msra.mxu0 0
    %2238 = vmatprep.subr.bf16.mxu0 0
    %2239 = vmatpush1.bf16.msra.mxu0 0
    %2240 = vmatprep.subr.bf16.mxu0 0
    %2241 = vmatpush1.bf16.msra.mxu0 0
    %2242 = vmatprep.subr.bf16.mxu0 0
    %2243 = vmatpush1.bf16.msra.mxu0 0
    %2244 = vmatprep.subr.bf16.mxu0 0
    %2245 = vmatpush1.bf16.msra.mxu0 0
    %2246 = vmatprep.subr.bf16.mxu0 0
    %2247 = vmatpush1.bf16.msra.mxu0 0
    %2248 = vmatprep.subr.bf16.mxu0 0
    %2249 = vmatpush1.bf16.msra.mxu0 0
    %2250 = vmatprep.mubr.bf16.mxu0 0
    %2251 = vmatmul.mubr.bf16.gmra.mrb[0].mxu0 %v2216
    %v2252 = vpop.f32.mrb[0].mxu0
    %v2253 = vadd.f32 0.0, %v2252
    %v2254 = vpop.f32.mrb[0].mxu0
    %v2255 = vpop.f32.mrb[0].mxu0
    %v2256 = vadd.f32 0.0, %v2255
    %v2257 = vpop.f32.mrb[0].mxu0
    %2258 = vdwg.mxu0
    %v2259 = vld [vmem:[%s55] sm:$0xff]
    %v2260 = vld [vmem:[%s55 + $0x8] sm:$0xff]
    %v2261 = vld [vmem:[%s37] sm:$0x1]
    %2263 = vset.pattern.permute.xlu0 0
    %2264 = vperm.xlu0 %2263, %v2259
    %v2265 = vpop.permute.xlu0 %2264
    %2268 = vset.pattern.permute.xlu0 0
    %2269 = vperm.xlu0 %2268, %v2260
    %v2270 = vpop.permute.xlu0 %2269
    %v2273 = vlaneseq
    %v2274 = vshrl.u32 %v2273, 7
    %v2275 = vsub.s32 0, %v2274
    %v2276 = vrot.slane %v2261, %v2275
    %v2278 = vmul.f32 %v2265, %v2276
    %v2279 = vmul.f32 %v2270, %v2276
    %v2280 = vld [vmem:[%s39] sm:$0x1]
    %v2282 = vlaneseq
    %v2283 = vshrl.u32 %v2282, 7
    %v2284 = vsub.s32 0, %v2283
    %v2285 = vrot.slane %v2280, %v2284
    %v2287 = vadd.f32 %v2278, %v2285
    %v2288 = vadd.f32 %v2279, %v2285
    %v2289 = vand.u32 2147483647, %v2287
    %vm2290 = vcmp.le.f32.partialorder %v2289, 0.7853982
    %vm2291 = vcmp.lt.s32.totalorder %v2287, 0
    %v2292 = vand.u32 %v2287, 2139095040
    %v2293 = vshrl.u32 %v2292, 23
    %v2294 = vsub.s32 %v2293, 127
    %v2295 = vand.u32 2147483647, %v2287
    %v2296 = vand.u32 %v2295, 8388607
    %v2297 = vor.u32 %v2296, 8388608
    %v2298 = vsub.s32 0, %v2297
    %v2299 = vadd.s32 %v2294, 1
    %vm2300 = vcmp.gt.s32.totalorder %v2299, 0
    %v2301 = vsel %vm2300, %v2299, 0
    %v2302 = vshrl.u32 %v2301, 5
    %v2303 = vand.u32 %v2301, 31
    %v2304 = vsub.s32 32, %v2303
    %v2305 = vshrl.u32 683565275, %v2304
    %v2306 = vshll.u32 683565275, %v2303
    %v2307 = vshrl.u32 2475754826, %v2304
    %v2308 = vor.u32 %v2306, %v2307
    %v2309 = vshll.u32 2475754826, %v2303
    %v2310 = vshrl.u32 2131351028, %v2304
    %v2311 = vor.u32 %v2309, %v2310
    %v2312 = vshll.u32 2131351028, %v2303
    %v2313 = vshrl.u32 2102212464, %v2304
    %v2314 = vor.u32 %v2312, %v2313
    %v2315 = vshll.u32 2102212464, %v2303
    %v2316 = vshrl.u32 920167782, %v2304
    %v2317 = vor.u32 %v2315, %v2316
    %v2318 = vshll.u32 920167782, %v2303
    %v2319 = vshrl.u32 1326507024, %v2304
    %v2320 = vor.u32 %v2318, %v2319
    %vm2321 = vcmp.lt.s32.totalorder %v2302, 1
    %vm2322 = vcmp.lt.s32.totalorder %v2302, 2
    %vm2323 = vcmp.lt.s32.totalorder %v2302, 3
    %vm2324 = vcmp.lt.s32.totalorder %v2302, 4
    %v2325 = vsel %vm2321, %v2305, %v2308
    %v2326 = vsel %vm2324, %v2314, 2102212464
    %v2327 = vsel %vm2323, %v2311, %v2326
    %v2328 = vsel %vm2322, %v2325, %v2327
    %v2329 = vsel %vm2321, %v2308, %v2311
    %v2330 = vsel %vm2324, %v2317, 920167782
    %v2331 = vsel %vm2323, %v2314, %v2330
    %v2332 = vsel %vm2322, %v2329, %v2331
    %v2333 = vsel %vm2321, %v2311, %v2314
    %v2334 = vsel %vm2324, %v2320, 1326507024
    %v2335 = vsel %vm2323, %v2317, %v2334
    %v2336 = vsel %vm2322, %v2333, %v2335
    %v2337 = vshll.u32 %v2297, 8
    %v2338 = vmul.u32.u64.compose %v2337, %v2336
    %v2339 = vextract.low.u32 %v2338
    %v2340 = vextract.high.u32 %v2338
    %v2341 = vmul.u32.u64.compose %v2337, %v2332
    %v2342 = vextract.low.u32 %v2341
    %v2343 = vextract.high.u32 %v2341
    %v2344 = vmul.u32 %v2337, %v2328
    %v2345 = vadd.s32 %v2340, %v2342
    %vm2346 = vc.u32 %v2340, %v2342
    %v2347 = vadd.s32 %v2343, 1
    %v2348 = vsel %vm2346, %v2347, %v2343
    %v2349 = vadd.s32 %v2344, %v2348
    %v2350 = vadd.s32 %v2349, 536870912
    %v2351 = vshrl.u32 %v2350, 30
    %v2352 = vshll.u32 %v2351, 30
    %v2353 = vsub.s32 %v2349, %v2352
    %vm2354 = vcmp.lt.s32.totalorder %v2353, 0
    %v2355 = vsub.s32 0, %v2353
    %v2356 = vsel %vm2354, %v2355, %v2353
    %v2357 = vclz %v2356
    %v2358 = vsub.s32 %v2357, 2
    %vm2359 = vcmp.gt.s32.totalorder 0, %v2358
    %v2360 = vsel %vm2359, 0, %v2358
    %v2361 = vsub.s32 32, %v2360
    %v2362 = vshll.u32 %v2353, %v2360
    %v2363 = vshrl.u32 %v2345, %v2361
    %v2364 = vor.u32 %v2362, %v2363
    %v2365 = vsub.s32 4294967266, %v2360
    %v2366 = vadd.s32 %v2365, 127
    %v2367 = vshll.u32 %v2366, 23
    %v2368 = vor.u32 4788187, %v2367
    %v2369 = vand.u32 2147483647, %v2368
    %v2371 = vcvt.s32.f32 %v2364
    %v2372 = vmul.f32 %v2371, %v2369
    %v2373 = vxor.u32 %v2372, 2147483648
    %v2374 = vsel %vm2291, %v2373, %v2372
    %v2375 = vsub.s32 4, %v2351
    %v2376 = vsel %vm2291, %v2375, %v2351
    %v2377 = vsel %vm2290, %v2287, %v2374
    %v2378 = vsel %vm2290, 0, %v2376
    %v2379 = vcosq.f32.pop %v2377
    %v2380 = vsinq.f32.pop %v2377
    %vm2381 = vweird.f32 %v2287
    %v2382 = vand.u32 %v2378, 3
    %vm2383 = vcmp.lt.s32.totalorder %v2382, 2
    %vm2384 = vcmp.eq.s32.totalorder %v2382, 0
    %v2385 = vxor.u32 %v2380, 2147483648
    %v2386 = vsel %vm2384, %v2379, %v2385
    %vm2387 = vcmp.eq.s32.totalorder %v2382, 2
    %v2388 = vxor.u32 %v2379, 2147483648
    %v2389 = vsel %vm2387, %v2388, %v2380
    %v2390 = vsel %vm2383, %v2386, %v2389
    %v2391 = vsel %vm2381, nan, %v2390
    %v2392 = vand.u32 2147483647, %v2288
    %vm2393 = vcmp.le.f32.partialorder %v2392, 0.7853982
    %vm2394 = vcmp.lt.s32.totalorder %v2288, 0
    %v2395 = vand.u32 %v2288, 2139095040
    %v2396 = vshrl.u32 %v2395, 23
    %v2397 = vsub.s32 %v2396, 127
    %v2398 = vand.u32 2147483647, %v2288
    %v2399 = vand.u32 %v2398, 8388607
    %v2400 = vor.u32 %v2399, 8388608
    %v2401 = vsub.s32 0, %v2400
    %v2402 = vadd.s32 %v2397, 1
    %vm2403 = vcmp.gt.s32.totalorder %v2402, 0
    %v2404 = vsel %vm2403, %v2402, 0
    %v2405 = vshrl.u32 %v2404, 5
    %v2406 = vand.u32 %v2404, 31
    %v2407 = vsub.s32 32, %v2406
    %v2408 = vshrl.u32 683565275, %v2407
    %v2409 = vshll.u32 683565275, %v2406
    %v2410 = vshrl.u32 2475754826, %v2407
    %v2411 = vor.u32 %v2409, %v2410
    %v2412 = vshll.u32 2475754826, %v2406
    %v2413 = vshrl.u32 2131351028, %v2407
    %v2414 = vor.u32 %v2412, %v2413
    %v2415 = vshll.u32 2131351028, %v2406
    %v2416 = vshrl.u32 2102212464, %v2407
    %v2417 = vor.u32 %v2415, %v2416
    %v2418 = vshll.u32 2102212464, %v2406
    %v2419 = vshrl.u32 920167782, %v2407
    %v2420 = vor.u32 %v2418, %v2419
    %v2421 = vshll.u32 920167782, %v2406
    %v2422 = vshrl.u32 1326507024, %v2407
    %v2423 = vor.u32 %v2421, %v2422
    %vm2424 = vcmp.lt.s32.totalorder %v2405, 1
    %vm2425 = vcmp.lt.s32.totalorder %v2405, 2
    %vm2426 = vcmp.lt.s32.totalorder %v2405, 3
    %vm2427 = vcmp.lt.s32.totalorder %v2405, 4
    %v2428 = vsel %vm2424, %v2408, %v2411
    %v2429 = vsel %vm2427, %v2417, 2102212464
    %v2430 = vsel %vm2426, %v2414, %v2429
    %v2431 = vsel %vm2425, %v2428, %v2430
    %v2432 = vsel %vm2424, %v2411, %v2414
    %v2433 = vsel %vm2427, %v2420, 920167782
    %v2434 = vsel %vm2426, %v2417, %v2433
    %v2435 = vsel %vm2425, %v2432, %v2434
    %v2436 = vsel %vm2424, %v2414, %v2417
    %v2437 = vsel %vm2427, %v2423, 1326507024
    %v2438 = vsel %vm2426, %v2420, %v2437
    %v2439 = vsel %vm2425, %v2436, %v2438
    %v2440 = vshll.u32 %v2400, 8
    %v2441 = vmul.u32.u64.compose %v2440, %v2439
    %v2442 = vextract.low.u32 %v2441
    %v2443 = vextract.high.u32 %v2441
    %v2444 = vmul.u32.u64.compose %v2440, %v2435
    %v2445 = vextract.low.u32 %v2444
    %v2446 = vextract.high.u32 %v2444
    %v2447 = vmul.u32 %v2440, %v2431
    %v2448 = vadd.s32 %v2443, %v2445
    %vm2449 = vc.u32 %v2443, %v2445
    %v2450 = vadd.s32 %v2446, 1
    %v2451 = vsel %vm2449, %v2450, %v2446
    %v2452 = vadd.s32 %v2447, %v2451
    %v2453 = vadd.s32 %v2452, 536870912
    %v2454 = vshrl.u32 %v2453, 30
    %v2455 = vshll.u32 %v2454, 30
    %v2456 = vsub.s32 %v2452, %v2455
    %vm2457 = vcmp.lt.s32.totalorder %v2456, 0
    %v2458 = vsub.s32 0, %v2456
    %v2459 = vsel %vm2457, %v2458, %v2456
    %v2460 = vclz %v2459
    %v2461 = vsub.s32 %v2460, 2
    %vm2462 = vcmp.gt.s32.totalorder 0, %v2461
    %v2463 = vsel %vm2462, 0, %v2461
    %v2464 = vsub.s32 32, %v2463
    %v2465 = vshll.u32 %v2456, %v2463
    %v2466 = vshrl.u32 %v2448, %v2464
    %v2467 = vor.u32 %v2465, %v2466
    %v2468 = vsub.s32 4294967266, %v2463
    %v2469 = vadd.s32 %v2468, 127
    %v2470 = vshll.u32 %v2469, 23
    %v2471 = vor.u32 4788187, %v2470
    %v2472 = vand.u32 2147483647, %v2471
    %v2474 = vcvt.s32.f32 %v2467
    %v2475 = vmul.f32 %v2474, %v2472
    %v2476 = vxor.u32 %v2475, 2147483648
    %v2477 = vsel %vm2394, %v2476, %v2475
    %v2478 = vsub.s32 4, %v2454
    %v2479 = vsel %vm2394, %v2478, %v2454
    %v2480 = vsel %vm2393, %v2288, %v2477
    %v2481 = vsel %vm2393, 0, %v2479
    %v2482 = vcosq.f32.pop %v2480
    %v2483 = vsinq.f32.pop %v2480
    %vm2484 = vweird.f32 %v2288
    %v2485 = vand.u32 %v2481, 3
    %vm2486 = vcmp.lt.s32.totalorder %v2485, 2
    %vm2487 = vcmp.eq.s32.totalorder %v2485, 0
    %v2488 = vxor.u32 %v2483, 2147483648
    %v2489 = vsel %vm2487, %v2482, %v2488
    %vm2490 = vcmp.eq.s32.totalorder %v2485, 2
    %v2491 = vxor.u32 %v2482, 2147483648
    %v2492 = vsel %vm2490, %v2491, %v2483
    %v2493 = vsel %vm2486, %v2489, %v2492
    %v2494 = vsel %vm2484, nan, %v2493
    %v2495 = vld [vmem:[%s57] sm:$0xff]
    %v2496 = vld [vmem:[%s57 + $0x8] sm:$0xff]
    %2498 = vset.pattern.permute.xlu0 0
    %2499 = vperm.xlu0 %2498, %v2495
    %v2500 = vpop.permute.xlu0 %2499
    %2503 = vset.pattern.permute.xlu0 0
    %2504 = vperm.xlu0 %2503, %v2496
    %v2505 = vpop.permute.xlu0 %2504
    %v2507 = vmul.f32 %v2500, %v2276
    %v2508 = vmul.f32 %v2505, %v2276
    %v2509 = vadd.f32 %v2507, %v2285
    %v2510 = vadd.f32 %v2508, %v2285
    %v2511 = vand.u32 2147483647, %v2509
    %vm2512 = vcmp.le.f32.partialorder %v2511, 0.7853982
    %vm2513 = vcmp.lt.s32.totalorder %v2509, 0
    %v2514 = vand.u32 %v2509, 2139095040
    %v2515 = vshrl.u32 %v2514, 23
    %v2516 = vsub.s32 %v2515, 127
    %v2517 = vand.u32 2147483647, %v2509
    %v2518 = vand.u32 %v2517, 8388607
    %v2519 = vor.u32 %v2518, 8388608
    %v2520 = vsub.s32 0, %v2519
    %v2521 = vadd.s32 %v2516, 1
    %vm2522 = vcmp.gt.s32.totalorder %v2521, 0
    %v2523 = vsel %vm2522, %v2521, 0
    %v2524 = vshrl.u32 %v2523, 5
    %v2525 = vand.u32 %v2523, 31
    %v2526 = vsub.s32 32, %v2525
    %v2527 = vshrl.u32 683565275, %v2526
    %v2528 = vshll.u32 683565275, %v2525
    %v2529 = vshrl.u32 2475754826, %v2526
    %v2530 = vor.u32 %v2528, %v2529
    %v2531 = vshll.u32 2475754826, %v2525
    %v2532 = vshrl.u32 2131351028, %v2526
    %v2533 = vor.u32 %v2531, %v2532
    %v2534 = vshll.u32 2131351028, %v2525
    %v2535 = vshrl.u32 2102212464, %v2526
    %v2536 = vor.u32 %v2534, %v2535
    %v2537 = vshll.u32 2102212464, %v2525
    %v2538 = vshrl.u32 920167782, %v2526
    %v2539 = vor.u32 %v2537, %v2538
    %v2540 = vshll.u32 920167782, %v2525
    %v2541 = vshrl.u32 1326507024, %v2526
    %v2542 = vor.u32 %v2540, %v2541
    %vm2543 = vcmp.lt.s32.totalorder %v2524, 1
    %vm2544 = vcmp.lt.s32.totalorder %v2524, 2
    %vm2545 = vcmp.lt.s32.totalorder %v2524, 3
    %vm2546 = vcmp.lt.s32.totalorder %v2524, 4
    %v2547 = vsel %vm2543, %v2527, %v2530
    %v2548 = vsel %vm2546, %v2536, 2102212464
    %v2549 = vsel %vm2545, %v2533, %v2548
    %v2550 = vsel %vm2544, %v2547, %v2549
    %v2551 = vsel %vm2543, %v2530, %v2533
    %v2552 = vsel %vm2546, %v2539, 920167782
    %v2553 = vsel %vm2545, %v2536, %v2552
    %v2554 = vsel %vm2544, %v2551, %v2553
    %v2555 = vsel %vm2543, %v2533, %v2536
    %v2556 = vsel %vm2546, %v2542, 1326507024
    %v2557 = vsel %vm2545, %v2539, %v2556
    %v2558 = vsel %vm2544, %v2555, %v2557
    %v2559 = vshll.u32 %v2519, 8
    %v2560 = vmul.u32.u64.compose %v2559, %v2558
    %v2561 = vextract.low.u32 %v2560
    %v2562 = vextract.high.u32 %v2560
    %v2563 = vmul.u32.u64.compose %v2559, %v2554
    %v2564 = vextract.low.u32 %v2563
    %v2565 = vextract.high.u32 %v2563
    %v2566 = vmul.u32 %v2559, %v2550
    %v2567 = vadd.s32 %v2562, %v2564
    %vm2568 = vc.u32 %v2562, %v2564
    %v2569 = vadd.s32 %v2565, 1
    %v2570 = vsel %vm2568, %v2569, %v2565
    %v2571 = vadd.s32 %v2566, %v2570
    %v2572 = vadd.s32 %v2571, 536870912
    %v2573 = vshrl.u32 %v2572, 30
    %v2574 = vshll.u32 %v2573, 30
    %v2575 = vsub.s32 %v2571, %v2574
    %vm2576 = vcmp.lt.s32.totalorder %v2575, 0
    %v2577 = vsub.s32 0, %v2575
    %v2578 = vsel %vm2576, %v2577, %v2575
    %v2579 = vclz %v2578
    %v2580 = vsub.s32 %v2579, 2
    %vm2581 = vcmp.gt.s32.totalorder 0, %v2580
    %v2582 = vsel %vm2581, 0, %v2580
    %v2583 = vsub.s32 32, %v2582
    %v2584 = vshll.u32 %v2575, %v2582
    %v2585 = vshrl.u32 %v2567, %v2583
    %v2586 = vor.u32 %v2584, %v2585
    %v2587 = vsub.s32 4294967266, %v2582
    %v2588 = vadd.s32 %v2587, 127
    %v2589 = vshll.u32 %v2588, 23
    %v2590 = vor.u32 4788187, %v2589
    %v2591 = vand.u32 2147483647, %v2590
    %v2593 = vcvt.s32.f32 %v2586
    %v2594 = vmul.f32 %v2593, %v2591
    %v2595 = vxor.u32 %v2594, 2147483648
    %v2596 = vsel %vm2513, %v2595, %v2594
    %v2597 = vsub.s32 4, %v2573
    %v2598 = vsel %vm2513, %v2597, %v2573
    %v2599 = vsel %vm2512, %v2509, %v2596
    %v2600 = vsel %vm2512, 0, %v2598
    %v2601 = vcosq.f32.pop %v2599
    %v2602 = vsinq.f32.pop %v2599
    %vm2603 = vweird.f32 %v2509
    %v2604 = vand.u32 %v2600, 3
    %vm2605 = vcmp.lt.s32.totalorder %v2604, 2
    %vm2606 = vcmp.eq.s32.totalorder %v2604, 0
    %v2607 = vxor.u32 %v2602, 2147483648
    %v2608 = vsel %vm2606, %v2601, %v2607
    %vm2609 = vcmp.eq.s32.totalorder %v2604, 2
    %v2610 = vxor.u32 %v2601, 2147483648
    %v2611 = vsel %vm2609, %v2610, %v2602
    %v2612 = vsel %vm2605, %v2608, %v2611
    %v2613 = vsel %vm2603, nan, %v2612
    %v2614 = vand.u32 2147483647, %v2510
    %vm2615 = vcmp.le.f32.partialorder %v2614, 0.7853982
    %vm2616 = vcmp.lt.s32.totalorder %v2510, 0
    %v2617 = vand.u32 %v2510, 2139095040
    %v2618 = vshrl.u32 %v2617, 23
    %v2619 = vsub.s32 %v2618, 127
    %v2620 = vand.u32 2147483647, %v2510
    %v2621 = vand.u32 %v2620, 8388607
    %v2622 = vor.u32 %v2621, 8388608
    %v2623 = vsub.s32 0, %v2622
    %v2624 = vadd.s32 %v2619, 1
    %vm2625 = vcmp.gt.s32.totalorder %v2624, 0
    %v2626 = vsel %vm2625, %v2624, 0
    %v2627 = vshrl.u32 %v2626, 5
    %v2628 = vand.u32 %v2626, 31
    %v2629 = vsub.s32 32, %v2628
    %v2630 = vshrl.u32 683565275, %v2629
    %v2631 = vshll.u32 683565275, %v2628
    %v2632 = vshrl.u32 2475754826, %v2629
    %v2633 = vor.u32 %v2631, %v2632
    %v2634 = vshll.u32 2475754826, %v2628
    %v2635 = vshrl.u32 2131351028, %v2629
    %v2636 = vor.u32 %v2634, %v2635
    %v2637 = vshll.u32 2131351028, %v2628
    %v2638 = vshrl.u32 2102212464, %v2629
    %v2639 = vor.u32 %v2637, %v2638
    %v2640 = vshll.u32 2102212464, %v2628
    %v2641 = vshrl.u32 920167782, %v2629
    %v2642 = vor.u32 %v2640, %v2641
    %v2643 = vshll.u32 920167782, %v2628
    %v2644 = vshrl.u32 1326507024, %v2629
    %v2645 = vor.u32 %v2643, %v2644
    %vm2646 = vcmp.lt.s32.totalorder %v2627, 1
    %vm2647 = vcmp.lt.s32.totalorder %v2627, 2
    %vm2648 = vcmp.lt.s32.totalorder %v2627, 3
    %vm2649 = vcmp.lt.s32.totalorder %v2627, 4
    %v2650 = vsel %vm2646, %v2630, %v2633
    %v2651 = vsel %vm2649, %v2639, 2102212464
    %v2652 = vsel %vm2648, %v2636, %v2651
    %v2653 = vsel %vm2647, %v2650, %v2652
    %v2654 = vsel %vm2646, %v2633, %v2636
    %v2655 = vsel %vm2649, %v2642, 920167782
    %v2656 = vsel %vm2648, %v2639, %v2655
    %v2657 = vsel %vm2647, %v2654, %v2656
    %v2658 = vsel %vm2646, %v2636, %v2639
    %v2659 = vsel %vm2649, %v2645, 1326507024
    %v2660 = vsel %vm2648, %v2642, %v2659
    %v2661 = vsel %vm2647, %v2658, %v2660
    %v2662 = vshll.u32 %v2622, 8
    %v2663 = vmul.u32.u64.compose %v2662, %v2661
    %v2664 = vextract.low.u32 %v2663
    %v2665 = vextract.high.u32 %v2663
    %v2666 = vmul.u32.u64.compose %v2662, %v2657
    %v2667 = vextract.low.u32 %v2666
    %v2668 = vextract.high.u32 %v2666
    %v2669 = vmul.u32 %v2662, %v2653
    %v2670 = vadd.s32 %v2665, %v2667
    %vm2671 = vc.u32 %v2665, %v2667
    %v2672 = vadd.s32 %v2668, 1
    %v2673 = vsel %vm2671, %v2672, %v2668
    %v2674 = vadd.s32 %v2669, %v2673
    %v2675 = vadd.s32 %v2674, 536870912
    %v2676 = vshrl.u32 %v2675, 30
    %v2677 = vshll.u32 %v2676, 30
    %v2678 = vsub.s32 %v2674, %v2677
    %vm2679 = vcmp.lt.s32.totalorder %v2678, 0
    %v2680 = vsub.s32 0, %v2678
    %v2681 = vsel %vm2679, %v2680, %v2678
    %v2682 = vclz %v2681
    %v2683 = vsub.s32 %v2682, 2
    %vm2684 = vcmp.gt.s32.totalorder 0, %v2683
    %v2685 = vsel %vm2684, 0, %v2683
    %v2686 = vsub.s32 32, %v2685
    %v2687 = vshll.u32 %v2678, %v2685
    %v2688 = vshrl.u32 %v2670, %v2686
    %v2689 = vor.u32 %v2687, %v2688
    %v2690 = vsub.s32 4294967266, %v2685
    %v2691 = vadd.s32 %v2690, 127
    %v2692 = vshll.u32 %v2691, 23
    %v2693 = vor.u32 4788187, %v2692
    %v2694 = vand.u32 2147483647, %v2693
    %v2696 = vcvt.s32.f32 %v2689
    %v2697 = vmul.f32 %v2696, %v2694
    %v2698 = vxor.u32 %v2697, 2147483648
    %v2699 = vsel %vm2616, %v2698, %v2697
    %v2700 = vsub.s32 4, %v2676
    %v2701 = vsel %vm2616, %v2700, %v2676
    %v2702 = vsel %vm2615, %v2510, %v2699
    %v2703 = vsel %vm2615, 0, %v2701
    %v2704 = vcosq.f32.pop %v2702
    %v2705 = vsinq.f32.pop %v2702
    %vm2706 = vweird.f32 %v2510
    %v2707 = vand.u32 %v2703, 3
    %vm2708 = vcmp.lt.s32.totalorder %v2707, 2
    %vm2709 = vcmp.eq.s32.totalorder %v2707, 0
    %v2710 = vxor.u32 %v2705, 2147483648
    %v2711 = vsel %vm2709, %v2704, %v2710
    %vm2712 = vcmp.eq.s32.totalorder %v2707, 2
    %v2713 = vxor.u32 %v2704, 2147483648
    %v2714 = vsel %vm2712, %v2713, %v2705
    %v2715 = vsel %vm2708, %v2711, %v2714
    %v2716 = vsel %vm2706, nan, %v2715
    %v2717 = vpack.c.bf16 %v2205, %v2202
    %v2718 = vld [vmem:[#allocation21] sm:$0xf]
    %v2719 = vld [vmem:[#allocation21 + $0x4] sm:$0xf]
    %v2720 = vld [vmem:[#allocation21 + $0x8] sm:$0xf]
    %v2721 = vld [vmem:[#allocation21 + $0xc] sm:$0xf]
    %v2722 = vld [vmem:[#allocation21 + $0x10] sm:$0xf]
    %v2723 = vld [vmem:[#allocation21 + $0x14] sm:$0xf]
    %v2724 = vld [vmem:[#allocation21 + $0x18] sm:$0xf]
    %v2725 = vld [vmem:[#allocation21 + $0x1c] sm:$0xf]
    %v2726 = vld [vmem:[#allocation21 + $0x20] sm:$0xf]
    %v2727 = vld [vmem:[#allocation21 + $0x24] sm:$0xf]
    %v2728 = vld [vmem:[#allocation21 + $0x28] sm:$0xf]
    %v2729 = vld [vmem:[#allocation21 + $0x2c] sm:$0xf]
    %v2730 = vld [vmem:[#allocation21 + $0x30] sm:$0xf]
    %v2731 = vld [vmem:[#allocation21 + $0x34] sm:$0xf]
    %v2732 = vld [vmem:[#allocation21 + $0x38] sm:$0xf]
    %v2733 = vld [vmem:[#allocation21 + $0x3c] sm:$0xf]
    %v2734 = vpack.c.bf16 %v2494, %v2391
    %v2735 = vld [vmem:[#allocation23] sm:$0xf]
    %v2736 = vld [vmem:[#allocation23 + $0x4] sm:$0xf]
    %v2737 = vld [vmem:[#allocation23 + $0x8] sm:$0xf]
    %v2738 = vld [vmem:[#allocation23 + $0xc] sm:$0xf]
    %v2739 = vld [vmem:[#allocation23 + $0x10] sm:$0xf]
    %v2740 = vld [vmem:[#allocation23 + $0x14] sm:$0xf]
    %v2741 = vld [vmem:[#allocation23 + $0x18] sm:$0xf]
    %v2742 = vld [vmem:[#allocation23 + $0x1c] sm:$0xf]
    %v2743 = vld [vmem:[#allocation23 + $0x20] sm:$0xf]
    %v2744 = vld [vmem:[#allocation23 + $0x24] sm:$0xf]
    %v2745 = vld [vmem:[#allocation23 + $0x28] sm:$0xf]
    %v2746 = vld [vmem:[#allocation23 + $0x2c] sm:$0xf]
    %v2747 = vld [vmem:[#allocation23 + $0x30] sm:$0xf]
    %v2748 = vld [vmem:[#allocation23 + $0x34] sm:$0xf]
    %v2749 = vld [vmem:[#allocation23 + $0x38] sm:$0xf]
    %v2750 = vld [vmem:[#allocation23 + $0x3c] sm:$0xf]
    %v2767 = vunpack.c.l.b16 %v2735
    %v2768 = vunpack.c.l.b16 %v2736
    %v2769 = vunpack.c.l.b16 %v2737
    %v2770 = vunpack.c.l.b16 %v2738
    %v2771 = vunpack.c.l.b16 %v2739
    %v2772 = vunpack.c.l.b16 %v2740
    %v2773 = vunpack.c.l.b16 %v2741
    %v2774 = vunpack.c.l.b16 %v2742
    %v2775 = vunpack.c.l.b16 %v2743
    %v2776 = vunpack.c.l.b16 %v2744
    %v2777 = vunpack.c.l.b16 %v2745
    %v2778 = vunpack.c.l.b16 %v2746
    %v2779 = vunpack.c.l.b16 %v2747
    %v2780 = vunpack.c.l.b16 %v2748
    %v2781 = vunpack.c.l.b16 %v2749
    %v2782 = vunpack.c.l.b16 %v2750
    %v2783 = vpack.c.b16 %v2768, %v2767
    %v2784 = vpack.c.b16 %v2770, %v2769
    %v2785 = vpack.c.b16 %v2772, %v2771
    %v2786 = vpack.c.b16 %v2774, %v2773
    %v2787 = vpack.c.b16 %v2776, %v2775
    %v2788 = vpack.c.b16 %v2778, %v2777
    %v2789 = vpack.c.b16 %v2780, %v2779
    %v2790 = vpack.c.b16 %v2782, %v2781
    %2799 = vmatprep.subr.bf16.mxu0 0
    %2800 = vmatpush1.bf16.msra.mxu0 %v2783
    %2801 = vmatprep.subr.bf16.mxu0 0
    %2802 = vmatpush1.bf16.msra.mxu0 %v2784
    %2803 = vmatprep.subr.bf16.mxu0 0
    %2804 = vmatpush1.bf16.msra.mxu0 %v2785
    %2805 = vmatprep.subr.bf16.mxu0 0
    %2806 = vmatpush1.bf16.msra.mxu0 %v2786
    %2807 = vmatprep.subr.bf16.mxu0 0
    %2808 = vmatpush1.bf16.msra.mxu0 %v2787
    %2809 = vmatprep.subr.bf16.mxu0 0
    %2810 = vmatpush1.bf16.msra.mxu0 %v2788
    %2811 = vmatprep.subr.bf16.mxu0 0
    %2812 = vmatpush1.bf16.msra.mxu0 %v2789
    %2813 = vmatprep.subr.bf16.mxu0 0
    %2814 = vmatpush1.bf16.msra.mxu0 %v2790
    %2815 = vmatprep.subr.bf16.mxu0 0
    %2816 = vmatpush1.bf16.msra.mxu0 0
    %2817 = vmatprep.subr.bf16.mxu0 0
    %2818 = vmatpush1.bf16.msra.mxu0 0
    %2819 = vmatprep.subr.bf16.mxu0 0
    %2820 = vmatpush1.bf16.msra.mxu0 0
    %2821 = vmatprep.subr.bf16.mxu0 0
    %2822 = vmatpush1.bf16.msra.mxu0 0
    %2823 = vmatprep.subr.bf16.mxu0 0
    %2824 = vmatpush1.bf16.msra.mxu0 0
    %2825 = vmatprep.subr.bf16.mxu0 0
    %2826 = vmatpush1.bf16.msra.mxu0 0
    %2827 = vmatprep.subr.bf16.mxu0 0
    %2828 = vmatpush1.bf16.msra.mxu0 0
    %2829 = vmatprep.subr.bf16.mxu0 0
    %2830 = vmatpush1.bf16.msra.mxu0 0
    %2831 = vmatprep.mubr.bf16.mxu0 0
    %2832 = vmatmul.mubr.bf16.gmra.mrb[0].mxu0 %v2734
    %v2833 = vpop.f32.mrb[0].mxu0
    %v2834 = vadd.f32 0.0, %v2833
    %v2835 = vpop.f32.mrb[0].mxu0
    %v2836 = vpop.f32.mrb[0].mxu0
    %v2837 = vadd.f32 0.0, %v2836
    %v2838 = vpop.f32.mrb[0].mxu0
    %2839 = vdwg.mxu0
    %v2856 = vunpack.c.l.b16 %v2718
    %v2857 = vunpack.c.l.b16 %v2719
    %v2858 = vunpack.c.l.b16 %v2720
    %v2859 = vunpack.c.l.b16 %v2721
    %v2860 = vunpack.c.l.b16 %v2722
    %v2861 = vunpack.c.l.b16 %v2723
    %v2862 = vunpack.c.l.b16 %v2724
    %v2863 = vunpack.c.l.b16 %v2725
    %v2864 = vunpack.c.l.b16 %v2726
    %v2865 = vunpack.c.l.b16 %v2727
    %v2866 = vunpack.c.l.b16 %v2728
    %v2867 = vunpack.c.l.b16 %v2729
    %v2868 = vunpack.c.l.b16 %v2730
    %v2869 = vunpack.c.l.b16 %v2731
    %v2870 = vunpack.c.l.b16 %v2732
    %v2871 = vunpack.c.l.b16 %v2733
    %v2872 = vpack.c.b16 %v2857, %v2856
    %v2873 = vpack.c.b16 %v2859, %v2858
    %v2874 = vpack.c.b16 %v2861, %v2860
    %v2875 = vpack.c.b16 %v2863, %v2862
    %v2876 = vpack.c.b16 %v2865, %v2864
    %v2877 = vpack.c.b16 %v2867, %v2866
    %v2878 = vpack.c.b16 %v2869, %v2868
    %v2879 = vpack.c.b16 %v2871, %v2870
    %2888 = vmatprep.subr.bf16.mxu0 0
    %2889 = vmatpush1.bf16.msra.mxu0 %v2872
    %2890 = vmatprep.subr.bf16.mxu0 0
    %2891 = vmatpush1.bf16.msra.mxu0 %v2873
    %2892 = vmatprep.subr.bf16.mxu0 0
    %2893 = vmatpush1.bf16.msra.mxu0 %v2874
    %2894 = vmatprep.subr.bf16.mxu0 0
    %2895 = vmatpush1.bf16.msra.mxu0 %v2875
    %2896 = vmatprep.subr.bf16.mxu0 0
    %2897 = vmatpush1.bf16.msra.mxu0 %v2876
    %2898 = vmatprep.subr.bf16.mxu0 0
    %2899 = vmatpush1.bf16.msra.mxu0 %v2877
    %2900 = vmatprep.subr.bf16.mxu0 0
    %2901 = vmatpush1.bf16.msra.mxu0 %v2878
    %2902 = vmatprep.subr.bf16.mxu0 0
    %2903 = vmatpush1.bf16.msra.mxu0 %v2879
    %2904 = vmatprep.subr.bf16.mxu0 0
    %2905 = vmatpush1.bf16.msra.mxu0 0
    %2906 = vmatprep.subr.bf16.mxu0 0
    %2907 = vmatpush1.bf16.msra.mxu0 0
    %2908 = vmatprep.subr.bf16.mxu0 0
    %2909 = vmatpush1.bf16.msra.mxu0 0
    %2910 = vmatprep.subr.bf16.mxu0 0
    %2911 = vmatpush1.bf16.msra.mxu0 0
    %2912 = vmatprep.subr.bf16.mxu0 0
    %2913 = vmatpush1.bf16.msra.mxu0 0
    %2914 = vmatprep.subr.bf16.mxu0 0
    %2915 = vmatpush1.bf16.msra.mxu0 0
    %2916 = vmatprep.subr.bf16.mxu0 0
    %2917 = vmatpush1.bf16.msra.mxu0 0
    %2918 = vmatprep.subr.bf16.mxu0 0
    %2919 = vmatpush1.bf16.msra.mxu0 0
    %2920 = vmatprep.mubr.bf16.mxu0 0
    %2921 = vmatmul.mubr.bf16.gmra.mrb[0].mxu0 %v2717
    %v2922 = vpop.f32.mrb[0].mxu0
    %v2923 = vadd.f32 %v2834, %v2922
    %v2924 = vpop.f32.mrb[0].mxu0
    %v2925 = vpop.f32.mrb[0].mxu0
    %v2926 = vadd.f32 %v2837, %v2925
    %v2927 = vpop.f32.mrb[0].mxu0
    %2928 = vdwg.mxu0
    %v2929 = vld [vmem:[%s41] sm:$0x1]
    %v2931 = vlaneseq
    %v2932 = vshrl.u32 %v2931, 7
    %v2933 = vsub.s32 0, %v2932
    %v2934 = vrot.slane %v2929, %v2933
    %v2936 = vadd.f32 %v2923, %v2934
    %v2937 = vadd.f32 %v2926, %v2934
    %v2938 = vmax.f32 %v2936, 0.0
    %v2939 = vmax.f32 %v2937, 0.0
    %v2940 = vpack.c.bf16 %v2256, %v2253
    %v2941 = vpack.c.bf16 %v2716, %v2613
    %2942 = vmatprep.subr.bf16.mxu0 0
    %2943 = vmatpush1.bf16.msra.mxu0 %v2783
    %2944 = vmatprep.subr.bf16.mxu0 0
    %2945 = vmatpush1.bf16.msra.mxu0 %v2784
    %2946 = vmatprep.subr.bf16.mxu0 0
    %2947 = vmatpush1.bf16.msra.mxu0 %v2785
    %2948 = vmatprep.subr.bf16.mxu0 0
    %2949 = vmatpush1.bf16.msra.mxu0 %v2786
    %2950 = vmatprep.subr.bf16.mxu0 0
    %2951 = vmatpush1.bf16.msra.mxu0 %v2787
    %2952 = vmatprep.subr.bf16.mxu0 0
    %2953 = vmatpush1.bf16.msra.mxu0 %v2788
    %2954 = vmatprep.subr.bf16.mxu0 0
    %2955 = vmatpush1.bf16.msra.mxu0 %v2789
    %2956 = vmatprep.subr.bf16.mxu0 0
    %2957 = vmatpush1.bf16.msra.mxu0 %v2790
    %2958 = vmatprep.subr.bf16.mxu0 0
    %2959 = vmatpush1.bf16.msra.mxu0 0
    %2960 = vmatprep.subr.bf16.mxu0 0
    %2961 = vmatpush1.bf16.msra.mxu0 0
    %2962 = vmatprep.subr.bf16.mxu0 0
    %2963 = vmatpush1.bf16.msra.mxu0 0
    %2964 = vmatprep.subr.bf16.mxu0 0
    %2965 = vmatpush1.bf16.msra.mxu0 0
    %2966 = vmatprep.subr.bf16.mxu0 0
    %2967 = vmatpush1.bf16.msra.mxu0 0
    %2968 = vmatprep.subr.bf16.mxu0 0
    %2969 = vmatpush1.bf16.msra.mxu0 0
    %2970 = vmatprep.subr.bf16.mxu0 0
    %2971 = vmatpush1.bf16.msra.mxu0 0
    %2972 = vmatprep.subr.bf16.mxu0 0
    %2973 = vmatpush1.bf16.msra.mxu0 0
    %2974 = vmatprep.mubr.bf16.mxu0 0
    %2975 = vmatmul.mubr.bf16.gmra.mrb[0].mxu0 %v2941
    %v2976 = vpop.f32.mrb[0].mxu0
    %v2977 = vadd.f32 0.0, %v2976
    %v2978 = vpop.f32.mrb[0].mxu0
    %v2979 = vpop.f32.mrb[0].mxu0
    %v2980 = vadd.f32 0.0, %v2979
    %v2981 = vpop.f32.mrb[0].mxu0
    %2982 = vdwg.mxu0
    %2983 = vmatprep.subr.bf16.mxu0 0
    %2984 = vmatpush1.bf16.msra.mxu0 %v2872
    %2985 = vmatprep.subr.bf16.mxu0 0
    %2986 = vmatpush1.bf16.msra.mxu0 %v2873
    %2987 = vmatprep.subr.bf16.mxu0 0
    %2988 = vmatpush1.bf16.msra.mxu0 %v2874
    %2989 = vmatprep.subr.bf16.mxu0 0
    %2990 = vmatpush1.bf16.msra.mxu0 %v2875
    %2991 = vmatprep.subr.bf16.mxu0 0
    %2992 = vmatpush1.bf16.msra.mxu0 %v2876
    %2993 = vmatprep.subr.bf16.mxu0 0
    %2994 = vmatpush1.bf16.msra.mxu0 %v2877
    %2995 = vmatprep.subr.bf16.mxu0 0
    %2996 = vmatpush1.bf16.msra.mxu0 %v2878
    %2997 = vmatprep.subr.bf16.mxu0 0
    %2998 = vmatpush1.bf16.msra.mxu0 %v2879
    %2999 = vmatprep.subr.bf16.mxu0 0
    %3000 = vmatpush1.bf16.msra.mxu0 0
    %3001 = vmatprep.subr.bf16.mxu0 0
    %3002 = vmatpush1.bf16.msra.mxu0 0
    %3003 = vmatprep.subr.bf16.mxu0 0
    %3004 = vmatpush1.bf16.msra.mxu0 0
    %3005 = vmatprep.subr.bf16.mxu0 0
    %3006 = vmatpush1.bf16.msra.mxu0 0
    %3007 = vmatprep.subr.bf16.mxu0 0
    %3008 = vmatpush1.bf16.msra.mxu0 0
    %3009 = vmatprep.subr.bf16.mxu0 0
    %3010 = vmatpush1.bf16.msra.mxu0 0
    %3011 = vmatprep.subr.bf16.mxu0 0
    %3012 = vmatpush1.bf16.msra.mxu0 0
    %3013 = vmatprep.subr.bf16.mxu0 0
    %3014 = vmatpush1.bf16.msra.mxu0 0
    %3015 = vmatprep.mubr.bf16.mxu0 0
    %3016 = vmatmul.mubr.bf16.gmra.mrb[0].mxu0 %v2940
    %v3017 = vpop.f32.mrb[0].mxu0
    %v3018 = vadd.f32 %v2977, %v3017
    %v3019 = vpop.f32.mrb[0].mxu0
    %v3020 = vpop.f32.mrb[0].mxu0
    %v3021 = vadd.f32 %v2980, %v3020
    %v3022 = vpop.f32.mrb[0].mxu0
    %3023 = vdwg.mxu0
    %v3024 = vadd.f32 %v3018, %v2934
    %v3025 = vadd.f32 %v3021, %v2934
    %v3026 = vmax.f32 %v3024, 0.0
    %v3027 = vmax.f32 %v3025, 0.0
    %v3028 = vld [vmem:[%s47] sm:$0x1]
    %v3030 = vlaneseq
    %v3031 = vshrl.u32 %v3030, 7
    %v3032 = vsub.s32 0, %v3031
    %v3033 = vrot.slane %v3028, %v3032
    %v3035 = vmul.f32 %v2938, %v3033
    %v3036 = vmul.f32 %v2939, %v3033
    %3037 = vadd.xlane.f32.xlu0 %v3035
    %v3038 = vpop.xlane.xlu0 %3037
    %3039 = vadd.xlane.f32.xlu0 %v3036
    %v3040 = vpop.xlane.xlu0 %3039
    %s3041 = scalar_lea.vmem %s47, 1
    %v3042 = vld [vmem:[%s3041] sm:$0x1]
    %v3044 = vlaneseq
    %v3045 = vshrl.u32 %v3044, 7
    %v3046 = vsub.s32 0, %v3045
    %v3047 = vrot.slane %v3042, %v3046
    %v3049 = vmul.f32 %v3026, %v3047
    %v3050 = vmul.f32 %v3027, %v3047
    %3051 = vadd.xlane.f32.xlu0 %v3049
    %v3052 = vpop.xlane.xlu0 %3051
    %3053 = vadd.xlane.f32.xlu0 %v3050
    %v3054 = vpop.xlane.xlu0 %3053
    %v3055 = vadd.f32 %v3038, %v3052
    %v3056 = vadd.f32 %v3040, %v3054
    %v3057 = vld [vmem:[#allocation2] sm:$0x1]
    %v3059 = vlaneseq
    %v3060 = vshrl.u32 %v3059, 7
    %v3061 = vsub.s32 0, %v3060
    %v3062 = vrot.slane %v3057, %v3061
    %v3064 = vadd.f32 %v3055, %v3062
    %v3065 = vadd.f32 %v3056, %v3062
    %v3066 = vld [vmem:[%s59] sm:$0xff]
    %v3067 = vld [vmem:[%s59 + $0x8] sm:$0xff]
    %v3068 = vld [vmem:[%s61] sm:$0xff]
    %v3069 = vld [vmem:[%s61 + $0x8] sm:$0xff]
    %v3070 = vmax.f32 %v3064, 0.0
    %v3071 = vmax.f32 %v3065, 0.0
    %v3072 = vmul.f32 %v3064, %v3066
    %v3073 = vmul.f32 %v3065, %v3067
    %v3074 = vsub.f32 %v3070, %v3072
    %v3075 = vsub.f32 %v3071, %v3073
    %v3076 = vand.u32 2147483647, %v3064
    %v3077 = vand.u32 2147483647, %v3065
    %v3078 = vsub.f32 0.0, %v3076
    %v3079 = vsub.f32 0.0, %v3077
    %v3080 = vmul.f32 %v3078, 1.442695
    %v3081 = vpow.pop %v3080
    %v3082 = vmul.f32 %v3079, 1.442695
    %v3083 = vpow.pop %v3082
    %v3084 = vadd.f32 %v3081, 1.0
    %v3085 = vadd.f32 %v3083, 1.0
    %v3086 = vlog2.pop %v3084
    %v3087 = vmul.f32 %v3086, 0.6931472
    %v3088 = vlog2.pop %v3085
    %v3089 = vmul.f32 %v3088, 0.6931472
    %v3090 = vadd.f32 %v3074, %v3087
    %v3091 = vadd.f32 %v3075, %v3089
    %v3092 = vmul.f32 %v3090, %v3068
    %v3093 = vmul.f32 %v3091, %v3069
    %vm3094 = vcmask 7168
    %v3095 = vsel %vm3094, %v3092, 0.0
    %v3096 = vsel %vm3094, %v3093, 0.0
    %v3097 = vadd.f32 %v3095, %v3096
    %v3098 = vrot.slane %v3097, 4
    %v3099 = vadd.f32 %v3097, %v3098
    %v3100 = vrot.slane %v3099, 2
    %v3101 = vadd.f32 %v3099, %v3100
    %v3102 = vrot.slane %v3101, 1
    %v3103 = vadd.f32 %v3101, %v3102
    %vm3104 = vcmask 0
    %3105 = vst.msk [vmem:[#allocation24] sm:$0x1] %vm3104, %v3103
    // Predicated region
    $region178: #{tpu_custom_call.1} parent=1 // pred_check
      _
    $region179: #{tpu_custom_call.1} parent=1 // pred_check_branch
      %3107 = sbr.rel (0) target = $region181
    $region180: #{tpu_custom_call.1} parent=1 // pred_region
      %s3109 = ssub.s32 16, 16
      %3110 = vsyncadd [#allocation5], %s3109
      %s3112 = sshll.u32 [#allocation24], 4
      %s3113 = int_to_ptr.vmem [resolvable:$true] %s3112
      %3115 = dma.vmem_to_hbm [thread:$0]  %s3113, 16, %s63, [#allocation5]
    $region181: #{tpu_custom_call.1} parent=1 // pred_fallthru
      _
    // Predicated region
    $region182: #{tpu_custom_call.1} parent=1 // pred_check
      _
    $region183: #{tpu_custom_call.1} parent=1 // pred_check_branch
      %3117 = sbr.rel (0) target = $region185
    $region184: #{tpu_custom_call.1} parent=1 // pred_region
      %3118 = dma.done [#allocation5], 16
    $region185: #{tpu_custom_call.1} parent=1 // pred_fallthru
      _
    %3119 = vsyncpa [#allocation4], 1
    %3120 = vsyncpa [#allocation7], 1
    %3121 = vsyncpa [#allocation10], 1
    %3122 = vsyncpa [#allocation13], 1
    %3123 = vsyncpa [#allocation16], 1
    %3124 = vsyncpa [#allocation19], 1
    %3125 = vsyncpa [#allocation22], 1
    %3126 = vsyncpa [#allocation5], 1

</llo_original>
